<compile_context>
chip_gen: v7x
topology: tpu7x:2x2x1
jax: 0.10.0
libtpu: 0.0.40
codegen_flags: <defaults>
</compile_context>

<pallas_src>
import jax
import jax.numpy as jnp
from jax.experimental import pallas as pl
from jax.experimental.pallas import tpu as pltpu


def _round_up(x, m):
    return ((x + m - 1) // m) * m


def _leaky_relu(h, slope=0.2):
    # slope < 1 => max(h, slope*h) == LeakyReLU(h); one VALU op.
    return jnp.maximum(h, slope * h)


def generator_fc_kernel(x_ref,
                        w1_ref, b1_ref,
                        w2_ref, b2_ref,
                        w3_ref, b3_ref,
                        w4_ref, b4_ref,
                        o_ref):
    """One batch tile: 4 matmuls (bf16 operands, f32 accumulation) + activations."""
    cdt = w1_ref.dtype  # bf16 MXU operand dtype

    # fc1 + LeakyReLU(0.2): x arrives f32, cast to bf16 for the MXU.
    h = jnp.dot(x_ref[...].astype(cdt), w1_ref[...],
                preferred_element_type=jnp.float32)
    h = _leaky_relu(h + b1_ref[...])
    # fc2 + LeakyReLU(0.2)
    h = jnp.dot(h.astype(cdt), w2_ref[...], preferred_element_type=jnp.float32)
    h = _leaky_relu(h + b2_ref[...])
    # fc3 + LeakyReLU(0.2)
    h = jnp.dot(h.astype(cdt), w3_ref[...], preferred_element_type=jnp.float32)
    h = _leaky_relu(h + b3_ref[...])
    # fc4 + tanh
    h = jnp.dot(h.astype(cdt), w4_ref[...], preferred_element_type=jnp.float32)
    o_ref[...] = jnp.tanh(h + b4_ref[...]).astype(o_ref.dtype)


def prepare_kernel_params(params, compute_dtype=jnp.bfloat16):
    """One-time cast/pad of the weights into kernel operand form (cache this).

    Returns a dict with the weight operand tuple plus the static dims needed by
    generator_fc(). Doing this once per model (not per forward call) removes
    ~9.6 MiB of per-call HBM read/write traffic.
    """
    w1, b1 = params["w1"], params["b1"]
    w2, b2 = params["w2"], params["b2"]
    w3, b3 = params["w3"], params["b3"]
    w4, b4 = params["w4"], params["b4"]

    in_dim = w1.shape[0]
    d1, d2, d3 = w1.shape[1], w2.shape[1], w3.shape[1]
    out_dim = w4.shape[1]
    n_pad = _round_up(out_dim, 128)   # lane-dense final matmul / output store

    w1c = w1.astype(compute_dtype)
    w2c = w2.astype(compute_dtype)
    w3c = w3.astype(compute_dtype)
    w4p = jnp.zeros((d3, n_pad), compute_dtype).at[:, :out_dim].set(
        w4.astype(compute_dtype))
    # Biases stay f32 (added into the f32 accumulator), shaped [1, N].
    b1c = b1.astype(jnp.float32)
    b2c = b2.astype(jnp.float32)
    b3c = b3.astype(jnp.float32)
    b4p = jnp.zeros((1, n_pad), jnp.float32).at[:, :out_dim].set(
        b4.astype(jnp.float32))

    return dict(
        weights=(w1c, b1c, w2c, b2c, w3c, b3c, w4p, b4p),
        in_dim=in_dim, dims=(d1, d2, d3), out_dim=out_dim, n_pad=n_pad,
    )


def _pick_batch_tile(B):
    """Batch tile: big enough to amortize ~0.35us/step overhead on v6e/v7x,
    but >=2 grid steps once B >= 256 so both v7x TensorCores get work."""
    if B < 128:
        # bf16 intermediates want >=16 sublanes; tiny B is weight-DMA bound
        # anyway, so nothing else matters here.
        return _round_up(max(B, 1), 16)
    if B >= 1024:
        tm = 512
    elif B >= 256:
        tm = 256
    else:
        tm = 128
    if B >= 256:
        # Keep at least 2 grid steps (megacore sharding on v7x).
        tm = min(tm, max(128, _round_up(B, 128) // 2))
    return tm


def generator_fc(x, kparams):
    """Forward pass. x: [B, g_input_dim] f32 -> [B, g_output_dim] f32.

    kparams: output of prepare_kernel_params() (cached bf16/padded weights).
    """
    B, in_dim = x.shape
    assert in_dim == kparams["in_dim"], (in_dim, kparams["in_dim"])
    d1, d2, d3 = kparams["dims"]
    out_dim = kparams["out_dim"]
    n_pad = kparams["n_pad"]
    weights = kparams["weights"]

    tm = _pick_batch_tile(B)
    b_pad = _round_up(B, tm)
    grid = (b_pad // tm,)

    xp = x if b_pad == B else jnp.zeros((b_pad, in_dim), x.dtype).at[:B].set(x)

    flops = 2 * b_pad * (in_dim * d1 + d1 * d2 + d2 * d3 + d3 * n_pad)
    bytes_accessed = (
        xp.size * xp.dtype.itemsize
        + sum(int(w.size) * w.dtype.itemsize for w in weights)
        + b_pad * n_pad * 4                          # f32 output
    )
    cost = pl.CostEstimate(flops=int(flops),
                           transcendentals=int(b_pad * n_pad),   # tanh
                           bytes_accessed=int(bytes_accessed))

    # Weights use a constant index_map -> DMA'd once, VMEM-resident across all
    # batch tiles. x / output get per-tile index_maps -> pipelined DMAs.
    def wspec(shape):
        return pl.BlockSpec(shape, lambda i: (0, 0))

    out = pl.pallas_call(
        generator_fc_kernel,
        out_shape=jax.ShapeDtypeStruct((b_pad, n_pad), jnp.float32),
        grid=grid,
        in_specs=[
            pl.BlockSpec((tm, in_dim), lambda i: (i, 0)),   # x: per batch tile
            wspec((in_dim, d1)), wspec((1, d1)),            # fc1
            wspec((d1, d2)), wspec((1, d2)),                # fc2
            wspec((d2, d3)), wspec((1, d3)),                # fc3
            wspec((d3, n_pad)), wspec((1, n_pad)),          # fc4
        ],
        out_specs=pl.BlockSpec((tm, n_pad), lambda i: (i, 0)),
        compiler_params=pltpu.CompilerParams(
            dimension_semantics=("parallel",),   # batch tiles -> 2 TCs on v7x
            vmem_limit_bytes=32 << 20,           # needed on v5e; safe on v7x
        ),
        cost_estimate=cost,
    )(xp, *weights)

    return out[:B, :out_dim]


def init_params(key, g_input_dim, g_output_dim):
    """Deterministic init matching nn.Linear default U(-1/sqrt(in), 1/sqrt(in)).
    Weights stored as [in, out] (transpose of PyTorch's [out, in])."""
    dims = [g_input_dim, 256, 512, 1024, g_output_dim]
    params = {}
    for i in range(4):
        key, kw, kb = jax.random.split(key, 3)
        fan_in, fan_out = dims[i], dims[i + 1]
        bound = 1.0 / (fan_in ** 0.5)
        params[f"w{i+1}"] = jax.random.uniform(
            kw, (fan_in, fan_out), jnp.float32, -bound, bound)
        # biases kept 2-D [1, out] so they broadcast cleanly in the kernel
        params[f"b{i+1}"] = jax.random.uniform(
            kb, (1, fan_out), jnp.float32, -bound, bound)
    return params


def generator_fc_ref_f32(x, params):
    """Plain-JAX full-f32 reference (PyTorch-equivalent math)."""
    h = x
    for i in range(1, 4):
        h = h @ params[f"w{i}"] + params[f"b{i}"]
        h = jnp.where(h >= 0, h, 0.2 * h)
    h = h @ params["w4"] + params["b4"]
    return jnp.tanh(h)


def generator_fc_ref_mixed(x, params):
    """Plain-JAX reference using the kernel's exact mixed-precision recipe.
    NOTE: intermediate activations are re-quantized to bf16 between layers —
    an explicit precision decision (bf16 MXU operands, f32 accumulate)."""
    cdt = jnp.bfloat16
    h = x.astype(cdt)
    for i in range(1, 5):
        w = params[f"w{i}"].astype(cdt)
        b = params[f"b{i}"].astype(jnp.float32)
        h = jnp.dot(h, w, preferred_element_type=jnp.float32) + b
        if i < 4:
            h = jnp.maximum(h, 0.2 * h).astype(cdt)
    return jnp.tanh(h)


if __name__ == "__main__":
    B = 8
    G_INPUT_DIM = 64     # latent dim
    G_OUTPUT_DIM = 784   # e.g. flattened 28x28 MNIST image

    key = jax.random.PRNGKey(0)
    key, kx = jax.random.split(key)
    x = jax.random.normal(kx, (B, G_INPUT_DIM), jnp.float32)
    params = init_params(key, G_INPUT_DIM, G_OUTPUT_DIM)

    # One-time weight cast/pad (hoisted out of the forward pass).
    kparams = prepare_kernel_params(params)

    out = generator_fc(x, kparams)
    out = jax.block_until_ready(out)
    assert out.shape == (B, G_OUTPUT_DIM), out.shape

    # Tight check against a reference with identical bf16/f32 mixed precision.
    ref_mixed = generator_fc_ref_mixed(x, params)
    assert jnp.allclose(out, ref_mixed, atol=1e-3, rtol=1e-3), \
        float(jnp.max(jnp.abs(out - ref_mixed)))

    # Loose sanity check against the full-f32 PyTorch-equivalent math
    # (bf16 operands change results beyond f32 tolerance).
    ref_f32 = generator_fc_ref_f32(x, params)
    assert jnp.allclose(out, ref_f32, atol=5e-2, rtol=0.0), \
        float(jnp.max(jnp.abs(out - ref_f32)))

    print("KERNEL_OK")
</pallas_src>

<mosaic_0001>
module attributes {stable_mosaic.version = 11 : i64} {
  func.func @generator_fc_kernel(%arg0: i32, %arg1: memref<16x64xf32, #tpu.memory_space<vmem>>, %arg2: memref<64x256xbf16, #tpu.memory_space<vmem>>, %arg3: memref<1x256xf32, #tpu.memory_space<vmem>>, %arg4: memref<256x512xbf16, #tpu.memory_space<vmem>>, %arg5: memref<1x512xf32, #tpu.memory_space<vmem>>, %arg6: memref<512x1024xbf16, #tpu.memory_space<vmem>>, %arg7: memref<1x1024xf32, #tpu.memory_space<vmem>>, %arg8: memref<1024x896xbf16, #tpu.memory_space<vmem>>, %arg9: memref<1x896xf32, #tpu.memory_space<vmem>>, %arg10: memref<16x896xf32, #tpu.memory_space<vmem>>) attributes {dimension_semantics = [#tpu.dimension_semantics<parallel>], iteration_bounds = array<i64: 1>, scalar_prefetch = 0 : i64, scratch_operands = 0 : i64, tpu.core_type = #tpu.core_type<tc>, window_params = [{transform_indices = @transform_0, window_bounds = array<i64: 16, 64>}, {pipeline_mode = #tpu.pipeline_mode<synchronous>, transform_indices = @transform_1, window_bounds = array<i64: 64, 256>}, {pipeline_mode = #tpu.pipeline_mode<synchronous>, transform_indices = @transform_2, window_bounds = array<i64: 1, 256>}, {pipeline_mode = #tpu.pipeline_mode<synchronous>, transform_indices = @transform_3, window_bounds = array<i64: 256, 512>}, {pipeline_mode = #tpu.pipeline_mode<synchronous>, transform_indices = @transform_4, window_bounds = array<i64: 1, 512>}, {pipeline_mode = #tpu.pipeline_mode<synchronous>, transform_indices = @transform_5, window_bounds = array<i64: 512, 1024>}, {pipeline_mode = #tpu.pipeline_mode<synchronous>, transform_indices = @transform_6, window_bounds = array<i64: 1, 1024>}, {pipeline_mode = #tpu.pipeline_mode<synchronous>, transform_indices = @transform_7, window_bounds = array<i64: 1024, 896>}, {pipeline_mode = #tpu.pipeline_mode<synchronous>, transform_indices = @transform_8, window_bounds = array<i64: 1, 896>}, {transform_indices = @transform_9, window_bounds = array<i64: 16, 896>}]} {
    %c0 = arith.constant 0 : index
    %c0_0 = arith.constant 0 : index
    %0 = vector.load %arg1[%c0, %c0_0] : memref<16x64xf32, #tpu.memory_space<vmem>>, vector<16x64xf32>
    %1 = arith.truncf %0 : vector<16x64xf32> to vector<16x64xbf16>
    %c0_1 = arith.constant 0 : index
    %c0_2 = arith.constant 0 : index
    %2 = vector.load %arg2[%c0_1, %c0_2] : memref<64x256xbf16, #tpu.memory_space<vmem>>, vector<64x256xbf16>
    %cst = arith.constant dense<0.000000e+00> : vector<16x256xf32>
    %3 = tpu.matmul %1, %2, %cst {dimension_numbers = #tpu.dot_dimension_numbers<[1], [0], [0], [1], [0, 0, 1, 1], [], []>} : vector<16x64xbf16>, vector<64x256xbf16>, vector<16x256xf32> -> vector<16x256xf32>
    %c0_3 = arith.constant 0 : index
    %c0_4 = arith.constant 0 : index
    %4 = vector.load %arg3[%c0_3, %c0_4] : memref<1x256xf32, #tpu.memory_space<vmem>>, vector<1x256xf32>
    %5 = vector.broadcast %4 : vector<1x256xf32> to vector<16x256xf32>
    %6 = arith.addf %3, %5 : vector<16x256xf32>
    %cst_5 = arith.constant 2.000000e-01 : f32
    %7 = vector.broadcast %cst_5 : f32 to vector<16x256xf32>
    %8 = arith.mulf %7, %6 : vector<16x256xf32>
    %9 = arith.maximumf %6, %8 : vector<16x256xf32>
    %10 = arith.truncf %9 : vector<16x256xf32> to vector<16x256xbf16>
    %c0_6 = arith.constant 0 : index
    %c0_7 = arith.constant 0 : index
    %11 = vector.load %arg4[%c0_6, %c0_7] : memref<256x512xbf16, #tpu.memory_space<vmem>>, vector<256x512xbf16>
    %cst_8 = arith.constant dense<0.000000e+00> : vector<16x512xf32>
    %12 = tpu.matmul %10, %11, %cst_8 {dimension_numbers = #tpu.dot_dimension_numbers<[1], [0], [0], [1], [0, 0, 1, 1], [], []>} : vector<16x256xbf16>, vector<256x512xbf16>, vector<16x512xf32> -> vector<16x512xf32>
    %c0_9 = arith.constant 0 : index
    %c0_10 = arith.constant 0 : index
    %13 = vector.load %arg5[%c0_9, %c0_10] : memref<1x512xf32, #tpu.memory_space<vmem>>, vector<1x512xf32>
    %14 = vector.broadcast %13 : vector<1x512xf32> to vector<16x512xf32>
    %15 = arith.addf %12, %14 : vector<16x512xf32>
    %cst_11 = arith.constant 2.000000e-01 : f32
    %16 = vector.broadcast %cst_11 : f32 to vector<16x512xf32>
    %17 = arith.mulf %16, %15 : vector<16x512xf32>
    %18 = arith.maximumf %15, %17 : vector<16x512xf32>
    %19 = arith.truncf %18 : vector<16x512xf32> to vector<16x512xbf16>
    %c0_12 = arith.constant 0 : index
    %c0_13 = arith.constant 0 : index
    %20 = vector.load %arg6[%c0_12, %c0_13] : memref<512x1024xbf16, #tpu.memory_space<vmem>>, vector<512x1024xbf16>
    %cst_14 = arith.constant dense<0.000000e+00> : vector<16x1024xf32>
    %21 = tpu.matmul %19, %20, %cst_14 {dimension_numbers = #tpu.dot_dimension_numbers<[1], [0], [0], [1], [0, 0, 1, 1], [], []>} : vector<16x512xbf16>, vector<512x1024xbf16>, vector<16x1024xf32> -> vector<16x1024xf32>
    %c0_15 = arith.constant 0 : index
    %c0_16 = arith.constant 0 : index
    %22 = vector.load %arg7[%c0_15, %c0_16] : memref<1x1024xf32, #tpu.memory_space<vmem>>, vector<1x1024xf32>
    %23 = vector.broadcast %22 : vector<1x1024xf32> to vector<16x1024xf32>
    %24 = arith.addf %21, %23 : vector<16x1024xf32>
    %cst_17 = arith.constant 2.000000e-01 : f32
    %25 = vector.broadcast %cst_17 : f32 to vector<16x1024xf32>
    %26 = arith.mulf %25, %24 : vector<16x1024xf32>
    %27 = arith.maximumf %24, %26 : vector<16x1024xf32>
    %28 = arith.truncf %27 : vector<16x1024xf32> to vector<16x1024xbf16>
    %c0_18 = arith.constant 0 : index
    %c0_19 = arith.constant 0 : index
    %29 = vector.load %arg8[%c0_18, %c0_19] : memref<1024x896xbf16, #tpu.memory_space<vmem>>, vector<1024x896xbf16>
    %cst_20 = arith.constant dense<0.000000e+00> : vector<16x896xf32>
    %30 = tpu.matmul %28, %29, %cst_20 {dimension_numbers = #tpu.dot_dimension_numbers<[1], [0], [0], [1], [0, 0, 1, 1], [], []>} : vector<16x1024xbf16>, vector<1024x896xbf16>, vector<16x896xf32> -> vector<16x896xf32>
    %c0_21 = arith.constant 0 : index
    %c0_22 = arith.constant 0 : index
    %31 = vector.load %arg9[%c0_21, %c0_22] : memref<1x896xf32, #tpu.memory_space<vmem>>, vector<1x896xf32>
    %32 = vector.broadcast %31 : vector<1x896xf32> to vector<16x896xf32>
    %33 = arith.addf %30, %32 : vector<16x896xf32>
    %34 = math.tanh %33 : vector<16x896xf32>
    %c0_23 = arith.constant 0 : index
    %c0_24 = arith.constant 0 : index
    %35 = vector.load %arg10[%c0_23, %c0_24] : memref<16x896xf32, #tpu.memory_space<vmem>>, vector<16x896xf32>
    tpu.vector_store %arg10[%c0_23, %c0_24], %34 {strides = array<i32>} : memref<16x896xf32, #tpu.memory_space<vmem>>, vector<16x896xf32>,
    return
  }
  func.func @transform_0(%arg0: i32) -> (i32, i32) {
    %c0_i32 = arith.constant 0 : i32
    %c0_i32_0 = arith.constant 0 : i32
    return %arg0, %c0_i32 : i32, i32
  }
  func.func @transform_1(%arg0: i32) -> (i32, i32) {
    %c0_i32 = arith.constant 0 : i32
    %c0_i32_0 = arith.constant 0 : i32
    %c0_i32_1 = arith.constant 0 : i32
    return %c0_i32, %c0_i32_0 : i32, i32
  }
  func.func @transform_2(%arg0: i32) -> (i32, i32) {
    %c0_i32 = arith.constant 0 : i32
    %c0_i32_0 = arith.constant 0 : i32
    %c0_i32_1 = arith.constant 0 : i32
    return %c0_i32, %c0_i32_0 : i32, i32
  }
  func.func @transform_3(%arg0: i32) -> (i32, i32) {
    %c0_i32 = arith.constant 0 : i32
    %c0_i32_0 = arith.constant 0 : i32
    %c0_i32_1 = arith.constant 0 : i32
    return %c0_i32, %c0_i32_0 : i32, i32
  }
  func.func @transform_4(%arg0: i32) -> (i32, i32) {
    %c0_i32 = arith.constant 0 : i32
    %c0_i32_0 = arith.constant 0 : i32
    %c0_i32_1 = arith.constant 0 : i32
    return %c0_i32, %c0_i32_0 : i32, i32
  }
  func.func @transform_5(%arg0: i32) -> (i32, i32) {
    %c0_i32 = arith.constant 0 : i32
    %c0_i32_0 = arith.constant 0 : i32
    %c0_i32_1 = arith.constant 0 : i32
    return %c0_i32, %c0_i32_0 : i32, i32
  }
  func.func @transform_6(%arg0: i32) -> (i32, i32) {
    %c0_i32 = arith.constant 0 : i32
    %c0_i32_0 = arith.constant 0 : i32
    %c0_i32_1 = arith.constant 0 : i32
    return %c0_i32, %c0_i32_0 : i32, i32
  }
  func.func @transform_7(%arg0: i32) -> (i32, i32) {
    %c0_i32 = arith.constant 0 : i32
    %c0_i32_0 = arith.constant 0 : i32
    %c0_i32_1 = arith.constant 0 : i32
    return %c0_i32, %c0_i32_0 : i32, i32
  }
  func.func @transform_8(%arg0: i32) -> (i32, i32) {
    %c0_i32 = arith.constant 0 : i32
    %c0_i32_0 = arith.constant 0 : i32
    %c0_i32_1 = arith.constant 0 : i32
    return %c0_i32, %c0_i32_0 : i32, i32
  }
  func.func @transform_9(%arg0: i32) -> (i32, i32) {
    %c0_i32 = arith.constant 0 : i32
    %c0_i32_0 = arith.constant 0 : i32
    return %arg0, %c0_i32 : i32, i32
  }
}

</mosaic_0001>

<llo_original>
// kernel: tpu_custom_call.1
$region0: #{tpu_custom_call.1}
  #allocation0 [shape = 'u32[]', space=smem, size = 0x4, offset = 0x4, fixed_abs, tag = 'smem constant byte address 0x4 - core index']
  #allocation1 [shape = 'u32[144,128]{1,0:T(1,128)}', space=vmem, size = 0x12000, scoped, tag = 'internal scratch']
  %s0 = inlined_call_operand.hbm [shape: f32[16,64], index: 0, kind: input, shape index: {}]
  %s1 = inlined_call_operand.hbm [shape: bf16[64,256], index: 1, kind: input, shape index: {}]
  %s2 = inlined_call_operand.hbm [shape: f32[1,256], index: 2, kind: input, shape index: {}]
  %s3 = inlined_call_operand.hbm [shape: bf16[256,512], index: 3, kind: input, shape index: {}]
  %s4 = inlined_call_operand.hbm [shape: f32[1,512], index: 4, kind: input, shape index: {}]
  %s5 = inlined_call_operand.hbm [shape: bf16[512,1024], index: 5, kind: input, shape index: {}]
  %s6 = inlined_call_operand.hbm [shape: f32[1,1024], index: 6, kind: input, shape index: {}]
  %s7 = inlined_call_operand.hbm [shape: bf16[1024,896], index: 7, kind: input, shape index: {}]
  %s8 = inlined_call_operand.hbm [shape: f32[1,896], index: 8, kind: input, shape index: {}]
  %s9 = inlined_call_operand.hbm [shape: f32[16,896], index: 9, kind: output, shape index: {}]
  %s10 = sld [smem:[#allocation0]]
  $region82: #{tpu_custom_call.1} parent=0
    _
  %s12 = ssub.s32 1, %s10
  %s13 = scalar_select 0, %s12, %s10
  $region1: #{tpu_custom_call.1} parent=0
    #allocation2 [shape = 'u8[8192]{0}', space=vmem, size = 0x2000, scoped, tag = 'input window, operand 0, single buffered']
    #allocation3 [shape = 's32[1]{0}', space=sflag, size = 0x4, scoped, tag = 'scoped memory for tpu_custom_call.1']
    #allocation4 [shape = 's32[1]{0}', space=sflag, size = 0x4, scoped, tag = 'scoped memory for tpu_custom_call.1']
    #allocation5 [shape = 'u8[32768]{0}', space=vmem, size = 0x8000, scoped, tag = 'input window, operand 1, single buffered']
    #allocation6 [shape = 's32[1]{0}', space=sflag, size = 0x4, scoped, tag = 'scoped memory for tpu_custom_call.1']
    #allocation7 [shape = 'u8[1024]{0}', space=vmem, size = 0x400, scoped, tag = 'input window, operand 2, single buffered']
    #allocation8 [shape = 'u8[262144]{0}', space=vmem, size = 0x40000, scoped, tag = 'input window, operand 3, single buffered']
    #allocation9 [shape = 's32[1]{0}', space=sflag, size = 0x4, scoped, tag = 'scoped memory for tpu_custom_call.1']
    #allocation10 [shape = 'u8[2048]{0}', space=vmem, size = 0x800, scoped, tag = 'input window, operand 4, single buffered']
    #allocation11 [shape = 'u8[1048576]{0}', space=vmem, size = 0x100000, scoped, tag = 'input window, operand 5, single buffered']
    #allocation12 [shape = 's32[1]{0}', space=sflag, size = 0x4, scoped, tag = 'scoped memory for tpu_custom_call.1']
    #allocation13 [shape = 'u8[4096]{0}', space=vmem, size = 0x1000, scoped, tag = 'input window, operand 6, single buffered']
    #allocation14 [shape = 'u8[1835008]{0}', space=vmem, size = 0x1c0000, scoped, tag = 'input window, operand 7, single buffered']
    #allocation15 [shape = 's32[1]{0}', space=sflag, size = 0x4, scoped, tag = 'scoped memory for tpu_custom_call.1']
    #allocation16 [shape = 'u8[3584]{0}', space=vmem, size = 0x1000, scoped, tag = 'input window, operand 8, single buffered']
    #allocation17 [shape = 'u8[57344]{0}', space=vmem, size = 0xe000, scoped, tag = 'output window, operand 0, single buffered']
    %14 = vsyncpa [#allocation3], 0
    %15 = vsyncpa [#allocation6], 0
    %16 = vsyncpa [#allocation9], 0
    %17 = vsyncpa [#allocation12], 0
    %18 = vsyncpa [#allocation15], 0
    %19 = vsyncpa [#allocation4], 0
    // Predicated region
    $region2: #{tpu_custom_call.1} parent=1 // pred_check
      _
    $region3: #{tpu_custom_call.1} parent=1 // pred_check_branch
      %21 = sbr.rel (0) target = $region5
    $region4: #{tpu_custom_call.1} parent=1 // pred_region
      %s23 = ssub.s32 256, 256
      %24 = vsyncadd [#allocation3], %s23
      %s25 = sshll.u32 [#allocation2], 4
      %s26 = int_to_ptr.vmem [resolvable:$true] %s25
      %31 = dma.hbm_to_vmem [thread:$0]  %s0, 256, %s26, [#allocation3], 128, 128, 8
    $region5: #{tpu_custom_call.1} parent=1 // pred_fallthru
      _
    // Predicated region
    $region6: #{tpu_custom_call.1} parent=1 // pred_check
      _
    $region7: #{tpu_custom_call.1} parent=1 // pred_check_branch
      %33 = sbr.rel (0) target = $region9
    $region8: #{tpu_custom_call.1} parent=1 // pred_region
      %s35 = ssub.s32 1024, 1024
      %36 = vsyncadd [#allocation6], %s35
      %s37 = sshll.u32 [#allocation5], 4
      %s38 = int_to_ptr.vmem [resolvable:$true] %s37
      %43 = dma.hbm_to_vmem [thread:$0]  %s1, 1024, %s38, [#allocation6], 128, 128, 8
    $region9: #{tpu_custom_call.1} parent=1 // pred_fallthru
      _
    // Predicated region
    $region10: #{tpu_custom_call.1} parent=1 // pred_check
      _
    $region11: #{tpu_custom_call.1} parent=1 // pred_check_branch
      %45 = sbr.rel (0) target = $region13
    $region12: #{tpu_custom_call.1} parent=1 // pred_region
      %s47 = ssub.s32 32, 32
      %48 = vsyncadd [#allocation6], %s47
      %s50 = sshll.u32 [#allocation7], 4
      %s51 = int_to_ptr.vmem [resolvable:$true] %s50
      %53 = dma.hbm_to_vmem [thread:$0]  %s2, 32, %s51, [#allocation6]
    $region13: #{tpu_custom_call.1} parent=1 // pred_fallthru
      _
    // Predicated region
    $region14: #{tpu_custom_call.1} parent=1 // pred_check
      _
    $region15: #{tpu_custom_call.1} parent=1 // pred_check_branch
      %55 = sbr.rel (0) target = $region17
    $region16: #{tpu_custom_call.1} parent=1 // pred_region
      %s57 = ssub.s32 8192, 8192
      %58 = vsyncadd [#allocation9], %s57
      %s59 = sshll.u32 [#allocation8], 4
      %s60 = int_to_ptr.vmem [resolvable:$true] %s59
      %65 = dma.hbm_to_vmem [thread:$0]  %s3, 8192, %s60, [#allocation9], 256, 256, 16
    $region17: #{tpu_custom_call.1} parent=1 // pred_fallthru
      _
    // Predicated region
    $region18: #{tpu_custom_call.1} parent=1 // pred_check
      _
    $region19: #{tpu_custom_call.1} parent=1 // pred_check_branch
      %67 = sbr.rel (0) target = $region21
    $region20: #{tpu_custom_call.1} parent=1 // pred_region
      %s69 = ssub.s32 64, 64
      %70 = vsyncadd [#allocation9], %s69
      %s72 = sshll.u32 [#allocation10], 4
      %s73 = int_to_ptr.vmem [resolvable:$true] %s72
      %75 = dma.hbm_to_vmem [thread:$0]  %s4, 64, %s73, [#allocation9]
    $region21: #{tpu_custom_call.1} parent=1 // pred_fallthru
      _
    // Predicated region
    $region22: #{tpu_custom_call.1} parent=1 // pred_check
      _
    $region23: #{tpu_custom_call.1} parent=1 // pred_check_branch
      %77 = sbr.rel (0) target = $region25
    $region24: #{tpu_custom_call.1} parent=1 // pred_region
      %s79 = ssub.s32 32768, 32768
      %80 = vsyncadd [#allocation12], %s79
      %s81 = sshll.u32 [#allocation11], 4
      %s82 = int_to_ptr.vmem [resolvable:$true] %s81
      %87 = dma.hbm_to_vmem [thread:$0]  %s5, 32768, %s82, [#allocation12], 512, 512, 32
    $region25: #{tpu_custom_call.1} parent=1 // pred_fallthru
      _
    // Predicated region
    $region26: #{tpu_custom_call.1} parent=1 // pred_check
      _
    $region27: #{tpu_custom_call.1} parent=1 // pred_check_branch
      %89 = sbr.rel (0) target = $region29
    $region28: #{tpu_custom_call.1} parent=1 // pred_region
      %s91 = ssub.s32 128, 128
      %92 = vsyncadd [#allocation12], %s91
      %s94 = sshll.u32 [#allocation13], 4
      %s95 = int_to_ptr.vmem [resolvable:$true] %s94
      %97 = dma.hbm_to_vmem [thread:$0]  %s6, 128, %s95, [#allocation12]
    $region29: #{tpu_custom_call.1} parent=1 // pred_fallthru
      _
    // Predicated region
    $region30: #{tpu_custom_call.1} parent=1 // pred_check
      _
    $region31: #{tpu_custom_call.1} parent=1 // pred_check_branch
      %99 = sbr.rel (0) target = $region33
    $region32: #{tpu_custom_call.1} parent=1 // pred_region
      %s101 = ssub.s32 57344, 57344
      %102 = vsyncadd [#allocation15], %s101
      %s103 = sshll.u32 [#allocation14], 4
      %s104 = int_to_ptr.vmem [resolvable:$true] %s103
      %109 = dma.hbm_to_vmem [thread:$0]  %s7, 57344, %s104, [#allocation15], 448, 448, 28
    $region33: #{tpu_custom_call.1} parent=1 // pred_fallthru
      _
    // Predicated region
    $region34: #{tpu_custom_call.1} parent=1 // pred_check
      _
    $region35: #{tpu_custom_call.1} parent=1 // pred_check_branch
      %111 = sbr.rel (0) target = $region37
    $region36: #{tpu_custom_call.1} parent=1 // pred_region
      %s113 = ssub.s32 112, 112
      %114 = vsyncadd [#allocation15], %s113
      %s116 = sshll.u32 [#allocation16], 4
      %s117 = int_to_ptr.vmem [resolvable:$true] %s116
      %119 = dma.hbm_to_vmem [thread:$0]  %s8, 112, %s117, [#allocation15]
    $region37: #{tpu_custom_call.1} parent=1 // pred_fallthru
      _
    // Predicated region
    $region38: #{tpu_custom_call.1} parent=1 // pred_check
      _
    $region39: #{tpu_custom_call.1} parent=1 // pred_check_branch
      %121 = sbr.rel (0) target = $region41
    $region40: #{tpu_custom_call.1} parent=1 // pred_region
      %122 = dma.done [#allocation3], 256
    $region41: #{tpu_custom_call.1} parent=1 // pred_fallthru
      _
    // Predicated region
    $region42: #{tpu_custom_call.1} parent=1 // pred_check
      _
    $region43: #{tpu_custom_call.1} parent=1 // pred_check_branch
      %124 = sbr.rel (0) target = $region45
    $region44: #{tpu_custom_call.1} parent=1 // pred_region
      %125 = dma.done [#allocation6], 1024
    $region45: #{tpu_custom_call.1} parent=1 // pred_fallthru
      _
    // Predicated region
    $region46: #{tpu_custom_call.1} parent=1 // pred_check
      _
    $region47: #{tpu_custom_call.1} parent=1 // pred_check_branch
      %127 = sbr.rel (0) target = $region49
    $region48: #{tpu_custom_call.1} parent=1 // pred_region
      %128 = dma.done [#allocation6], 32
    $region49: #{tpu_custom_call.1} parent=1 // pred_fallthru
      _
    // Predicated region
    $region50: #{tpu_custom_call.1} parent=1 // pred_check
      _
    $region51: #{tpu_custom_call.1} parent=1 // pred_check_branch
      %130 = sbr.rel (0) target = $region53
    $region52: #{tpu_custom_call.1} parent=1 // pred_region
      %131 = dma.done [#allocation9], 8192
    $region53: #{tpu_custom_call.1} parent=1 // pred_fallthru
      _
    // Predicated region
    $region54: #{tpu_custom_call.1} parent=1 // pred_check
      _
    $region55: #{tpu_custom_call.1} parent=1 // pred_check_branch
      %133 = sbr.rel (0) target = $region57
    $region56: #{tpu_custom_call.1} parent=1 // pred_region
      %134 = dma.done [#allocation9], 64
    $region57: #{tpu_custom_call.1} parent=1 // pred_fallthru
      _
    // Predicated region
    $region58: #{tpu_custom_call.1} parent=1 // pred_check
      _
    $region59: #{tpu_custom_call.1} parent=1 // pred_check_branch
      %136 = sbr.rel (0) target = $region61
    $region60: #{tpu_custom_call.1} parent=1 // pred_region
      %137 = dma.done [#allocation12], 32768
    $region61: #{tpu_custom_call.1} parent=1 // pred_fallthru
      _
    // Predicated region
    $region62: #{tpu_custom_call.1} parent=1 // pred_check
      _
    $region63: #{tpu_custom_call.1} parent=1 // pred_check_branch
      %139 = sbr.rel (0) target = $region65
    $region64: #{tpu_custom_call.1} parent=1 // pred_region
      %140 = dma.done [#allocation12], 128
    $region65: #{tpu_custom_call.1} parent=1 // pred_fallthru
      _
    // Predicated region
    $region66: #{tpu_custom_call.1} parent=1 // pred_check
      _
    $region67: #{tpu_custom_call.1} parent=1 // pred_check_branch
      %142 = sbr.rel (0) target = $region69
    $region68: #{tpu_custom_call.1} parent=1 // pred_region
      %143 = dma.done [#allocation15], 57344
    $region69: #{tpu_custom_call.1} parent=1 // pred_fallthru
      _
    // Predicated region
    $region70: #{tpu_custom_call.1} parent=1 // pred_check
      _
    $region71: #{tpu_custom_call.1} parent=1 // pred_check_branch
      %145 = sbr.rel (0) target = $region73
    $region72: #{tpu_custom_call.1} parent=1 // pred_region
      %146 = dma.done [#allocation15], 112
    $region73: #{tpu_custom_call.1} parent=1 // pred_fallthru
      _
    %v148 = vld [vmem:[#allocation2] sm:$0xff]
    %v149 = vld [vmem:[#allocation2 + $0x8] sm:$0xff]
    %v150 = vpack.c.bf16 %v149, %v148
    %v151 = vld [vmem:[#allocation5] sm:$0xff]
    %v152 = vld [vmem:[#allocation5 + $0x8] sm:$0xff]
    %v153 = vld [vmem:[#allocation5 + $0x10] sm:$0xff]
    %v154 = vld [vmem:[#allocation5 + $0x18] sm:$0xff]
    %v155 = vld [vmem:[#allocation5 + $0x20] sm:$0xff]
    %v156 = vld [vmem:[#allocation5 + $0x28] sm:$0xff]
    %v157 = vld [vmem:[#allocation5 + $0x30] sm:$0xff]
    %v158 = vld [vmem:[#allocation5 + $0x38] sm:$0xff]
    %v159 = vld [vmem:[#allocation7] sm:$0x3]
    %v161 = vlaneseq
    %v162 = vshrl.u32 %v161, 7
    %v163 = vsub.s32 0, %v162
    %v164 = vrot.slane %v159, %v163
    %v165 = vlaneseq
    %v166 = vshrl.u32 %v165, 7
    %v167 = vsub.s32 1, %v166
    %v168 = vrot.slane %v159, %v167
    %v179 = vunpack.c.l.b16 %v151
    %v180 = vunpack.c.h.b16 %v151
    %v181 = vunpack.c.l.b16 %v152
    %v182 = vunpack.c.h.b16 %v152
    %v183 = vunpack.c.l.b16 %v153
    %v184 = vunpack.c.h.b16 %v153
    %v185 = vunpack.c.l.b16 %v154
    %v186 = vunpack.c.h.b16 %v154
    %v187 = vunpack.c.l.b16 %v155
    %v188 = vunpack.c.h.b16 %v155
    %v189 = vunpack.c.l.b16 %v156
    %v190 = vunpack.c.h.b16 %v156
    %v191 = vunpack.c.l.b16 %v157
    %v192 = vunpack.c.h.b16 %v157
    %v193 = vunpack.c.l.b16 %v158
    %v194 = vunpack.c.h.b16 %v158
    %v195 = vpack.c.b16 %v181, %v179
    %v196 = vpack.c.b16 %v182, %v180
    %v197 = vpack.c.b16 %v185, %v183
    %v198 = vpack.c.b16 %v186, %v184
    %v199 = vpack.c.b16 %v189, %v187
    %v200 = vpack.c.b16 %v190, %v188
    %v201 = vpack.c.b16 %v193, %v191
    %v202 = vpack.c.b16 %v194, %v192
    %vm211 = vcmask 523264
    %v213 = vsel %vm211, %v150, 0
    %215 = vmatprep.subr.bf16.mxu0 %v196
    %216 = vmatpush1.bf16.msra.mxu0 %v195
    %217 = vmatprep.subr.bf16.mxu0 %v198
    %218 = vmatpush1.bf16.msra.mxu0 %v197
    %219 = vmatprep.subr.bf16.mxu0 %v200
    %220 = vmatpush1.bf16.msra.mxu0 %v199
    %221 = vmatprep.subr.bf16.mxu0 %v202
    %222 = vmatpush1.bf16.msra.mxu0 %v201
    %223 = vmatprep.subr.bf16.mxu0 0
    %224 = vmatpush1.bf16.msra.mxu0 0
    %225 = vmatprep.subr.bf16.mxu0 0
    %226 = vmatpush1.bf16.msra.mxu0 0
    %227 = vmatprep.subr.bf16.mxu0 0
    %228 = vmatpush1.bf16.msra.mxu0 0
    %229 = vmatprep.subr.bf16.mxu0 0
    %230 = vmatpush1.bf16.msra.mxu0 0
    %231 = vmatprep.subr.bf16.mxu0 0
    %232 = vmatpush1.bf16.msra.mxu0 0
    %233 = vmatprep.subr.bf16.mxu0 0
    %234 = vmatpush1.bf16.msra.mxu0 0
    %235 = vmatprep.subr.bf16.mxu0 0
    %236 = vmatpush1.bf16.msra.mxu0 0
    %237 = vmatprep.subr.bf16.mxu0 0
    %238 = vmatpush1.bf16.msra.mxu0 0
    %239 = vmatprep.subr.bf16.mxu0 0
    %240 = vmatpush1.bf16.msra.mxu0 0
    %241 = vmatprep.subr.bf16.mxu0 0
    %242 = vmatpush1.bf16.msra.mxu0 0
    %243 = vmatprep.subr.bf16.mxu0 0
    %244 = vmatpush1.bf16.msra.mxu0 0
    %245 = vmatprep.subr.bf16.mxu0 0
    %246 = vmatpush1.bf16.msra.mxu0 0
    %247 = vmatprep.mubr.bf16.mxu0 0
    %248 = vmatmul.mubr.bf16.gmra.mrb[0].mxu0 %v213
    %v249 = vpop.f32.mrb[0].mxu0
    %v250 = vadd.f32 %v164, %v249
    %v251 = vpop.f32.mrb[0].mxu0
    %v252 = vadd.f32 %v168, %v251
    %v253 = vpop.f32.mrb[0].mxu0
    %v254 = vadd.f32 %v164, %v253
    %v255 = vpop.f32.mrb[0].mxu0
    %v256 = vadd.f32 %v168, %v255
    %257 = vdwg.mxu0
    %v258 = vmul.f32 %v250, 0.2
    %v259 = vmul.f32 %v252, 0.2
    %v260 = vmul.f32 %v254, 0.2
    %v261 = vmul.f32 %v256, 0.2
    %v262 = vmax.f32 %v250, %v258
    %v263 = vmax.f32 %v252, %v259
    %v264 = vmax.f32 %v254, %v260
    %v265 = vmax.f32 %v256, %v261
    %v266 = vpack.c.bf16 %v264, %v262
    %v267 = vpack.c.bf16 %v265, %v263
    %v268 = vld [vmem:[#allocation8] sm:$0xff]
    %v269 = vld [vmem:[#allocation8 + $0x8] sm:$0xff]
    %v270 = vld [vmem:[#allocation8 + $0x10] sm:$0xff]
    %v271 = vld [vmem:[#allocation8 + $0x18] sm:$0xff]
    %v272 = vld [vmem:[#allocation8 + $0x20] sm:$0xff]
    %v273 = vld [vmem:[#allocation8 + $0x28] sm:$0xff]
    %v274 = vld [vmem:[#allocation8 + $0x30] sm:$0xff]
    %v275 = vld [vmem:[#allocation8 + $0x38] sm:$0xff]
    %v276 = vld [vmem:[#allocation8 + $0x40] sm:$0xff]
    %v277 = vld [vmem:[#allocation8 + $0x48] sm:$0xff]
    %v278 = vld [vmem:[#allocation8 + $0x50] sm:$0xff]
    %v279 = vld [vmem:[#allocation8 + $0x58] sm:$0xff]
    %v280 = vld [vmem:[#allocation8 + $0x60] sm:$0xff]
    %v281 = vld [vmem:[#allocation8 + $0x68] sm:$0xff]
    %v282 = vld [vmem:[#allocation8 + $0x70] sm:$0xff]
    %v283 = vld [vmem:[#allocation8 + $0x78] sm:$0xff]
    %v284 = vld [vmem:[#allocation8 + $0x80] sm:$0xff]
    %v285 = vld [vmem:[#allocation8 + $0x88] sm:$0xff]
    %v286 = vld [vmem:[#allocation8 + $0x90] sm:$0xff]
    %v287 = vld [vmem:[#allocation8 + $0x98] sm:$0xff]
    %v288 = vld [vmem:[#allocation8 + $0xa0] sm:$0xff]
    %v289 = vld [vmem:[#allocation8 + $0xa8] sm:$0xff]
    %v290 = vld [vmem:[#allocation8 + $0xb0] sm:$0xff]
    %v291 = vld [vmem:[#allocation8 + $0xb8] sm:$0xff]
    %v292 = vld [vmem:[#allocation8 + $0xc0] sm:$0xff]
    %v293 = vld [vmem:[#allocation8 + $0xc8] sm:$0xff]
    %v294 = vld [vmem:[#allocation8 + $0xd0] sm:$0xff]
    %v295 = vld [vmem:[#allocation8 + $0xd8] sm:$0xff]
    %v296 = vld [vmem:[#allocation8 + $0xe0] sm:$0xff]
    %v297 = vld [vmem:[#allocation8 + $0xe8] sm:$0xff]
    %v298 = vld [vmem:[#allocation8 + $0xf0] sm:$0xff]
    %v299 = vld [vmem:[#allocation8 + $0xf8] sm:$0xff]
    %v300 = vld [vmem:[#allocation8 + $0x100] sm:$0xff]
    %v301 = vld [vmem:[#allocation8 + $0x108] sm:$0xff]
    %v302 = vld [vmem:[#allocation8 + $0x110] sm:$0xff]
    %v303 = vld [vmem:[#allocation8 + $0x118] sm:$0xff]
    %v304 = vld [vmem:[#allocation8 + $0x120] sm:$0xff]
    %v305 = vld [vmem:[#allocation8 + $0x128] sm:$0xff]
    %v306 = vld [vmem:[#allocation8 + $0x130] sm:$0xff]
    %v307 = vld [vmem:[#allocation8 + $0x138] sm:$0xff]
    %v308 = vld [vmem:[#allocation8 + $0x140] sm:$0xff]
    %v309 = vld [vmem:[#allocation8 + $0x148] sm:$0xff]
    %v310 = vld [vmem:[#allocation8 + $0x150] sm:$0xff]
    %v311 = vld [vmem:[#allocation8 + $0x158] sm:$0xff]
    %v312 = vld [vmem:[#allocation8 + $0x160] sm:$0xff]
    %v313 = vld [vmem:[#allocation8 + $0x168] sm:$0xff]
    %v314 = vld [vmem:[#allocation8 + $0x170] sm:$0xff]
    %v315 = vld [vmem:[#allocation8 + $0x178] sm:$0xff]
    %v316 = vld [vmem:[#allocation8 + $0x180] sm:$0xff]
    %v317 = vld [vmem:[#allocation8 + $0x188] sm:$0xff]
    %v318 = vld [vmem:[#allocation8 + $0x190] sm:$0xff]
    %v319 = vld [vmem:[#allocation8 + $0x198] sm:$0xff]
    %v320 = vld [vmem:[#allocation8 + $0x1a0] sm:$0xff]
    %v321 = vld [vmem:[#allocation8 + $0x1a8] sm:$0xff]
    %v322 = vld [vmem:[#allocation8 + $0x1b0] sm:$0xff]
    %v323 = vld [vmem:[#allocation8 + $0x1b8] sm:$0xff]
    %v324 = vld [vmem:[#allocation8 + $0x1c0] sm:$0xff]
    %v325 = vld [vmem:[#allocation8 + $0x1c8] sm:$0xff]
    %v326 = vld [vmem:[#allocation8 + $0x1d0] sm:$0xff]
    %v327 = vld [vmem:[#allocation8 + $0x1d8] sm:$0xff]
    %v328 = vld [vmem:[#allocation8 + $0x1e0] sm:$0xff]
    %v329 = vld [vmem:[#allocation8 + $0x1e8] sm:$0xff]
    %v330 = vld [vmem:[#allocation8 + $0x1f0] sm:$0xff]
    %v331 = vld [vmem:[#allocation8 + $0x1f8] sm:$0xff]
    %v332 = vld [vmem:[#allocation10] sm:$0xf]
    %v334 = vlaneseq
    %v335 = vshrl.u32 %v334, 7
    %v336 = vsub.s32 0, %v335
    %v337 = vrot.slane %v332, %v336
    %v338 = vlaneseq
    %v339 = vshrl.u32 %v338, 7
    %v340 = vsub.s32 1, %v339
    %v341 = vrot.slane %v332, %v340
    %v342 = vlaneseq
    %v343 = vshrl.u32 %v342, 7
    %v344 = vsub.s32 2, %v343
    %v345 = vrot.slane %v332, %v344
    %v346 = vlaneseq
    %v347 = vshrl.u32 %v346, 7
    %v348 = vsub.s32 3, %v347
    %v349 = vrot.slane %v332, %v348
    %v418 = vunpack.c.l.b16 %v268
    %v419 = vunpack.c.h.b16 %v268
    %v420 = vunpack.c.l.b16 %v269
    %v421 = vunpack.c.h.b16 %v269
    %v422 = vunpack.c.l.b16 %v270
    %v423 = vunpack.c.h.b16 %v270
    %v424 = vunpack.c.l.b16 %v271
    %v425 = vunpack.c.h.b16 %v271
    %v426 = vunpack.c.l.b16 %v272
    %v427 = vunpack.c.h.b16 %v272
    %v428 = vunpack.c.l.b16 %v273
    %v429 = vunpack.c.h.b16 %v273
    %v430 = vunpack.c.l.b16 %v274
    %v431 = vunpack.c.h.b16 %v274
    %v432 = vunpack.c.l.b16 %v275
    %v433 = vunpack.c.h.b16 %v275
    %v434 = vunpack.c.l.b16 %v276
    %v435 = vunpack.c.h.b16 %v276
    %v436 = vunpack.c.l.b16 %v277
    %v437 = vunpack.c.h.b16 %v277
    %v438 = vunpack.c.l.b16 %v278
    %v439 = vunpack.c.h.b16 %v278
    %v440 = vunpack.c.l.b16 %v279
    %v441 = vunpack.c.h.b16 %v279
    %v442 = vunpack.c.l.b16 %v280
    %v443 = vunpack.c.h.b16 %v280
    %v444 = vunpack.c.l.b16 %v281
    %v445 = vunpack.c.h.b16 %v281
    %v446 = vunpack.c.l.b16 %v282
    %v447 = vunpack.c.h.b16 %v282
    %v448 = vunpack.c.l.b16 %v283
    %v449 = vunpack.c.h.b16 %v283
    %v450 = vunpack.c.l.b16 %v284
    %v451 = vunpack.c.h.b16 %v284
    %v452 = vunpack.c.l.b16 %v285
    %v453 = vunpack.c.h.b16 %v285
    %v454 = vunpack.c.l.b16 %v286
    %v455 = vunpack.c.h.b16 %v286
    %v456 = vunpack.c.l.b16 %v287
    %v457 = vunpack.c.h.b16 %v287
    %v458 = vunpack.c.l.b16 %v288
    %v459 = vunpack.c.h.b16 %v288
    %v460 = vunpack.c.l.b16 %v289
    %v461 = vunpack.c.h.b16 %v289
    %v462 = vunpack.c.l.b16 %v290
    %v463 = vunpack.c.h.b16 %v290
    %v464 = vunpack.c.l.b16 %v291
    %v465 = vunpack.c.h.b16 %v291
    %v466 = vunpack.c.l.b16 %v292
    %v467 = vunpack.c.h.b16 %v292
    %v468 = vunpack.c.l.b16 %v293
    %v469 = vunpack.c.h.b16 %v293
    %v470 = vunpack.c.l.b16 %v294
    %v471 = vunpack.c.h.b16 %v294
    %v472 = vunpack.c.l.b16 %v295
    %v473 = vunpack.c.h.b16 %v295
    %v474 = vunpack.c.l.b16 %v296
    %v475 = vunpack.c.h.b16 %v296
    %v476 = vunpack.c.l.b16 %v297
    %v477 = vunpack.c.h.b16 %v297
    %v478 = vunpack.c.l.b16 %v298
    %v479 = vunpack.c.h.b16 %v298
    %v480 = vunpack.c.l.b16 %v299
    %v481 = vunpack.c.h.b16 %v299
    %v482 = vunpack.c.l.b16 %v300
    %v483 = vunpack.c.h.b16 %v300
    %v484 = vunpack.c.l.b16 %v301
    %v485 = vunpack.c.h.b16 %v301
    %v486 = vunpack.c.l.b16 %v302
    %v487 = vunpack.c.h.b16 %v302
    %v488 = vunpack.c.l.b16 %v303
    %v489 = vunpack.c.h.b16 %v303
    %v490 = vunpack.c.l.b16 %v304
    %v491 = vunpack.c.h.b16 %v304
    %v492 = vunpack.c.l.b16 %v305
    %v493 = vunpack.c.h.b16 %v305
    %v494 = vunpack.c.l.b16 %v306
    %v495 = vunpack.c.h.b16 %v306
    %v496 = vunpack.c.l.b16 %v307
    %v497 = vunpack.c.h.b16 %v307
    %v498 = vunpack.c.l.b16 %v308
    %v499 = vunpack.c.h.b16 %v308
    %v500 = vunpack.c.l.b16 %v309
    %v501 = vunpack.c.h.b16 %v309
    %v502 = vunpack.c.l.b16 %v310
    %v503 = vunpack.c.h.b16 %v310
    %v504 = vunpack.c.l.b16 %v311
    %v505 = vunpack.c.h.b16 %v311
    %v506 = vunpack.c.l.b16 %v312
    %v507 = vunpack.c.h.b16 %v312
    %v508 = vunpack.c.l.b16 %v313
    %v509 = vunpack.c.h.b16 %v313
    %v510 = vunpack.c.l.b16 %v314
    %v511 = vunpack.c.h.b16 %v314
    %v512 = vunpack.c.l.b16 %v315
    %v513 = vunpack.c.h.b16 %v315
    %v514 = vunpack.c.l.b16 %v316
    %v515 = vunpack.c.h.b16 %v316
    %v516 = vunpack.c.l.b16 %v317
    %v517 = vunpack.c.h.b16 %v317
    %v518 = vunpack.c.l.b16 %v318
    %v519 = vunpack.c.h.b16 %v318
    %v520 = vunpack.c.l.b16 %v319
    %v521 = vunpack.c.h.b16 %v319
    %v522 = vunpack.c.l.b16 %v320
    %v523 = vunpack.c.h.b16 %v320
    %v524 = vunpack.c.l.b16 %v321
    %v525 = vunpack.c.h.b16 %v321
    %v526 = vunpack.c.l.b16 %v322
    %v527 = vunpack.c.h.b16 %v322
    %v528 = vunpack.c.l.b16 %v323
    %v529 = vunpack.c.h.b16 %v323
    %v530 = vunpack.c.l.b16 %v324
    %v531 = vunpack.c.h.b16 %v324
    %v532 = vunpack.c.l.b16 %v325
    %v533 = vunpack.c.h.b16 %v325
    %v534 = vunpack.c.l.b16 %v326
    %v535 = vunpack.c.h.b16 %v326
    %v536 = vunpack.c.l.b16 %v327
    %v537 = vunpack.c.h.b16 %v327
    %v538 = vunpack.c.l.b16 %v328
    %v539 = vunpack.c.h.b16 %v328
    %v540 = vunpack.c.l.b16 %v329
    %v541 = vunpack.c.h.b16 %v329
    %v542 = vunpack.c.l.b16 %v330
    %v543 = vunpack.c.h.b16 %v330
    %v544 = vunpack.c.l.b16 %v331
    %v545 = vunpack.c.h.b16 %v331
    %v546 = vpack.c.b16 %v422, %v418
    %v547 = vpack.c.b16 %v423, %v419
    %v548 = vpack.c.b16 %v424, %v420
    %v549 = vpack.c.b16 %v425, %v421
    %v550 = vpack.c.b16 %v430, %v426
    %v551 = vpack.c.b16 %v431, %v427
    %v552 = vpack.c.b16 %v432, %v428
    %v553 = vpack.c.b16 %v433, %v429
    %v554 = vpack.c.b16 %v438, %v434
    %v555 = vpack.c.b16 %v439, %v435
    %v556 = vpack.c.b16 %v440, %v436
    %v557 = vpack.c.b16 %v441, %v437
    %v558 = vpack.c.b16 %v446, %v442
    %v559 = vpack.c.b16 %v447, %v443
    %v560 = vpack.c.b16 %v448, %v444
    %v561 = vpack.c.b16 %v449, %v445
    %v562 = vpack.c.b16 %v454, %v450
    %v563 = vpack.c.b16 %v455, %v451
    %v564 = vpack.c.b16 %v456, %v452
    %v565 = vpack.c.b16 %v457, %v453
    %v566 = vpack.c.b16 %v462, %v458
    %v567 = vpack.c.b16 %v463, %v459
    %v568 = vpack.c.b16 %v464, %v460
    %v569 = vpack.c.b16 %v465, %v461
    %v570 = vpack.c.b16 %v470, %v466
    %v571 = vpack.c.b16 %v471, %v467
    %v572 = vpack.c.b16 %v472, %v468
    %v573 = vpack.c.b16 %v473, %v469
    %v574 = vpack.c.b16 %v478, %v474
    %v575 = vpack.c.b16 %v479, %v475
    %v576 = vpack.c.b16 %v480, %v476
    %v577 = vpack.c.b16 %v481, %v477
    %v578 = vpack.c.b16 %v486, %v482
    %v579 = vpack.c.b16 %v487, %v483
    %v580 = vpack.c.b16 %v488, %v484
    %v581 = vpack.c.b16 %v489, %v485
    %v582 = vpack.c.b16 %v494, %v490
    %v583 = vpack.c.b16 %v495, %v491
    %v584 = vpack.c.b16 %v496, %v492
    %v585 = vpack.c.b16 %v497, %v493
    %v586 = vpack.c.b16 %v502, %v498
    %v587 = vpack.c.b16 %v503, %v499
    %v588 = vpack.c.b16 %v504, %v500
    %v589 = vpack.c.b16 %v505, %v501
    %v590 = vpack.c.b16 %v510, %v506
    %v591 = vpack.c.b16 %v511, %v507
    %v592 = vpack.c.b16 %v512, %v508
    %v593 = vpack.c.b16 %v513, %v509
    %v594 = vpack.c.b16 %v518, %v514
    %v595 = vpack.c.b16 %v519, %v515
    %v596 = vpack.c.b16 %v520, %v516
    %v597 = vpack.c.b16 %v521, %v517
    %v598 = vpack.c.b16 %v526, %v522
    %v599 = vpack.c.b16 %v527, %v523
    %v600 = vpack.c.b16 %v528, %v524
    %v601 = vpack.c.b16 %v529, %v525
    %v602 = vpack.c.b16 %v534, %v530
    %v603 = vpack.c.b16 %v535, %v531
    %v604 = vpack.c.b16 %v536, %v532
    %v605 = vpack.c.b16 %v537, %v533
    %v606 = vpack.c.b16 %v542, %v538
    %v607 = vpack.c.b16 %v543, %v539
    %v608 = vpack.c.b16 %v544, %v540
    %v609 = vpack.c.b16 %v545, %v541
    %674 = vmatprep.subr.bf16.mxu0 %v547
    %675 = vmatpush1.bf16.msra.mxu0 %v546
    %676 = vmatprep.subr.bf16.mxu0 %v551
    %677 = vmatpush1.bf16.msra.mxu0 %v550
    %678 = vmatprep.subr.bf16.mxu0 %v555
    %679 = vmatpush1.bf16.msra.mxu0 %v554
    %680 = vmatprep.subr.bf16.mxu0 %v559
    %681 = vmatpush1.bf16.msra.mxu0 %v558
    %682 = vmatprep.subr.bf16.mxu0 %v563
    %683 = vmatpush1.bf16.msra.mxu0 %v562
    %684 = vmatprep.subr.bf16.mxu0 %v567
    %685 = vmatpush1.bf16.msra.mxu0 %v566
    %686 = vmatprep.subr.bf16.mxu0 %v571
    %687 = vmatpush1.bf16.msra.mxu0 %v570
    %688 = vmatprep.subr.bf16.mxu0 %v575
    %689 = vmatpush1.bf16.msra.mxu0 %v574
    %690 = vmatprep.subr.bf16.mxu0 %v579
    %691 = vmatpush1.bf16.msra.mxu0 %v578
    %692 = vmatprep.subr.bf16.mxu0 %v583
    %693 = vmatpush1.bf16.msra.mxu0 %v582
    %694 = vmatprep.subr.bf16.mxu0 %v587
    %695 = vmatpush1.bf16.msra.mxu0 %v586
    %696 = vmatprep.subr.bf16.mxu0 %v591
    %697 = vmatpush1.bf16.msra.mxu0 %v590
    %698 = vmatprep.subr.bf16.mxu0 %v595
    %699 = vmatpush1.bf16.msra.mxu0 %v594
    %700 = vmatprep.subr.bf16.mxu0 %v599
    %701 = vmatpush1.bf16.msra.mxu0 %v598
    %702 = vmatprep.subr.bf16.mxu0 %v603
    %703 = vmatpush1.bf16.msra.mxu0 %v602
    %704 = vmatprep.subr.bf16.mxu0 %v607
    %705 = vmatpush1.bf16.msra.mxu0 %v606
    %706 = vmatprep.mubr.bf16.mxu0 %v267
    %707 = vmatmul.mubr.bf16.gmra.mrb[0].mxu0 %v266
    %v708 = vpop.f32.mrb[0].mxu0
    %v709 = vadd.f32 %v337, %v708
    %v710 = vpop.f32.mrb[0].mxu0
    %v711 = vadd.f32 %v341, %v710
    %v712 = vpop.f32.mrb[0].mxu0
    %v713 = vadd.f32 %v337, %v712
    %v714 = vpop.f32.mrb[0].mxu0
    %v715 = vadd.f32 %v341, %v714
    %716 = vdwg.mxu0
    %717 = vmatprep.subr.bf16.mxu0 %v549
    %718 = vmatpush1.bf16.msra.mxu0 %v548
    %719 = vmatprep.subr.bf16.mxu0 %v553
    %720 = vmatpush1.bf16.msra.mxu0 %v552
    %721 = vmatprep.subr.bf16.mxu0 %v557
    %722 = vmatpush1.bf16.msra.mxu0 %v556
    %723 = vmatprep.subr.bf16.mxu0 %v561
    %724 = vmatpush1.bf16.msra.mxu0 %v560
    %725 = vmatprep.subr.bf16.mxu0 %v565
    %726 = vmatpush1.bf16.msra.mxu0 %v564
    %727 = vmatprep.subr.bf16.mxu0 %v569
    %728 = vmatpush1.bf16.msra.mxu0 %v568
    %729 = vmatprep.subr.bf16.mxu0 %v573
    %730 = vmatpush1.bf16.msra.mxu0 %v572
    %731 = vmatprep.subr.bf16.mxu0 %v577
    %732 = vmatpush1.bf16.msra.mxu0 %v576
    %733 = vmatprep.subr.bf16.mxu0 %v581
    %734 = vmatpush1.bf16.msra.mxu0 %v580
    %735 = vmatprep.subr.bf16.mxu0 %v585
    %736 = vmatpush1.bf16.msra.mxu0 %v584
    %737 = vmatprep.subr.bf16.mxu0 %v589
    %738 = vmatpush1.bf16.msra.mxu0 %v588
    %739 = vmatprep.subr.bf16.mxu0 %v593
    %740 = vmatpush1.bf16.msra.mxu0 %v592
    %741 = vmatprep.subr.bf16.mxu0 %v597
    %742 = vmatpush1.bf16.msra.mxu0 %v596
    %743 = vmatprep.subr.bf16.mxu0 %v601
    %744 = vmatpush1.bf16.msra.mxu0 %v600
    %745 = vmatprep.subr.bf16.mxu0 %v605
    %746 = vmatpush1.bf16.msra.mxu0 %v604
    %747 = vmatprep.subr.bf16.mxu0 %v609
    %748 = vmatpush1.bf16.msra.mxu0 %v608
    %749 = vmatprep.mubr.bf16.mxu0 %v267
    %750 = vmatmul.mubr.bf16.gmra.mrb[0].mxu0 %v266
    %v751 = vpop.f32.mrb[0].mxu0
    %v752 = vadd.f32 %v345, %v751
    %v753 = vpop.f32.mrb[0].mxu0
    %v754 = vadd.f32 %v349, %v753
    %v755 = vpop.f32.mrb[0].mxu0
    %v756 = vadd.f32 %v345, %v755
    %v757 = vpop.f32.mrb[0].mxu0
    %v758 = vadd.f32 %v349, %v757
    %759 = vdwg.mxu0
    %v760 = vmul.f32 %v709, 0.2
    %v761 = vmul.f32 %v711, 0.2
    %v762 = vmul.f32 %v752, 0.2
    %v763 = vmul.f32 %v754, 0.2
    %v764 = vmul.f32 %v713, 0.2
    %v765 = vmul.f32 %v715, 0.2
    %v766 = vmul.f32 %v756, 0.2
    %v767 = vmul.f32 %v758, 0.2
    %v768 = vmax.f32 %v709, %v760
    %v769 = vmax.f32 %v711, %v761
    %v770 = vmax.f32 %v752, %v762
    %v771 = vmax.f32 %v754, %v763
    %v772 = vmax.f32 %v713, %v764
    %v773 = vmax.f32 %v715, %v765
    %v774 = vmax.f32 %v756, %v766
    %v775 = vmax.f32 %v758, %v767
    %v776 = vpack.c.bf16 %v772, %v768
    %v777 = vpack.c.bf16 %v773, %v769
    %v778 = vpack.c.bf16 %v774, %v770
    %v779 = vpack.c.bf16 %v775, %v771
    %v780 = vld [vmem:[#allocation11] sm:$0xff]
    %v781 = vld [vmem:[#allocation11 + $0x8] sm:$0xff]
    %v782 = vld [vmem:[#allocation11 + $0x10] sm:$0xff]
    %v783 = vld [vmem:[#allocation11 + $0x18] sm:$0xff]
    %v784 = vld [vmem:[#allocation11 + $0x20] sm:$0xff]
    %v785 = vld [vmem:[#allocation11 + $0x28] sm:$0xff]
    %v786 = vld [vmem:[#allocation11 + $0x30] sm:$0xff]
    %v787 = vld [vmem:[#allocation11 + $0x38] sm:$0xff]
    %v788 = vld [vmem:[#allocation11 + $0x40] sm:$0xff]
    %v789 = vld [vmem:[#allocation11 + $0x48] sm:$0xff]
    %v790 = vld [vmem:[#allocation11 + $0x50] sm:$0xff]
    %v791 = vld [vmem:[#allocation11 + $0x58] sm:$0xff]
    %v792 = vld [vmem:[#allocation11 + $0x60] sm:$0xff]
    %v793 = vld [vmem:[#allocation11 + $0x68] sm:$0xff]
    %v794 = vld [vmem:[#allocation11 + $0x70] sm:$0xff]
    %v795 = vld [vmem:[#allocation11 + $0x78] sm:$0xff]
    %v796 = vld [vmem:[#allocation11 + $0x80] sm:$0xff]
    %v797 = vld [vmem:[#allocation11 + $0x88] sm:$0xff]
    %v798 = vld [vmem:[#allocation11 + $0x90] sm:$0xff]
    %v799 = vld [vmem:[#allocation11 + $0x98] sm:$0xff]
    %v800 = vld [vmem:[#allocation11 + $0xa0] sm:$0xff]
    %v801 = vld [vmem:[#allocation11 + $0xa8] sm:$0xff]
    %v802 = vld [vmem:[#allocation11 + $0xb0] sm:$0xff]
    %v803 = vld [vmem:[#allocation11 + $0xb8] sm:$0xff]
    %v804 = vld [vmem:[#allocation11 + $0xc0] sm:$0xff]
    %v805 = vld [vmem:[#allocation11 + $0xc8] sm:$0xff]
    %v806 = vld [vmem:[#allocation11 + $0xd0] sm:$0xff]
    %v807 = vld [vmem:[#allocation11 + $0xd8] sm:$0xff]
    %v808 = vld [vmem:[#allocation11 + $0xe0] sm:$0xff]
    %v809 = vld [vmem:[#allocation11 + $0xe8] sm:$0xff]
    %v810 = vld [vmem:[#allocation11 + $0xf0] sm:$0xff]
    %v811 = vld [vmem:[#allocation11 + $0xf8] sm:$0xff]
    %v812 = vld [vmem:[#allocation11 + $0x100] sm:$0xff]
    %v813 = vld [vmem:[#allocation11 + $0x108] sm:$0xff]
    %v814 = vld [vmem:[#allocation11 + $0x110] sm:$0xff]
    %v815 = vld [vmem:[#allocation11 + $0x118] sm:$0xff]
    %v816 = vld [vmem:[#allocation11 + $0x120] sm:$0xff]
    %v817 = vld [vmem:[#allocation11 + $0x128] sm:$0xff]
    %v818 = vld [vmem:[#allocation11 + $0x130] sm:$0xff]
    %v819 = vld [vmem:[#allocation11 + $0x138] sm:$0xff]
    %v820 = vld [vmem:[#allocation11 + $0x140] sm:$0xff]
    %v821 = vld [vmem:[#allocation11 + $0x148] sm:$0xff]
    %v822 = vld [vmem:[#allocation11 + $0x150] sm:$0xff]
    %v823 = vld [vmem:[#allocation11 + $0x158] sm:$0xff]
    %v824 = vld [vmem:[#allocation11 + $0x160] sm:$0xff]
    %v825 = vld [vmem:[#allocation11 + $0x168] sm:$0xff]
    %v826 = vld [vmem:[#allocation11 + $0x170] sm:$0xff]
    %v827 = vld [vmem:[#allocation11 + $0x178] sm:$0xff]
    %v828 = vld [vmem:[#allocation11 + $0x180] sm:$0xff]
    %v829 = vld [vmem:[#allocation11 + $0x188] sm:$0xff]
    %v830 = vld [vmem:[#allocation11 + $0x190] sm:$0xff]
    %v831 = vld [vmem:[#allocation11 + $0x198] sm:$0xff]
    %v832 = vld [vmem:[#allocation11 + $0x1a0] sm:$0xff]
    %v833 = vld [vmem:[#allocation11 + $0x1a8] sm:$0xff]
    %v834 = vld [vmem:[#allocation11 + $0x1b0] sm:$0xff]
    %v835 = vld [vmem:[#allocation11 + $0x1b8] sm:$0xff]
    %v836 = vld [vmem:[#allocation11 + $0x1c0] sm:$0xff]
    %v837 = vld [vmem:[#allocation11 + $0x1c8] sm:$0xff]
    %v838 = vld [vmem:[#allocation11 + $0x1d0] sm:$0xff]
    %v839 = vld [vmem:[#allocation11 + $0x1d8] sm:$0xff]
    %v840 = vld [vmem:[#allocation11 + $0x1e0] sm:$0xff]
    %v841 = vld [vmem:[#allocation11 + $0x1e8] sm:$0xff]
    %v842 = vld [vmem:[#allocation11 + $0x1f0] sm:$0xff]
    %v843 = vld [vmem:[#allocation11 + $0x1f8] sm:$0xff]
    %v844 = vld [vmem:[#allocation11 + $0x200] sm:$0xff]
    %v845 = vld [vmem:[#allocation11 + $0x208] sm:$0xff]
    %v846 = vld [vmem:[#allocation11 + $0x210] sm:$0xff]
    %v847 = vld [vmem:[#allocation11 + $0x218] sm:$0xff]
    %v848 = vld [vmem:[#allocation11 + $0x220] sm:$0xff]
    %v849 = vld [vmem:[#allocation11 + $0x228] sm:$0xff]
    %v850 = vld [vmem:[#allocation11 + $0x230] sm:$0xff]
    %v851 = vld [vmem:[#allocation11 + $0x238] sm:$0xff]
    %v852 = vld [vmem:[#allocation11 + $0x240] sm:$0xff]
    %v853 = vld [vmem:[#allocation11 + $0x248] sm:$0xff]
    %v854 = vld [vmem:[#allocation11 + $0x250] sm:$0xff]
    %v855 = vld [vmem:[#allocation11 + $0x258] sm:$0xff]
    %v856 = vld [vmem:[#allocation11 + $0x260] sm:$0xff]
    %v857 = vld [vmem:[#allocation11 + $0x268] sm:$0xff]
    %v858 = vld [vmem:[#allocation11 + $0x270] sm:$0xff]
    %v859 = vld [vmem:[#allocation11 + $0x278] sm:$0xff]
    %v860 = vld [vmem:[#allocation11 + $0x280] sm:$0xff]
    %v861 = vld [vmem:[#allocation11 + $0x288] sm:$0xff]
    %v862 = vld [vmem:[#allocation11 + $0x290] sm:$0xff]
    %v863 = vld [vmem:[#allocation11 + $0x298] sm:$0xff]
    %v864 = vld [vmem:[#allocation11 + $0x2a0] sm:$0xff]
    %v865 = vld [vmem:[#allocation11 + $0x2a8] sm:$0xff]
    %v866 = vld [vmem:[#allocation11 + $0x2b0] sm:$0xff]
    %v867 = vld [vmem:[#allocation11 + $0x2b8] sm:$0xff]
    %v868 = vld [vmem:[#allocation11 + $0x2c0] sm:$0xff]
    %v869 = vld [vmem:[#allocation11 + $0x2c8] sm:$0xff]
    %v870 = vld [vmem:[#allocation11 + $0x2d0] sm:$0xff]
    %v871 = vld [vmem:[#allocation11 + $0x2d8] sm:$0xff]
    %v872 = vld [vmem:[#allocation11 + $0x2e0] sm:$0xff]
    %v873 = vld [vmem:[#allocation11 + $0x2e8] sm:$0xff]
    %v874 = vld [vmem:[#allocation11 + $0x2f0] sm:$0xff]
    %v875 = vld [vmem:[#allocation11 + $0x2f8] sm:$0xff]
    %v876 = vld [vmem:[#allocation11 + $0x300] sm:$0xff]
    %v877 = vld [vmem:[#allocation11 + $0x308] sm:$0xff]
    %v878 = vld [vmem:[#allocation11 + $0x310] sm:$0xff]
    %v879 = vld [vmem:[#allocation11 + $0x318] sm:$0xff]
    %v880 = vld [vmem:[#allocation11 + $0x320] sm:$0xff]
    %v881 = vld [vmem:[#allocation11 + $0x328] sm:$0xff]
    %v882 = vld [vmem:[#allocation11 + $0x330] sm:$0xff]
    %v883 = vld [vmem:[#allocation11 + $0x338] sm:$0xff]
    %v884 = vld [vmem:[#allocation11 + $0x340] sm:$0xff]
    %v885 = vld [vmem:[#allocation11 + $0x348] sm:$0xff]
    %v886 = vld [vmem:[#allocation11 + $0x350] sm:$0xff]
    %v887 = vld [vmem:[#allocation11 + $0x358] sm:$0xff]
    %v888 = vld [vmem:[#allocation11 + $0x360] sm:$0xff]
    %v889 = vld [vmem:[#allocation11 + $0x368] sm:$0xff]
    %v890 = vld [vmem:[#allocation11 + $0x370] sm:$0xff]
    %v891 = vld [vmem:[#allocation11 + $0x378] sm:$0xff]
    %v892 = vld [vmem:[#allocation11 + $0x380] sm:$0xff]
    %v893 = vld [vmem:[#allocation11 + $0x388] sm:$0xff]
    %v894 = vld [vmem:[#allocation11 + $0x390] sm:$0xff]
    %v895 = vld [vmem:[#allocation11 + $0x398] sm:$0xff]
    %v896 = vld [vmem:[#allocation11 + $0x3a0] sm:$0xff]
    %v897 = vld [vmem:[#allocation11 + $0x3a8] sm:$0xff]
    %v898 = vld [vmem:[#allocation11 + $0x3b0] sm:$0xff]
    %v899 = vld [vmem:[#allocation11 + $0x3b8] sm:$0xff]
    %v900 = vld [vmem:[#allocation11 + $0x3c0] sm:$0xff]
    %v901 = vld [vmem:[#allocation11 + $0x3c8] sm:$0xff]
    %v902 = vld [vmem:[#allocation11 + $0x3d0] sm:$0xff]
    %v903 = vld [vmem:[#allocation11 + $0x3d8] sm:$0xff]
    %v904 = vld [vmem:[#allocation11 + $0x3e0] sm:$0xff]
    %v905 = vld [vmem:[#allocation11 + $0x3e8] sm:$0xff]
    %v906 = vld [vmem:[#allocation11 + $0x3f0] sm:$0xff]
    %v907 = vld [vmem:[#allocation11 + $0x3f8] sm:$0xff]
    %v908 = vld [vmem:[#allocation11 + $0x400] sm:$0xff]
    %v909 = vld [vmem:[#allocation11 + $0x408] sm:$0xff]
    %v910 = vld [vmem:[#allocation11 + $0x410] sm:$0xff]
    %v911 = vld [vmem:[#allocation11 + $0x418] sm:$0xff]
    %v912 = vld [vmem:[#allocation11 + $0x420] sm:$0xff]
    %v913 = vld [vmem:[#allocation11 + $0x428] sm:$0xff]
    %v914 = vld [vmem:[#allocation11 + $0x430] sm:$0xff]
    %v915 = vld [vmem:[#allocation11 + $0x438] sm:$0xff]
    %v916 = vld [vmem:[#allocation11 + $0x440] sm:$0xff]
    %v917 = vld [vmem:[#allocation11 + $0x448] sm:$0xff]
    %v918 = vld [vmem:[#allocation11 + $0x450] sm:$0xff]
    %v919 = vld [vmem:[#allocation11 + $0x458] sm:$0xff]
    %v920 = vld [vmem:[#allocation11 + $0x460] sm:$0xff]
    %v921 = vld [vmem:[#allocation11 + $0x468] sm:$0xff]
    %v922 = vld [vmem:[#allocation11 + $0x470] sm:$0xff]
    %v923 = vld [vmem:[#allocation11 + $0x478] sm:$0xff]
    %v924 = vld [vmem:[#allocation11 + $0x480] sm:$0xff]
    %v925 = vld [vmem:[#allocation11 + $0x488] sm:$0xff]
    %v926 = vld [vmem:[#allocation11 + $0x490] sm:$0xff]
    %v927 = vld [vmem:[#allocation11 + $0x498] sm:$0xff]
    %v928 = vld [vmem:[#allocation11 + $0x4a0] sm:$0xff]
    %v929 = vld [vmem:[#allocation11 + $0x4a8] sm:$0xff]
    %v930 = vld [vmem:[#allocation11 + $0x4b0] sm:$0xff]
    %v931 = vld [vmem:[#allocation11 + $0x4b8] sm:$0xff]
    %v932 = vld [vmem:[#allocation11 + $0x4c0] sm:$0xff]
    %v933 = vld [vmem:[#allocation11 + $0x4c8] sm:$0xff]
    %v934 = vld [vmem:[#allocation11 + $0x4d0] sm:$0xff]
    %v935 = vld [vmem:[#allocation11 + $0x4d8] sm:$0xff]
    %v936 = vld [vmem:[#allocation11 + $0x4e0] sm:$0xff]
    %v937 = vld [vmem:[#allocation11 + $0x4e8] sm:$0xff]
    %v938 = vld [vmem:[#allocation11 + $0x4f0] sm:$0xff]
    %v939 = vld [vmem:[#allocation11 + $0x4f8] sm:$0xff]
    %v940 = vld [vmem:[#allocation11 + $0x500] sm:$0xff]
    %v941 = vld [vmem:[#allocation11 + $0x508] sm:$0xff]
    %v942 = vld [vmem:[#allocation11 + $0x510] sm:$0xff]
    %v943 = vld [vmem:[#allocation11 + $0x518] sm:$0xff]
    %v944 = vld [vmem:[#allocation11 + $0x520] sm:$0xff]
    %v945 = vld [vmem:[#allocation11 + $0x528] sm:$0xff]
    %v946 = vld [vmem:[#allocation11 + $0x530] sm:$0xff]
    %v947 = vld [vmem:[#allocation11 + $0x538] sm:$0xff]
    %v948 = vld [vmem:[#allocation11 + $0x540] sm:$0xff]
    %v949 = vld [vmem:[#allocation11 + $0x548] sm:$0xff]
    %v950 = vld [vmem:[#allocation11 + $0x550] sm:$0xff]
    %v951 = vld [vmem:[#allocation11 + $0x558] sm:$0xff]
    %v952 = vld [vmem:[#allocation11 + $0x560] sm:$0xff]
    %v953 = vld [vmem:[#allocation11 + $0x568] sm:$0xff]
    %v954 = vld [vmem:[#allocation11 + $0x570] sm:$0xff]
    %v955 = vld [vmem:[#allocation11 + $0x578] sm:$0xff]
    %v956 = vld [vmem:[#allocation11 + $0x580] sm:$0xff]
    %v957 = vld [vmem:[#allocation11 + $0x588] sm:$0xff]
    %v958 = vld [vmem:[#allocation11 + $0x590] sm:$0xff]
    %v959 = vld [vmem:[#allocation11 + $0x598] sm:$0xff]
    %v960 = vld [vmem:[#allocation11 + $0x5a0] sm:$0xff]
    %v961 = vld [vmem:[#allocation11 + $0x5a8] sm:$0xff]
    %v962 = vld [vmem:[#allocation11 + $0x5b0] sm:$0xff]
    %v963 = vld [vmem:[#allocation11 + $0x5b8] sm:$0xff]
    %v964 = vld [vmem:[#allocation11 + $0x5c0] sm:$0xff]
    %v965 = vld [vmem:[#allocation11 + $0x5c8] sm:$0xff]
    %v966 = vld [vmem:[#allocation11 + $0x5d0] sm:$0xff]
    %v967 = vld [vmem:[#allocation11 + $0x5d8] sm:$0xff]
    %v968 = vld [vmem:[#allocation11 + $0x5e0] sm:$0xff]
    %v969 = vld [vmem:[#allocation11 + $0x5e8] sm:$0xff]
    %v970 = vld [vmem:[#allocation11 + $0x5f0] sm:$0xff]
    %v971 = vld [vmem:[#allocation11 + $0x5f8] sm:$0xff]
    %v972 = vld [vmem:[#allocation11 + $0x600] sm:$0xff]
    %v973 = vld [vmem:[#allocation11 + $0x608] sm:$0xff]
    %v974 = vld [vmem:[#allocation11 + $0x610] sm:$0xff]
    %v975 = vld [vmem:[#allocation11 + $0x618] sm:$0xff]
    %v976 = vld [vmem:[#allocation11 + $0x620] sm:$0xff]
    %v977 = vld [vmem:[#allocation11 + $0x628] sm:$0xff]
    %v978 = vld [vmem:[#allocation11 + $0x630] sm:$0xff]
    %v979 = vld [vmem:[#allocation11 + $0x638] sm:$0xff]
    %v980 = vld [vmem:[#allocation11 + $0x640] sm:$0xff]
    %v981 = vld [vmem:[#allocation11 + $0x648] sm:$0xff]
    %v982 = vld [vmem:[#allocation11 + $0x650] sm:$0xff]
    %v983 = vld [vmem:[#allocation11 + $0x658] sm:$0xff]
    %v984 = vld [vmem:[#allocation11 + $0x660] sm:$0xff]
    %v985 = vld [vmem:[#allocation11 + $0x668] sm:$0xff]
    %v986 = vld [vmem:[#allocation11 + $0x670] sm:$0xff]
    %v987 = vld [vmem:[#allocation11 + $0x678] sm:$0xff]
    %v988 = vld [vmem:[#allocation11 + $0x680] sm:$0xff]
    %v989 = vld [vmem:[#allocation11 + $0x688] sm:$0xff]
    %v990 = vld [vmem:[#allocation11 + $0x690] sm:$0xff]
    %v991 = vld [vmem:[#allocation11 + $0x698] sm:$0xff]
    %v992 = vld [vmem:[#allocation11 + $0x6a0] sm:$0xff]
    %v993 = vld [vmem:[#allocation11 + $0x6a8] sm:$0xff]
    %v994 = vld [vmem:[#allocation11 + $0x6b0] sm:$0xff]
    %v995 = vld [vmem:[#allocation11 + $0x6b8] sm:$0xff]
    %v996 = vld [vmem:[#allocation11 + $0x6c0] sm:$0xff]
    %v997 = vld [vmem:[#allocation11 + $0x6c8] sm:$0xff]
    %v998 = vld [vmem:[#allocation11 + $0x6d0] sm:$0xff]
    %v999 = vld [vmem:[#allocation11 + $0x6d8] sm:$0xff]
    %v1000 = vld [vmem:[#allocation11 + $0x6e0] sm:$0xff]
    %v1001 = vld [vmem:[#allocation11 + $0x6e8] sm:$0xff]
    %v1002 = vld [vmem:[#allocation11 + $0x6f0] sm:$0xff]
    %v1003 = vld [vmem:[#allocation11 + $0x6f8] sm:$0xff]
    %v1004 = vld [vmem:[#allocation11 + $0x700] sm:$0xff]
    %v1005 = vld [vmem:[#allocation11 + $0x708] sm:$0xff]
    %v1006 = vld [vmem:[#allocation11 + $0x710] sm:$0xff]
    %v1007 = vld [vmem:[#allocation11 + $0x718] sm:$0xff]
    %v1008 = vld [vmem:[#allocation11 + $0x720] sm:$0xff]
    %v1009 = vld [vmem:[#allocation11 + $0x728] sm:$0xff]
    %v1010 = vld [vmem:[#allocation11 + $0x730] sm:$0xff]
    %v1011 = vld [vmem:[#allocation11 + $0x738] sm:$0xff]
    %v1012 = vld [vmem:[#allocation11 + $0x740] sm:$0xff]
    %v1013 = vld [vmem:[#allocation11 + $0x748] sm:$0xff]
    %v1014 = vld [vmem:[#allocation11 + $0x750] sm:$0xff]
    %v1015 = vld [vmem:[#allocation11 + $0x758] sm:$0xff]
    %v1016 = vld [vmem:[#allocation11 + $0x760] sm:$0xff]
    %v1017 = vld [vmem:[#allocation11 + $0x768] sm:$0xff]
    %v1018 = vld [vmem:[#allocation11 + $0x770] sm:$0xff]
    %v1019 = vld [vmem:[#allocation11 + $0x778] sm:$0xff]
    %v1020 = vld [vmem:[#allocation11 + $0x780] sm:$0xff]
    %v1021 = vld [vmem:[#allocation11 + $0x788] sm:$0xff]
    %v1022 = vld [vmem:[#allocation11 + $0x790] sm:$0xff]
    %v1023 = vld [vmem:[#allocation11 + $0x798] sm:$0xff]
    %v1024 = vld [vmem:[#allocation11 + $0x7a0] sm:$0xff]
    %v1025 = vld [vmem:[#allocation11 + $0x7a8] sm:$0xff]
    %v1026 = vld [vmem:[#allocation11 + $0x7b0] sm:$0xff]
    %v1027 = vld [vmem:[#allocation11 + $0x7b8] sm:$0xff]
    %v1028 = vld [vmem:[#allocation11 + $0x7c0] sm:$0xff]
    %v1029 = vld [vmem:[#allocation11 + $0x7c8] sm:$0xff]
    %v1030 = vld [vmem:[#allocation11 + $0x7d0] sm:$0xff]
    %v1031 = vld [vmem:[#allocation11 + $0x7d8] sm:$0xff]
    %v1032 = vld [vmem:[#allocation11 + $0x7e0] sm:$0xff]
    %v1033 = vld [vmem:[#allocation11 + $0x7e8] sm:$0xff]
    %v1034 = vld [vmem:[#allocation11 + $0x7f0] sm:$0xff]
    %v1035 = vld [vmem:[#allocation11 + $0x7f8] sm:$0xff]
    %v1036 = vld [vmem:[#allocation13] sm:$0xff]
    %v1038 = vlaneseq
    %v1039 = vshrl.u32 %v1038, 7
    %v1040 = vsub.s32 0, %v1039
    %v1041 = vrot.slane %v1036, %v1040
    %v1042 = vlaneseq
    %v1043 = vshrl.u32 %v1042, 7
    %v1044 = vsub.s32 1, %v1043
    %v1045 = vrot.slane %v1036, %v1044
    %v1046 = vlaneseq
    %v1047 = vshrl.u32 %v1046, 7
    %v1048 = vsub.s32 2, %v1047
    %v1049 = vrot.slane %v1036, %v1048
    %v1050 = vlaneseq
    %v1051 = vshrl.u32 %v1050, 7
    %v1052 = vsub.s32 3, %v1051
    %v1053 = vrot.slane %v1036, %v1052
    %v1054 = vlaneseq
    %v1055 = vshrl.u32 %v1054, 7
    %v1056 = vsub.s32 4, %v1055
    %v1057 = vrot.slane %v1036, %v1056
    %v1058 = vlaneseq
    %v1059 = vshrl.u32 %v1058, 7
    %v1060 = vsub.s32 5, %v1059
    %v1061 = vrot.slane %v1036, %v1060
    %v1062 = vlaneseq
    %v1063 = vshrl.u32 %v1062, 7
    %v1064 = vsub.s32 6, %v1063
    %v1065 = vrot.slane %v1036, %v1064
    %v1066 = vlaneseq
    %v1067 = vshrl.u32 %v1066, 7
    %v1068 = vsub.s32 7, %v1067
    %v1069 = vrot.slane %v1036, %v1068
    %v1334 = vunpack.c.l.b16 %v780
    %v1335 = vunpack.c.h.b16 %v780
    %v1336 = vunpack.c.l.b16 %v781
    %v1337 = vunpack.c.h.b16 %v781
    %v1338 = vunpack.c.l.b16 %v782
    %v1339 = vunpack.c.h.b16 %v782
    %v1340 = vunpack.c.l.b16 %v783
    %v1341 = vunpack.c.h.b16 %v783
    %v1342 = vunpack.c.l.b16 %v784
    %v1343 = vunpack.c.h.b16 %v784
    %v1344 = vunpack.c.l.b16 %v785
    %v1345 = vunpack.c.h.b16 %v785
    %v1346 = vunpack.c.l.b16 %v786
    %v1347 = vunpack.c.h.b16 %v786
    %v1348 = vunpack.c.l.b16 %v787
    %v1349 = vunpack.c.h.b16 %v787
    %v1350 = vunpack.c.l.b16 %v788
    %v1351 = vunpack.c.h.b16 %v788
    %v1352 = vunpack.c.l.b16 %v789
    %v1353 = vunpack.c.h.b16 %v789
    %v1354 = vunpack.c.l.b16 %v790
    %v1355 = vunpack.c.h.b16 %v790
    %v1356 = vunpack.c.l.b16 %v791
    %v1357 = vunpack.c.h.b16 %v791
    %v1358 = vunpack.c.l.b16 %v792
    %v1359 = vunpack.c.h.b16 %v792
    %v1360 = vunpack.c.l.b16 %v793
    %v1361 = vunpack.c.h.b16 %v793
    %v1362 = vunpack.c.l.b16 %v794
    %v1363 = vunpack.c.h.b16 %v794
    %v1364 = vunpack.c.l.b16 %v795
    %v1365 = vunpack.c.h.b16 %v795
    %v1366 = vunpack.c.l.b16 %v796
    %v1367 = vunpack.c.h.b16 %v796
    %v1368 = vunpack.c.l.b16 %v797
    %v1369 = vunpack.c.h.b16 %v797
    %v1370 = vunpack.c.l.b16 %v798
    %v1371 = vunpack.c.h.b16 %v798
    %v1372 = vunpack.c.l.b16 %v799
    %v1373 = vunpack.c.h.b16 %v799
    %v1374 = vunpack.c.l.b16 %v800
    %v1375 = vunpack.c.h.b16 %v800
    %v1376 = vunpack.c.l.b16 %v801
    %v1377 = vunpack.c.h.b16 %v801
    %v1378 = vunpack.c.l.b16 %v802
    %v1379 = vunpack.c.h.b16 %v802
    %v1380 = vunpack.c.l.b16 %v803
    %v1381 = vunpack.c.h.b16 %v803
    %v1382 = vunpack.c.l.b16 %v804
    %v1383 = vunpack.c.h.b16 %v804
    %v1384 = vunpack.c.l.b16 %v805
    %v1385 = vunpack.c.h.b16 %v805
    %v1386 = vunpack.c.l.b16 %v806
    %v1387 = vunpack.c.h.b16 %v806
    %v1388 = vunpack.c.l.b16 %v807
    %v1389 = vunpack.c.h.b16 %v807
    %v1390 = vunpack.c.l.b16 %v808
    %v1391 = vunpack.c.h.b16 %v808
    %v1392 = vunpack.c.l.b16 %v809
    %v1393 = vunpack.c.h.b16 %v809
    %v1394 = vunpack.c.l.b16 %v810
    %v1395 = vunpack.c.h.b16 %v810
    %v1396 = vunpack.c.l.b16 %v811
    %v1397 = vunpack.c.h.b16 %v811
    %v1398 = vunpack.c.l.b16 %v812
    %v1399 = vunpack.c.h.b16 %v812
    %v1400 = vunpack.c.l.b16 %v813
    %v1401 = vunpack.c.h.b16 %v813
    %v1402 = vunpack.c.l.b16 %v814
    %v1403 = vunpack.c.h.b16 %v814
    %v1404 = vunpack.c.l.b16 %v815
    %v1405 = vunpack.c.h.b16 %v815
    %v1406 = vunpack.c.l.b16 %v816
    %v1407 = vunpack.c.h.b16 %v816
    %v1408 = vunpack.c.l.b16 %v817
    %v1409 = vunpack.c.h.b16 %v817
    %v1410 = vunpack.c.l.b16 %v818
    %v1411 = vunpack.c.h.b16 %v818
    %v1412 = vunpack.c.l.b16 %v819
    %v1413 = vunpack.c.h.b16 %v819
    %v1414 = vunpack.c.l.b16 %v820
    %v1415 = vunpack.c.h.b16 %v820
    %v1416 = vunpack.c.l.b16 %v821
    %v1417 = vunpack.c.h.b16 %v821
    %v1418 = vunpack.c.l.b16 %v822
    %v1419 = vunpack.c.h.b16 %v822
    %v1420 = vunpack.c.l.b16 %v823
    %v1421 = vunpack.c.h.b16 %v823
    %v1422 = vunpack.c.l.b16 %v824
    %v1423 = vunpack.c.h.b16 %v824
    %v1424 = vunpack.c.l.b16 %v825
    %v1425 = vunpack.c.h.b16 %v825
    %v1426 = vunpack.c.l.b16 %v826
    %v1427 = vunpack.c.h.b16 %v826
    %v1428 = vunpack.c.l.b16 %v827
    %v1429 = vunpack.c.h.b16 %v827
    %v1430 = vunpack.c.l.b16 %v828
    %v1431 = vunpack.c.h.b16 %v828
    %v1432 = vunpack.c.l.b16 %v829
    %v1433 = vunpack.c.h.b16 %v829
    %v1434 = vunpack.c.l.b16 %v830
    %v1435 = vunpack.c.h.b16 %v830
    %v1436 = vunpack.c.l.b16 %v831
    %v1437 = vunpack.c.h.b16 %v831
    %v1438 = vunpack.c.l.b16 %v832
    %v1439 = vunpack.c.h.b16 %v832
    %v1440 = vunpack.c.l.b16 %v833
    %v1441 = vunpack.c.h.b16 %v833
    %v1442 = vunpack.c.l.b16 %v834
    %v1443 = vunpack.c.h.b16 %v834
    %v1444 = vunpack.c.l.b16 %v835
    %v1445 = vunpack.c.h.b16 %v835
    %v1446 = vunpack.c.l.b16 %v836
    %v1447 = vunpack.c.h.b16 %v836
    %v1448 = vunpack.c.l.b16 %v837
    %v1449 = vunpack.c.h.b16 %v837
    %v1450 = vunpack.c.l.b16 %v838
    %v1451 = vunpack.c.h.b16 %v838
    %v1452 = vunpack.c.l.b16 %v839
    %v1453 = vunpack.c.h.b16 %v839
    %v1454 = vunpack.c.l.b16 %v840
    %v1455 = vunpack.c.h.b16 %v840
    %v1456 = vunpack.c.l.b16 %v841
    %v1457 = vunpack.c.h.b16 %v841
    %v1458 = vunpack.c.l.b16 %v842
    %v1459 = vunpack.c.h.b16 %v842
    %v1460 = vunpack.c.l.b16 %v843
    %v1461 = vunpack.c.h.b16 %v843
    %v1462 = vunpack.c.l.b16 %v844
    %v1463 = vunpack.c.h.b16 %v844
    %v1464 = vunpack.c.l.b16 %v845
    %v1465 = vunpack.c.h.b16 %v845
    %v1466 = vunpack.c.l.b16 %v846
    %v1467 = vunpack.c.h.b16 %v846
    %v1468 = vunpack.c.l.b16 %v847
    %v1469 = vunpack.c.h.b16 %v847
    %v1470 = vunpack.c.l.b16 %v848
    %v1471 = vunpack.c.h.b16 %v848
    %v1472 = vunpack.c.l.b16 %v849
    %v1473 = vunpack.c.h.b16 %v849
    %v1474 = vunpack.c.l.b16 %v850
    %v1475 = vunpack.c.h.b16 %v850
    %v1476 = vunpack.c.l.b16 %v851
    %v1477 = vunpack.c.h.b16 %v851
    %v1478 = vunpack.c.l.b16 %v852
    %v1479 = vunpack.c.h.b16 %v852
    %v1480 = vunpack.c.l.b16 %v853
    %v1481 = vunpack.c.h.b16 %v853
    %v1482 = vunpack.c.l.b16 %v854
    %v1483 = vunpack.c.h.b16 %v854
    %v1484 = vunpack.c.l.b16 %v855
    %v1485 = vunpack.c.h.b16 %v855
    %v1486 = vunpack.c.l.b16 %v856
    %v1487 = vunpack.c.h.b16 %v856
    %v1488 = vunpack.c.l.b16 %v857
    %v1489 = vunpack.c.h.b16 %v857
    %v1490 = vunpack.c.l.b16 %v858
    %v1491 = vunpack.c.h.b16 %v858
    %v1492 = vunpack.c.l.b16 %v859
    %v1493 = vunpack.c.h.b16 %v859
    %v1494 = vunpack.c.l.b16 %v860
    %v1495 = vunpack.c.h.b16 %v860
    %v1496 = vunpack.c.l.b16 %v861
    %v1497 = vunpack.c.h.b16 %v861
    %v1498 = vunpack.c.l.b16 %v862
    %v1499 = vunpack.c.h.b16 %v862
    %v1500 = vunpack.c.l.b16 %v863
    %v1501 = vunpack.c.h.b16 %v863
    %v1502 = vunpack.c.l.b16 %v864
    %v1503 = vunpack.c.h.b16 %v864
    %v1504 = vunpack.c.l.b16 %v865
    %v1505 = vunpack.c.h.b16 %v865
    %v1506 = vunpack.c.l.b16 %v866
    %v1507 = vunpack.c.h.b16 %v866
    %v1508 = vunpack.c.l.b16 %v867
    %v1509 = vunpack.c.h.b16 %v867
    %v1510 = vunpack.c.l.b16 %v868
    %v1511 = vunpack.c.h.b16 %v868
    %v1512 = vunpack.c.l.b16 %v869
    %v1513 = vunpack.c.h.b16 %v869
    %v1514 = vunpack.c.l.b16 %v870
    %v1515 = vunpack.c.h.b16 %v870
    %v1516 = vunpack.c.l.b16 %v871
    %v1517 = vunpack.c.h.b16 %v871
    %v1518 = vunpack.c.l.b16 %v872
    %v1519 = vunpack.c.h.b16 %v872
    %v1520 = vunpack.c.l.b16 %v873
    %v1521 = vunpack.c.h.b16 %v873
    %v1522 = vunpack.c.l.b16 %v874
    %v1523 = vunpack.c.h.b16 %v874
    %v1524 = vunpack.c.l.b16 %v875
    %v1525 = vunpack.c.h.b16 %v875
    %v1526 = vunpack.c.l.b16 %v876
    %v1527 = vunpack.c.h.b16 %v876
    %v1528 = vunpack.c.l.b16 %v877
    %v1529 = vunpack.c.h.b16 %v877
    %v1530 = vunpack.c.l.b16 %v878
    %v1531 = vunpack.c.h.b16 %v878
    %v1532 = vunpack.c.l.b16 %v879
    %v1533 = vunpack.c.h.b16 %v879
    %v1534 = vunpack.c.l.b16 %v880
    %v1535 = vunpack.c.h.b16 %v880
    %v1536 = vunpack.c.l.b16 %v881
    %v1537 = vunpack.c.h.b16 %v881
    %v1538 = vunpack.c.l.b16 %v882
    %v1539 = vunpack.c.h.b16 %v882
    %v1540 = vunpack.c.l.b16 %v883
    %v1541 = vunpack.c.h.b16 %v883
    %v1542 = vunpack.c.l.b16 %v884
    %v1543 = vunpack.c.h.b16 %v884
    %v1544 = vunpack.c.l.b16 %v885
    %v1545 = vunpack.c.h.b16 %v885
    %v1546 = vunpack.c.l.b16 %v886
    %v1547 = vunpack.c.h.b16 %v886
    %v1548 = vunpack.c.l.b16 %v887
    %v1549 = vunpack.c.h.b16 %v887
    %v1550 = vunpack.c.l.b16 %v888
    %v1551 = vunpack.c.h.b16 %v888
    %v1552 = vunpack.c.l.b16 %v889
    %v1553 = vunpack.c.h.b16 %v889
    %v1554 = vunpack.c.l.b16 %v890
    %v1555 = vunpack.c.h.b16 %v890
    %v1556 = vunpack.c.l.b16 %v891
    %v1557 = vunpack.c.h.b16 %v891
    %v1558 = vunpack.c.l.b16 %v892
    %v1559 = vunpack.c.h.b16 %v892
    %v1560 = vunpack.c.l.b16 %v893
    %v1561 = vunpack.c.h.b16 %v893
    %v1562 = vunpack.c.l.b16 %v894
    %v1563 = vunpack.c.h.b16 %v894
    %v1564 = vunpack.c.l.b16 %v895
    %v1565 = vunpack.c.h.b16 %v895
    %v1566 = vunpack.c.l.b16 %v896
    %v1567 = vunpack.c.h.b16 %v896
    %v1568 = vunpack.c.l.b16 %v897
    %v1569 = vunpack.c.h.b16 %v897
    %v1570 = vunpack.c.l.b16 %v898
    %v1571 = vunpack.c.h.b16 %v898
    %v1572 = vunpack.c.l.b16 %v899
    %v1573 = vunpack.c.h.b16 %v899
    %v1574 = vunpack.c.l.b16 %v900
    %v1575 = vunpack.c.h.b16 %v900
    %v1576 = vunpack.c.l.b16 %v901
    %v1577 = vunpack.c.h.b16 %v901
    %v1578 = vunpack.c.l.b16 %v902
    %v1579 = vunpack.c.h.b16 %v902
    %v1580 = vunpack.c.l.b16 %v903
    %v1581 = vunpack.c.h.b16 %v903
    %v1582 = vunpack.c.l.b16 %v904
    %v1583 = vunpack.c.h.b16 %v904
    %v1584 = vunpack.c.l.b16 %v905
    %v1585 = vunpack.c.h.b16 %v905
    %v1586 = vunpack.c.l.b16 %v906
    %v1587 = vunpack.c.h.b16 %v906
    %v1588 = vunpack.c.l.b16 %v907
    %v1589 = vunpack.c.h.b16 %v907
    %v1590 = vunpack.c.l.b16 %v908
    %v1591 = vunpack.c.h.b16 %v908
    %v1592 = vunpack.c.l.b16 %v909
    %v1593 = vunpack.c.h.b16 %v909
    %v1594 = vunpack.c.l.b16 %v910
    %v1595 = vunpack.c.h.b16 %v910
    %v1596 = vunpack.c.l.b16 %v911
    %v1597 = vunpack.c.h.b16 %v911
    %v1598 = vunpack.c.l.b16 %v912
    %v1599 = vunpack.c.h.b16 %v912
    %v1600 = vunpack.c.l.b16 %v913
    %v1601 = vunpack.c.h.b16 %v913
    %v1602 = vunpack.c.l.b16 %v914
    %v1603 = vunpack.c.h.b16 %v914
    %v1604 = vunpack.c.l.b16 %v915
    %v1605 = vunpack.c.h.b16 %v915
    %v1606 = vunpack.c.l.b16 %v916
    %v1607 = vunpack.c.h.b16 %v916
    %v1608 = vunpack.c.l.b16 %v917
    %v1609 = vunpack.c.h.b16 %v917
    %v1610 = vunpack.c.l.b16 %v918
    %v1611 = vunpack.c.h.b16 %v918
    %v1612 = vunpack.c.l.b16 %v919
    %v1613 = vunpack.c.h.b16 %v919
    %v1614 = vunpack.c.l.b16 %v920
    %v1615 = vunpack.c.h.b16 %v920
    %v1616 = vunpack.c.l.b16 %v921
    %v1617 = vunpack.c.h.b16 %v921
    %v1618 = vunpack.c.l.b16 %v922
    %v1619 = vunpack.c.h.b16 %v922
    %v1620 = vunpack.c.l.b16 %v923
    %v1621 = vunpack.c.h.b16 %v923
    %v1622 = vunpack.c.l.b16 %v924
    %v1623 = vunpack.c.h.b16 %v924
    %v1624 = vunpack.c.l.b16 %v925
    %v1625 = vunpack.c.h.b16 %v925
    %v1626 = vunpack.c.l.b16 %v926
    %v1627 = vunpack.c.h.b16 %v926
    %v1628 = vunpack.c.l.b16 %v927
    %v1629 = vunpack.c.h.b16 %v927
    %v1630 = vunpack.c.l.b16 %v928
    %v1631 = vunpack.c.h.b16 %v928
    %v1632 = vunpack.c.l.b16 %v929
    %v1633 = vunpack.c.h.b16 %v929
    %v1634 = vunpack.c.l.b16 %v930
    %v1635 = vunpack.c.h.b16 %v930
    %v1636 = vunpack.c.l.b16 %v931
    %v1637 = vunpack.c.h.b16 %v931
    %v1638 = vunpack.c.l.b16 %v932
    %v1639 = vunpack.c.h.b16 %v932
    %v1640 = vunpack.c.l.b16 %v933
    %v1641 = vunpack.c.h.b16 %v933
    %v1642 = vunpack.c.l.b16 %v934
    %v1643 = vunpack.c.h.b16 %v934
    %v1644 = vunpack.c.l.b16 %v935
    %v1645 = vunpack.c.h.b16 %v935
    %v1646 = vunpack.c.l.b16 %v936
    %v1647 = vunpack.c.h.b16 %v936
    %v1648 = vunpack.c.l.b16 %v937
    %v1649 = vunpack.c.h.b16 %v937
    %v1650 = vunpack.c.l.b16 %v938
    %v1651 = vunpack.c.h.b16 %v938
    %v1652 = vunpack.c.l.b16 %v939
    %v1653 = vunpack.c.h.b16 %v939
    %v1654 = vunpack.c.l.b16 %v940
    %v1655 = vunpack.c.h.b16 %v940
    %v1656 = vunpack.c.l.b16 %v941
    %v1657 = vunpack.c.h.b16 %v941
    %v1658 = vunpack.c.l.b16 %v942
    %v1659 = vunpack.c.h.b16 %v942
    %v1660 = vunpack.c.l.b16 %v943
    %v1661 = vunpack.c.h.b16 %v943
    %v1662 = vunpack.c.l.b16 %v944
    %v1663 = vunpack.c.h.b16 %v944
    %v1664 = vunpack.c.l.b16 %v945
    %v1665 = vunpack.c.h.b16 %v945
    %v1666 = vunpack.c.l.b16 %v946
    %v1667 = vunpack.c.h.b16 %v946
    %v1668 = vunpack.c.l.b16 %v947
    %v1669 = vunpack.c.h.b16 %v947
    %v1670 = vunpack.c.l.b16 %v948
    %v1671 = vunpack.c.h.b16 %v948
    %v1672 = vunpack.c.l.b16 %v949
    %v1673 = vunpack.c.h.b16 %v949
    %v1674 = vunpack.c.l.b16 %v950
    %v1675 = vunpack.c.h.b16 %v950
    %v1676 = vunpack.c.l.b16 %v951
    %v1677 = vunpack.c.h.b16 %v951
    %v1678 = vunpack.c.l.b16 %v952
    %v1679 = vunpack.c.h.b16 %v952
    %v1680 = vunpack.c.l.b16 %v953
    %v1681 = vunpack.c.h.b16 %v953
    %v1682 = vunpack.c.l.b16 %v954
    %v1683 = vunpack.c.h.b16 %v954
    %v1684 = vunpack.c.l.b16 %v955
    %v1685 = vunpack.c.h.b16 %v955
    %v1686 = vunpack.c.l.b16 %v956
    %v1687 = vunpack.c.h.b16 %v956
    %v1688 = vunpack.c.l.b16 %v957
    %v1689 = vunpack.c.h.b16 %v957
    %v1690 = vunpack.c.l.b16 %v958
    %v1691 = vunpack.c.h.b16 %v958
    %v1692 = vunpack.c.l.b16 %v959
    %v1693 = vunpack.c.h.b16 %v959
    %v1694 = vunpack.c.l.b16 %v960
    %v1695 = vunpack.c.h.b16 %v960
    %v1696 = vunpack.c.l.b16 %v961
    %v1697 = vunpack.c.h.b16 %v961
    %v1698 = vunpack.c.l.b16 %v962
    %v1699 = vunpack.c.h.b16 %v962
    %v1700 = vunpack.c.l.b16 %v963
    %v1701 = vunpack.c.h.b16 %v963
    %v1702 = vunpack.c.l.b16 %v964
    %v1703 = vunpack.c.h.b16 %v964
    %v1704 = vunpack.c.l.b16 %v965
    %v1705 = vunpack.c.h.b16 %v965
    %v1706 = vunpack.c.l.b16 %v966
    %v1707 = vunpack.c.h.b16 %v966
    %v1708 = vunpack.c.l.b16 %v967
    %v1709 = vunpack.c.h.b16 %v967
    %v1710 = vunpack.c.l.b16 %v968
    %v1711 = vunpack.c.h.b16 %v968
    %v1712 = vunpack.c.l.b16 %v969
    %v1713 = vunpack.c.h.b16 %v969
    %v1714 = vunpack.c.l.b16 %v970
    %v1715 = vunpack.c.h.b16 %v970
    %v1716 = vunpack.c.l.b16 %v971
    %v1717 = vunpack.c.h.b16 %v971
    %v1718 = vunpack.c.l.b16 %v972
    %v1719 = vunpack.c.h.b16 %v972
    %v1720 = vunpack.c.l.b16 %v973
    %v1721 = vunpack.c.h.b16 %v973
    %v1722 = vunpack.c.l.b16 %v974
    %v1723 = vunpack.c.h.b16 %v974
    %v1724 = vunpack.c.l.b16 %v975
    %v1725 = vunpack.c.h.b16 %v975
    %v1726 = vunpack.c.l.b16 %v976
    %v1727 = vunpack.c.h.b16 %v976
    %v1728 = vunpack.c.l.b16 %v977
    %v1729 = vunpack.c.h.b16 %v977
    %v1730 = vunpack.c.l.b16 %v978
    %v1731 = vunpack.c.h.b16 %v978
    %v1732 = vunpack.c.l.b16 %v979
    %v1733 = vunpack.c.h.b16 %v979
    %v1734 = vunpack.c.l.b16 %v980
    %v1735 = vunpack.c.h.b16 %v980
    %v1736 = vunpack.c.l.b16 %v981
    %v1737 = vunpack.c.h.b16 %v981
    %v1738 = vunpack.c.l.b16 %v982
    %v1739 = vunpack.c.h.b16 %v982
    %v1740 = vunpack.c.l.b16 %v983
    %v1741 = vunpack.c.h.b16 %v983
    %v1742 = vunpack.c.l.b16 %v984
    %v1743 = vunpack.c.h.b16 %v984
    %v1744 = vunpack.c.l.b16 %v985
    %v1745 = vunpack.c.h.b16 %v985
    %v1746 = vunpack.c.l.b16 %v986
    %v1747 = vunpack.c.h.b16 %v986
    %v1748 = vunpack.c.l.b16 %v987
    %v1749 = vunpack.c.h.b16 %v987
    %v1750 = vunpack.c.l.b16 %v988
    %v1751 = vunpack.c.h.b16 %v988
    %v1752 = vunpack.c.l.b16 %v989
    %v1753 = vunpack.c.h.b16 %v989
    %v1754 = vunpack.c.l.b16 %v990
    %v1755 = vunpack.c.h.b16 %v990
    %v1756 = vunpack.c.l.b16 %v991
    %v1757 = vunpack.c.h.b16 %v991
    %v1758 = vunpack.c.l.b16 %v992
    %v1759 = vunpack.c.h.b16 %v992
    %v1760 = vunpack.c.l.b16 %v993
    %v1761 = vunpack.c.h.b16 %v993
    %v1762 = vunpack.c.l.b16 %v994
    %v1763 = vunpack.c.h.b16 %v994
    %v1764 = vunpack.c.l.b16 %v995
    %v1765 = vunpack.c.h.b16 %v995
    %v1766 = vunpack.c.l.b16 %v996
    %v1767 = vunpack.c.h.b16 %v996
    %v1768 = vunpack.c.l.b16 %v997
    %v1769 = vunpack.c.h.b16 %v997
    %v1770 = vunpack.c.l.b16 %v998
    %v1771 = vunpack.c.h.b16 %v998
    %v1772 = vunpack.c.l.b16 %v999
    %v1773 = vunpack.c.h.b16 %v999
    %v1774 = vunpack.c.l.b16 %v1000
    %v1775 = vunpack.c.h.b16 %v1000
    %v1776 = vunpack.c.l.b16 %v1001
    %v1777 = vunpack.c.h.b16 %v1001
    %v1778 = vunpack.c.l.b16 %v1002
    %v1779 = vunpack.c.h.b16 %v1002
    %v1780 = vunpack.c.l.b16 %v1003
    %v1781 = vunpack.c.h.b16 %v1003
    %v1782 = vunpack.c.l.b16 %v1004
    %v1783 = vunpack.c.h.b16 %v1004
    %v1784 = vunpack.c.l.b16 %v1005
    %v1785 = vunpack.c.h.b16 %v1005
    %v1786 = vunpack.c.l.b16 %v1006
    %v1787 = vunpack.c.h.b16 %v1006
    %v1788 = vunpack.c.l.b16 %v1007
    %v1789 = vunpack.c.h.b16 %v1007
    %v1790 = vunpack.c.l.b16 %v1008
    %v1791 = vunpack.c.h.b16 %v1008
    %v1792 = vunpack.c.l.b16 %v1009
    %v1793 = vunpack.c.h.b16 %v1009
    %v1794 = vunpack.c.l.b16 %v1010
    %v1795 = vunpack.c.h.b16 %v1010
    %v1796 = vunpack.c.l.b16 %v1011
    %v1797 = vunpack.c.h.b16 %v1011
    %v1798 = vunpack.c.l.b16 %v1012
    %v1799 = vunpack.c.h.b16 %v1012
    %v1800 = vunpack.c.l.b16 %v1013
    %v1801 = vunpack.c.h.b16 %v1013
    %v1802 = vunpack.c.l.b16 %v1014
    %v1803 = vunpack.c.h.b16 %v1014
    %v1804 = vunpack.c.l.b16 %v1015
    %v1805 = vunpack.c.h.b16 %v1015
    %v1806 = vunpack.c.l.b16 %v1016
    %v1807 = vunpack.c.h.b16 %v1016
    %v1808 = vunpack.c.l.b16 %v1017
    %v1809 = vunpack.c.h.b16 %v1017
    %v1810 = vunpack.c.l.b16 %v1018
    %v1811 = vunpack.c.h.b16 %v1018
    %v1812 = vunpack.c.l.b16 %v1019
    %v1813 = vunpack.c.h.b16 %v1019
    %v1814 = vunpack.c.l.b16 %v1020
    %v1815 = vunpack.c.h.b16 %v1020
    %v1816 = vunpack.c.l.b16 %v1021
    %v1817 = vunpack.c.h.b16 %v1021
    %v1818 = vunpack.c.l.b16 %v1022
    %v1819 = vunpack.c.h.b16 %v1022
    %v1820 = vunpack.c.l.b16 %v1023
    %v1821 = vunpack.c.h.b16 %v1023
    %v1822 = vunpack.c.l.b16 %v1024
    %v1823 = vunpack.c.h.b16 %v1024
    %v1824 = vunpack.c.l.b16 %v1025
    %v1825 = vunpack.c.h.b16 %v1025
    %v1826 = vunpack.c.l.b16 %v1026
    %v1827 = vunpack.c.h.b16 %v1026
    %v1828 = vunpack.c.l.b16 %v1027
    %v1829 = vunpack.c.h.b16 %v1027
    %v1830 = vunpack.c.l.b16 %v1028
    %v1831 = vunpack.c.h.b16 %v1028
    %v1832 = vunpack.c.l.b16 %v1029
    %v1833 = vunpack.c.h.b16 %v1029
    %v1834 = vunpack.c.l.b16 %v1030
    %v1835 = vunpack.c.h.b16 %v1030
    %v1836 = vunpack.c.l.b16 %v1031
    %v1837 = vunpack.c.h.b16 %v1031
    %v1838 = vunpack.c.l.b16 %v1032
    %v1839 = vunpack.c.h.b16 %v1032
    %v1840 = vunpack.c.l.b16 %v1033
    %v1841 = vunpack.c.h.b16 %v1033
    %v1842 = vunpack.c.l.b16 %v1034
    %v1843 = vunpack.c.h.b16 %v1034
    %v1844 = vunpack.c.l.b16 %v1035
    %v1845 = vunpack.c.h.b16 %v1035
    %v1846 = vpack.c.b16 %v1342, %v1334
    %v1847 = vpack.c.b16 %v1343, %v1335
    %v1848 = vpack.c.b16 %v1344, %v1336
    %v1849 = vpack.c.b16 %v1345, %v1337
    %v1850 = vpack.c.b16 %v1346, %v1338
    %v1851 = vpack.c.b16 %v1347, %v1339
    %v1852 = vpack.c.b16 %v1348, %v1340
    %v1853 = vpack.c.b16 %v1349, %v1341
    %v1854 = vpack.c.b16 %v1358, %v1350
    %v1855 = vpack.c.b16 %v1359, %v1351
    %v1856 = vpack.c.b16 %v1360, %v1352
    %v1857 = vpack.c.b16 %v1361, %v1353
    %v1858 = vpack.c.b16 %v1362, %v1354
    %v1859 = vpack.c.b16 %v1363, %v1355
    %v1860 = vpack.c.b16 %v1364, %v1356
    %v1861 = vpack.c.b16 %v1365, %v1357
    %v1862 = vpack.c.b16 %v1374, %v1366
    %v1863 = vpack.c.b16 %v1375, %v1367
    %v1864 = vpack.c.b16 %v1376, %v1368
    %v1865 = vpack.c.b16 %v1377, %v1369
    %v1866 = vpack.c.b16 %v1378, %v1370
    %v1867 = vpack.c.b16 %v1379, %v1371
    %v1868 = vpack.c.b16 %v1380, %v1372
    %v1869 = vpack.c.b16 %v1381, %v1373
    %v1870 = vpack.c.b16 %v1390, %v1382
    %v1871 = vpack.c.b16 %v1391, %v1383
    %v1872 = vpack.c.b16 %v1392, %v1384
    %v1873 = vpack.c.b16 %v1393, %v1385
    %v1874 = vpack.c.b16 %v1394, %v1386
    %v1875 = vpack.c.b16 %v1395, %v1387
    %v1876 = vpack.c.b16 %v1396, %v1388
    %v1877 = vpack.c.b16 %v1397, %v1389
    %v1878 = vpack.c.b16 %v1406, %v1398
    %v1879 = vpack.c.b16 %v1407, %v1399
    %v1880 = vpack.c.b16 %v1408, %v1400
    %v1881 = vpack.c.b16 %v1409, %v1401
    %v1882 = vpack.c.b16 %v1410, %v1402
    %v1883 = vpack.c.b16 %v1411, %v1403
    %v1884 = vpack.c.b16 %v1412, %v1404
    %v1885 = vpack.c.b16 %v1413, %v1405
    %v1886 = vpack.c.b16 %v1422, %v1414
    %v1887 = vpack.c.b16 %v1423, %v1415
    %v1888 = vpack.c.b16 %v1424, %v1416
    %v1889 = vpack.c.b16 %v1425, %v1417
    %v1890 = vpack.c.b16 %v1426, %v1418
    %v1891 = vpack.c.b16 %v1427, %v1419
    %v1892 = vpack.c.b16 %v1428, %v1420
    %v1893 = vpack.c.b16 %v1429, %v1421
    %v1894 = vpack.c.b16 %v1438, %v1430
    %v1895 = vpack.c.b16 %v1439, %v1431
    %v1896 = vpack.c.b16 %v1440, %v1432
    %v1897 = vpack.c.b16 %v1441, %v1433
    %v1898 = vpack.c.b16 %v1442, %v1434
    %v1899 = vpack.c.b16 %v1443, %v1435
    %v1900 = vpack.c.b16 %v1444, %v1436
    %v1901 = vpack.c.b16 %v1445, %v1437
    %v1902 = vpack.c.b16 %v1454, %v1446
    %v1903 = vpack.c.b16 %v1455, %v1447
    %v1904 = vpack.c.b16 %v1456, %v1448
    %v1905 = vpack.c.b16 %v1457, %v1449
    %v1906 = vpack.c.b16 %v1458, %v1450
    %v1907 = vpack.c.b16 %v1459, %v1451
    %v1908 = vpack.c.b16 %v1460, %v1452
    %v1909 = vpack.c.b16 %v1461, %v1453
    %v1910 = vpack.c.b16 %v1470, %v1462
    %v1911 = vpack.c.b16 %v1471, %v1463
    %v1912 = vpack.c.b16 %v1472, %v1464
    %v1913 = vpack.c.b16 %v1473, %v1465
    %v1914 = vpack.c.b16 %v1474, %v1466
    %v1915 = vpack.c.b16 %v1475, %v1467
    %v1916 = vpack.c.b16 %v1476, %v1468
    %v1917 = vpack.c.b16 %v1477, %v1469
    %v1918 = vpack.c.b16 %v1486, %v1478
    %v1919 = vpack.c.b16 %v1487, %v1479
    %v1920 = vpack.c.b16 %v1488, %v1480
    %v1921 = vpack.c.b16 %v1489, %v1481
    %v1922 = vpack.c.b16 %v1490, %v1482
    %v1923 = vpack.c.b16 %v1491, %v1483
    %v1924 = vpack.c.b16 %v1492, %v1484
    %v1925 = vpack.c.b16 %v1493, %v1485
    %v1926 = vpack.c.b16 %v1502, %v1494
    %v1927 = vpack.c.b16 %v1503, %v1495
    %v1928 = vpack.c.b16 %v1504, %v1496
    %v1929 = vpack.c.b16 %v1505, %v1497
    %v1930 = vpack.c.b16 %v1506, %v1498
    %v1931 = vpack.c.b16 %v1507, %v1499
    %v1932 = vpack.c.b16 %v1508, %v1500
    %v1933 = vpack.c.b16 %v1509, %v1501
    %v1934 = vpack.c.b16 %v1518, %v1510
    %v1935 = vpack.c.b16 %v1519, %v1511
    %v1936 = vpack.c.b16 %v1520, %v1512
    %v1937 = vpack.c.b16 %v1521, %v1513
    %v1938 = vpack.c.b16 %v1522, %v1514
    %v1939 = vpack.c.b16 %v1523, %v1515
    %v1940 = vpack.c.b16 %v1524, %v1516
    %v1941 = vpack.c.b16 %v1525, %v1517
    %v1942 = vpack.c.b16 %v1534, %v1526
    %v1943 = vpack.c.b16 %v1535, %v1527
    %v1944 = vpack.c.b16 %v1536, %v1528
    %v1945 = vpack.c.b16 %v1537, %v1529
    %v1946 = vpack.c.b16 %v1538, %v1530
    %v1947 = vpack.c.b16 %v1539, %v1531
    %v1948 = vpack.c.b16 %v1540, %v1532
    %v1949 = vpack.c.b16 %v1541, %v1533
    %v1950 = vpack.c.b16 %v1550, %v1542
    %v1951 = vpack.c.b16 %v1551, %v1543
    %v1952 = vpack.c.b16 %v1552, %v1544
    %v1953 = vpack.c.b16 %v1553, %v1545
    %v1954 = vpack.c.b16 %v1554, %v1546
    %v1955 = vpack.c.b16 %v1555, %v1547
    %v1956 = vpack.c.b16 %v1556, %v1548
    %v1957 = vpack.c.b16 %v1557, %v1549
    %v1958 = vpack.c.b16 %v1566, %v1558
    %v1959 = vpack.c.b16 %v1567, %v1559
    %v1960 = vpack.c.b16 %v1568, %v1560
    %v1961 = vpack.c.b16 %v1569, %v1561
    %v1962 = vpack.c.b16 %v1570, %v1562
    %v1963 = vpack.c.b16 %v1571, %v1563
    %v1964 = vpack.c.b16 %v1572, %v1564
    %v1965 = vpack.c.b16 %v1573, %v1565
    %v1966 = vpack.c.b16 %v1582, %v1574
    %v1967 = vpack.c.b16 %v1583, %v1575
    %v1968 = vpack.c.b16 %v1584, %v1576
    %v1969 = vpack.c.b16 %v1585, %v1577
    %v1970 = vpack.c.b16 %v1586, %v1578
    %v1971 = vpack.c.b16 %v1587, %v1579
    %v1972 = vpack.c.b16 %v1588, %v1580
    %v1973 = vpack.c.b16 %v1589, %v1581
    %v1974 = vpack.c.b16 %v1598, %v1590
    %v1975 = vpack.c.b16 %v1599, %v1591
    %v1976 = vpack.c.b16 %v1600, %v1592
    %v1977 = vpack.c.b16 %v1601, %v1593
    %v1978 = vpack.c.b16 %v1602, %v1594
    %v1979 = vpack.c.b16 %v1603, %v1595
    %v1980 = vpack.c.b16 %v1604, %v1596
    %v1981 = vpack.c.b16 %v1605, %v1597
    %v1982 = vpack.c.b16 %v1614, %v1606
    %v1983 = vpack.c.b16 %v1615, %v1607
    %v1984 = vpack.c.b16 %v1616, %v1608
    %v1985 = vpack.c.b16 %v1617, %v1609
    %v1986 = vpack.c.b16 %v1618, %v1610
    %v1987 = vpack.c.b16 %v1619, %v1611
    %v1988 = vpack.c.b16 %v1620, %v1612
    %v1989 = vpack.c.b16 %v1621, %v1613
    %v1990 = vpack.c.b16 %v1630, %v1622
    %v1991 = vpack.c.b16 %v1631, %v1623
    %v1992 = vpack.c.b16 %v1632, %v1624
    %v1993 = vpack.c.b16 %v1633, %v1625
    %v1994 = vpack.c.b16 %v1634, %v1626
    %v1995 = vpack.c.b16 %v1635, %v1627
    %v1996 = vpack.c.b16 %v1636, %v1628
    %v1997 = vpack.c.b16 %v1637, %v1629
    %v1998 = vpack.c.b16 %v1646, %v1638
    %v1999 = vpack.c.b16 %v1647, %v1639
    %v2000 = vpack.c.b16 %v1648, %v1640
    %v2001 = vpack.c.b16 %v1649, %v1641
    %v2002 = vpack.c.b16 %v1650, %v1642
    %v2003 = vpack.c.b16 %v1651, %v1643
    %v2004 = vpack.c.b16 %v1652, %v1644
    %v2005 = vpack.c.b16 %v1653, %v1645
    %v2006 = vpack.c.b16 %v1662, %v1654
    %v2007 = vpack.c.b16 %v1663, %v1655
    %v2008 = vpack.c.b16 %v1664, %v1656
    %v2009 = vpack.c.b16 %v1665, %v1657
    %v2010 = vpack.c.b16 %v1666, %v1658
    %v2011 = vpack.c.b16 %v1667, %v1659
    %v2012 = vpack.c.b16 %v1668, %v1660
    %v2013 = vpack.c.b16 %v1669, %v1661
    %v2014 = vpack.c.b16 %v1678, %v1670
    %v2015 = vpack.c.b16 %v1679, %v1671
    %v2016 = vpack.c.b16 %v1680, %v1672
    %v2017 = vpack.c.b16 %v1681, %v1673
    %v2018 = vpack.c.b16 %v1682, %v1674
    %v2019 = vpack.c.b16 %v1683, %v1675
    %v2020 = vpack.c.b16 %v1684, %v1676
    %v2021 = vpack.c.b16 %v1685, %v1677
    %v2022 = vpack.c.b16 %v1694, %v1686
    %v2023 = vpack.c.b16 %v1695, %v1687
    %v2024 = vpack.c.b16 %v1696, %v1688
    %v2025 = vpack.c.b16 %v1697, %v1689
    %v2026 = vpack.c.b16 %v1698, %v1690
    %v2027 = vpack.c.b16 %v1699, %v1691
    %v2028 = vpack.c.b16 %v1700, %v1692
    %v2029 = vpack.c.b16 %v1701, %v1693
    %v2030 = vpack.c.b16 %v1710, %v1702
    %v2031 = vpack.c.b16 %v1711, %v1703
    %v2032 = vpack.c.b16 %v1712, %v1704
    %v2033 = vpack.c.b16 %v1713, %v1705
    %v2034 = vpack.c.b16 %v1714, %v1706
    %v2035 = vpack.c.b16 %v1715, %v1707
    %v2036 = vpack.c.b16 %v1716, %v1708
    %v2037 = vpack.c.b16 %v1717, %v1709
    %v2038 = vpack.c.b16 %v1726, %v1718
    %v2039 = vpack.c.b16 %v1727, %v1719
    %v2040 = vpack.c.b16 %v1728, %v1720
    %v2041 = vpack.c.b16 %v1729, %v1721
    %v2042 = vpack.c.b16 %v1730, %v1722
    %v2043 = vpack.c.b16 %v1731, %v1723
    %v2044 = vpack.c.b16 %v1732, %v1724
    %v2045 = vpack.c.b16 %v1733, %v1725
    %v2046 = vpack.c.b16 %v1742, %v1734
    %v2047 = vpack.c.b16 %v1743, %v1735
    %v2048 = vpack.c.b16 %v1744, %v1736
    %v2049 = vpack.c.b16 %v1745, %v1737
    %v2050 = vpack.c.b16 %v1746, %v1738
    %v2051 = vpack.c.b16 %v1747, %v1739
    %v2052 = vpack.c.b16 %v1748, %v1740
    %v2053 = vpack.c.b16 %v1749, %v1741
    %v2054 = vpack.c.b16 %v1758, %v1750
    %v2055 = vpack.c.b16 %v1759, %v1751
    %v2056 = vpack.c.b16 %v1760, %v1752
    %v2057 = vpack.c.b16 %v1761, %v1753
    %v2058 = vpack.c.b16 %v1762, %v1754
    %v2059 = vpack.c.b16 %v1763, %v1755
    %v2060 = vpack.c.b16 %v1764, %v1756
    %v2061 = vpack.c.b16 %v1765, %v1757
    %v2062 = vpack.c.b16 %v1774, %v1766
    %v2063 = vpack.c.b16 %v1775, %v1767
    %v2064 = vpack.c.b16 %v1776, %v1768
    %v2065 = vpack.c.b16 %v1777, %v1769
    %v2066 = vpack.c.b16 %v1778, %v1770
    %v2067 = vpack.c.b16 %v1779, %v1771
    %v2068 = vpack.c.b16 %v1780, %v1772
    %v2069 = vpack.c.b16 %v1781, %v1773
    %v2070 = vpack.c.b16 %v1790, %v1782
    %v2071 = vpack.c.b16 %v1791, %v1783
    %v2072 = vpack.c.b16 %v1792, %v1784
    %v2073 = vpack.c.b16 %v1793, %v1785
    %v2074 = vpack.c.b16 %v1794, %v1786
    %v2075 = vpack.c.b16 %v1795, %v1787
    %v2076 = vpack.c.b16 %v1796, %v1788
    %v2077 = vpack.c.b16 %v1797, %v1789
    %v2078 = vpack.c.b16 %v1806, %v1798
    %v2079 = vpack.c.b16 %v1807, %v1799
    %v2080 = vpack.c.b16 %v1808, %v1800
    %v2081 = vpack.c.b16 %v1809, %v1801
    %v2082 = vpack.c.b16 %v1810, %v1802
    %v2083 = vpack.c.b16 %v1811, %v1803
    %v2084 = vpack.c.b16 %v1812, %v1804
    %v2085 = vpack.c.b16 %v1813, %v1805
    %v2086 = vpack.c.b16 %v1822, %v1814
    %v2087 = vpack.c.b16 %v1823, %v1815
    %v2088 = vpack.c.b16 %v1824, %v1816
    %v2089 = vpack.c.b16 %v1825, %v1817
    %v2090 = vpack.c.b16 %v1826, %v1818
    %v2091 = vpack.c.b16 %v1827, %v1819
    %v2092 = vpack.c.b16 %v1828, %v1820
    %v2093 = vpack.c.b16 %v1829, %v1821
    %v2094 = vpack.c.b16 %v1838, %v1830
    %v2095 = vpack.c.b16 %v1839, %v1831
    %v2096 = vpack.c.b16 %v1840, %v1832
    %v2097 = vpack.c.b16 %v1841, %v1833
    %v2098 = vpack.c.b16 %v1842, %v1834
    %v2099 = vpack.c.b16 %v1843, %v1835
    %v2100 = vpack.c.b16 %v1844, %v1836
    %v2101 = vpack.c.b16 %v1845, %v1837
    %2358 = vmatprep.subr.bf16.mxu0 %v1847
    %2359 = vmatpush1.bf16.msra.mxu0 %v1846
    %2360 = vmatprep.subr.bf16.mxu0 %v1855
    %2361 = vmatpush1.bf16.msra.mxu0 %v1854
    %2362 = vmatprep.subr.bf16.mxu0 %v1863
    %2363 = vmatpush1.bf16.msra.mxu0 %v1862
    %2364 = vmatprep.subr.bf16.mxu0 %v1871
    %2365 = vmatpush1.bf16.msra.mxu0 %v1870
    %2366 = vmatprep.subr.bf16.mxu0 %v1879
    %2367 = vmatpush1.bf16.msra.mxu0 %v1878
    %2368 = vmatprep.subr.bf16.mxu0 %v1887
    %2369 = vmatpush1.bf16.msra.mxu0 %v1886
    %2370 = vmatprep.subr.bf16.mxu0 %v1895
    %2371 = vmatpush1.bf16.msra.mxu0 %v1894
    %2372 = vmatprep.subr.bf16.mxu0 %v1903
    %2373 = vmatpush1.bf16.msra.mxu0 %v1902
    %2374 = vmatprep.subr.bf16.mxu0 %v1911
    %2375 = vmatpush1.bf16.msra.mxu0 %v1910
    %2376 = vmatprep.subr.bf16.mxu0 %v1919
    %2377 = vmatpush1.bf16.msra.mxu0 %v1918
    %2378 = vmatprep.subr.bf16.mxu0 %v1927
    %2379 = vmatpush1.bf16.msra.mxu0 %v1926
    %2380 = vmatprep.subr.bf16.mxu0 %v1935
    %2381 = vmatpush1.bf16.msra.mxu0 %v1934
    %2382 = vmatprep.subr.bf16.mxu0 %v1943
    %2383 = vmatpush1.bf16.msra.mxu0 %v1942
    %2384 = vmatprep.subr.bf16.mxu0 %v1951
    %2385 = vmatpush1.bf16.msra.mxu0 %v1950
    %2386 = vmatprep.subr.bf16.mxu0 %v1959
    %2387 = vmatpush1.bf16.msra.mxu0 %v1958
    %2388 = vmatprep.subr.bf16.mxu0 %v1967
    %2389 = vmatpush1.bf16.msra.mxu0 %v1966
    %2390 = vmatprep.mubr.bf16.mxu0 %v777
    %2391 = vmatmul.mubr.bf16.gmra.mrb[0].mxu0 %v776
    %v2392 = vpop.f32.mrb[0].mxu0
    %v2393 = vadd.f32 %v1041, %v2392
    %v2394 = vpop.f32.mrb[0].mxu0
    %v2395 = vadd.f32 %v1045, %v2394
    %v2396 = vpop.f32.mrb[0].mxu0
    %v2397 = vadd.f32 %v1041, %v2396
    %v2398 = vpop.f32.mrb[0].mxu0
    %v2399 = vadd.f32 %v1045, %v2398
    %2400 = vdwg.mxu0
    %2401 = vmatprep.subr.bf16.mxu0 %v1975
    %2402 = vmatpush1.bf16.msra.mxu0 %v1974
    %2403 = vmatprep.subr.bf16.mxu0 %v1983
    %2404 = vmatpush1.bf16.msra.mxu0 %v1982
    %2405 = vmatprep.subr.bf16.mxu0 %v1991
    %2406 = vmatpush1.bf16.msra.mxu0 %v1990
    %2407 = vmatprep.subr.bf16.mxu0 %v1999
    %2408 = vmatpush1.bf16.msra.mxu0 %v1998
    %2409 = vmatprep.subr.bf16.mxu0 %v2007
    %2410 = vmatpush1.bf16.msra.mxu0 %v2006
    %2411 = vmatprep.subr.bf16.mxu0 %v2015
    %2412 = vmatpush1.bf16.msra.mxu0 %v2014
    %2413 = vmatprep.subr.bf16.mxu0 %v2023
    %2414 = vmatpush1.bf16.msra.mxu0 %v2022
    %2415 = vmatprep.subr.bf16.mxu0 %v2031
    %2416 = vmatpush1.bf16.msra.mxu0 %v2030
    %2417 = vmatprep.subr.bf16.mxu0 %v2039
    %2418 = vmatpush1.bf16.msra.mxu0 %v2038
    %2419 = vmatprep.subr.bf16.mxu0 %v2047
    %2420 = vmatpush1.bf16.msra.mxu0 %v2046
    %2421 = vmatprep.subr.bf16.mxu0 %v2055
    %2422 = vmatpush1.bf16.msra.mxu0 %v2054
    %2423 = vmatprep.subr.bf16.mxu0 %v2063
    %2424 = vmatpush1.bf16.msra.mxu0 %v2062
    %2425 = vmatprep.subr.bf16.mxu0 %v2071
    %2426 = vmatpush1.bf16.msra.mxu0 %v2070
    %2427 = vmatprep.subr.bf16.mxu0 %v2079
    %2428 = vmatpush1.bf16.msra.mxu0 %v2078
    %2429 = vmatprep.subr.bf16.mxu0 %v2087
    %2430 = vmatpush1.bf16.msra.mxu0 %v2086
    %2431 = vmatprep.subr.bf16.mxu0 %v2095
    %2432 = vmatpush1.bf16.msra.mxu0 %v2094
    %2433 = vmatprep.mubr.bf16.mxu0 %v779
    %2434 = vmatmul.mubr.bf16.gmra.mrb[0].mxu0 %v778
    %v2435 = vpop.f32.mrb[0].mxu0
    %v2436 = vadd.f32 %v2393, %v2435
    %v2437 = vpop.f32.mrb[0].mxu0
    %v2438 = vadd.f32 %v2395, %v2437
    %v2439 = vpop.f32.mrb[0].mxu0
    %v2440 = vadd.f32 %v2397, %v2439
    %v2441 = vpop.f32.mrb[0].mxu0
    %v2442 = vadd.f32 %v2399, %v2441
    %2443 = vdwg.mxu0
    %2444 = vmatprep.subr.bf16.mxu0 %v1849
    %2445 = vmatpush1.bf16.msra.mxu0 %v1848
    %2446 = vmatprep.subr.bf16.mxu0 %v1857
    %2447 = vmatpush1.bf16.msra.mxu0 %v1856
    %2448 = vmatprep.subr.bf16.mxu0 %v1865
    %2449 = vmatpush1.bf16.msra.mxu0 %v1864
    %2450 = vmatprep.subr.bf16.mxu0 %v1873
    %2451 = vmatpush1.bf16.msra.mxu0 %v1872
    %2452 = vmatprep.subr.bf16.mxu0 %v1881
    %2453 = vmatpush1.bf16.msra.mxu0 %v1880
    %2454 = vmatprep.subr.bf16.mxu0 %v1889
    %2455 = vmatpush1.bf16.msra.mxu0 %v1888
    %2456 = vmatprep.subr.bf16.mxu0 %v1897
    %2457 = vmatpush1.bf16.msra.mxu0 %v1896
    %2458 = vmatprep.subr.bf16.mxu0 %v1905
    %2459 = vmatpush1.bf16.msra.mxu0 %v1904
    %2460 = vmatprep.subr.bf16.mxu0 %v1913
    %2461 = vmatpush1.bf16.msra.mxu0 %v1912
    %2462 = vmatprep.subr.bf16.mxu0 %v1921
    %2463 = vmatpush1.bf16.msra.mxu0 %v1920
    %2464 = vmatprep.subr.bf16.mxu0 %v1929
    %2465 = vmatpush1.bf16.msra.mxu0 %v1928
    %2466 = vmatprep.subr.bf16.mxu0 %v1937
    %2467 = vmatpush1.bf16.msra.mxu0 %v1936
    %2468 = vmatprep.subr.bf16.mxu0 %v1945
    %2469 = vmatpush1.bf16.msra.mxu0 %v1944
    %2470 = vmatprep.subr.bf16.mxu0 %v1953
    %2471 = vmatpush1.bf16.msra.mxu0 %v1952
    %2472 = vmatprep.subr.bf16.mxu0 %v1961
    %2473 = vmatpush1.bf16.msra.mxu0 %v1960
    %2474 = vmatprep.subr.bf16.mxu0 %v1969
    %2475 = vmatpush1.bf16.msra.mxu0 %v1968
    %2476 = vmatprep.mubr.bf16.mxu0 %v777
    %2477 = vmatmul.mubr.bf16.gmra.mrb[0].mxu0 %v776
    %v2478 = vpop.f32.mrb[0].mxu0
    %v2479 = vadd.f32 %v1049, %v2478
    %v2480 = vpop.f32.mrb[0].mxu0
    %v2481 = vadd.f32 %v1053, %v2480
    %v2482 = vpop.f32.mrb[0].mxu0
    %v2483 = vadd.f32 %v1049, %v2482
    %v2484 = vpop.f32.mrb[0].mxu0
    %v2485 = vadd.f32 %v1053, %v2484
    %2486 = vdwg.mxu0
    %2487 = vmatprep.subr.bf16.mxu0 %v1977
    %2488 = vmatpush1.bf16.msra.mxu0 %v1976
    %2489 = vmatprep.subr.bf16.mxu0 %v1985
    %2490 = vmatpush1.bf16.msra.mxu0 %v1984
    %2491 = vmatprep.subr.bf16.mxu0 %v1993
    %2492 = vmatpush1.bf16.msra.mxu0 %v1992
    %2493 = vmatprep.subr.bf16.mxu0 %v2001
    %2494 = vmatpush1.bf16.msra.mxu0 %v2000
    %2495 = vmatprep.subr.bf16.mxu0 %v2009
    %2496 = vmatpush1.bf16.msra.mxu0 %v2008
    %2497 = vmatprep.subr.bf16.mxu0 %v2017
    %2498 = vmatpush1.bf16.msra.mxu0 %v2016
    %2499 = vmatprep.subr.bf16.mxu0 %v2025
    %2500 = vmatpush1.bf16.msra.mxu0 %v2024
    %2501 = vmatprep.subr.bf16.mxu0 %v2033
    %2502 = vmatpush1.bf16.msra.mxu0 %v2032
    %2503 = vmatprep.subr.bf16.mxu0 %v2041
    %2504 = vmatpush1.bf16.msra.mxu0 %v2040
    %2505 = vmatprep.subr.bf16.mxu0 %v2049
    %2506 = vmatpush1.bf16.msra.mxu0 %v2048
    %2507 = vmatprep.subr.bf16.mxu0 %v2057
    %2508 = vmatpush1.bf16.msra.mxu0 %v2056
    %2509 = vmatprep.subr.bf16.mxu0 %v2065
    %2510 = vmatpush1.bf16.msra.mxu0 %v2064
    %2511 = vmatprep.subr.bf16.mxu0 %v2073
    %2512 = vmatpush1.bf16.msra.mxu0 %v2072
    %2513 = vmatprep.subr.bf16.mxu0 %v2081
    %2514 = vmatpush1.bf16.msra.mxu0 %v2080
    %2515 = vmatprep.subr.bf16.mxu0 %v2089
    %2516 = vmatpush1.bf16.msra.mxu0 %v2088
    %2517 = vmatprep.subr.bf16.mxu0 %v2097
    %2518 = vmatpush1.bf16.msra.mxu0 %v2096
    %2519 = vmatprep.mubr.bf16.mxu0 %v779
    %2520 = vmatmul.mubr.bf16.gmra.mrb[0].mxu0 %v778
    %v2521 = vpop.f32.mrb[0].mxu0
    %v2522 = vadd.f32 %v2479, %v2521
    %v2523 = vpop.f32.mrb[0].mxu0
    %v2524 = vadd.f32 %v2481, %v2523
    %v2525 = vpop.f32.mrb[0].mxu0
    %v2526 = vadd.f32 %v2483, %v2525
    %v2527 = vpop.f32.mrb[0].mxu0
    %v2528 = vadd.f32 %v2485, %v2527
    %2529 = vdwg.mxu0
    %2530 = vmatprep.subr.bf16.mxu0 %v1851
    %2531 = vmatpush1.bf16.msra.mxu0 %v1850
    %2532 = vmatprep.subr.bf16.mxu0 %v1859
    %2533 = vmatpush1.bf16.msra.mxu0 %v1858
    %2534 = vmatprep.subr.bf16.mxu0 %v1867
    %2535 = vmatpush1.bf16.msra.mxu0 %v1866
    %2536 = vmatprep.subr.bf16.mxu0 %v1875
    %2537 = vmatpush1.bf16.msra.mxu0 %v1874
    %2538 = vmatprep.subr.bf16.mxu0 %v1883
    %2539 = vmatpush1.bf16.msra.mxu0 %v1882
    %2540 = vmatprep.subr.bf16.mxu0 %v1891
    %2541 = vmatpush1.bf16.msra.mxu0 %v1890
    %2542 = vmatprep.subr.bf16.mxu0 %v1899
    %2543 = vmatpush1.bf16.msra.mxu0 %v1898
    %2544 = vmatprep.subr.bf16.mxu0 %v1907
    %2545 = vmatpush1.bf16.msra.mxu0 %v1906
    %2546 = vmatprep.subr.bf16.mxu0 %v1915
    %2547 = vmatpush1.bf16.msra.mxu0 %v1914
    %2548 = vmatprep.subr.bf16.mxu0 %v1923
    %2549 = vmatpush1.bf16.msra.mxu0 %v1922
    %2550 = vmatprep.subr.bf16.mxu0 %v1931
    %2551 = vmatpush1.bf16.msra.mxu0 %v1930
    %2552 = vmatprep.subr.bf16.mxu0 %v1939
    %2553 = vmatpush1.bf16.msra.mxu0 %v1938
    %2554 = vmatprep.subr.bf16.mxu0 %v1947
    %2555 = vmatpush1.bf16.msra.mxu0 %v1946
    %2556 = vmatprep.subr.bf16.mxu0 %v1955
    %2557 = vmatpush1.bf16.msra.mxu0 %v1954
    %2558 = vmatprep.subr.bf16.mxu0 %v1963
    %2559 = vmatpush1.bf16.msra.mxu0 %v1962
    %2560 = vmatprep.subr.bf16.mxu0 %v1971
    %2561 = vmatpush1.bf16.msra.mxu0 %v1970
    %2562 = vmatprep.mubr.bf16.mxu0 %v777
    %2563 = vmatmul.mubr.bf16.gmra.mrb[0].mxu0 %v776
    %v2564 = vpop.f32.mrb[0].mxu0
    %v2565 = vadd.f32 %v1057, %v2564
    %v2566 = vpop.f32.mrb[0].mxu0
    %v2567 = vadd.f32 %v1061, %v2566
    %v2568 = vpop.f32.mrb[0].mxu0
    %v2569 = vadd.f32 %v1057, %v2568
    %v2570 = vpop.f32.mrb[0].mxu0
    %v2571 = vadd.f32 %v1061, %v2570
    %2572 = vdwg.mxu0
    %2573 = vmatprep.subr.bf16.mxu0 %v1979
    %2574 = vmatpush1.bf16.msra.mxu0 %v1978
    %2575 = vmatprep.subr.bf16.mxu0 %v1987
    %2576 = vmatpush1.bf16.msra.mxu0 %v1986
    %2577 = vmatprep.subr.bf16.mxu0 %v1995
    %2578 = vmatpush1.bf16.msra.mxu0 %v1994
    %2579 = vmatprep.subr.bf16.mxu0 %v2003
    %2580 = vmatpush1.bf16.msra.mxu0 %v2002
    %2581 = vmatprep.subr.bf16.mxu0 %v2011
    %2582 = vmatpush1.bf16.msra.mxu0 %v2010
    %2583 = vmatprep.subr.bf16.mxu0 %v2019
    %2584 = vmatpush1.bf16.msra.mxu0 %v2018
    %2585 = vmatprep.subr.bf16.mxu0 %v2027
    %2586 = vmatpush1.bf16.msra.mxu0 %v2026
    %2587 = vmatprep.subr.bf16.mxu0 %v2035
    %2588 = vmatpush1.bf16.msra.mxu0 %v2034
    %2589 = vmatprep.subr.bf16.mxu0 %v2043
    %2590 = vmatpush1.bf16.msra.mxu0 %v2042
    %2591 = vmatprep.subr.bf16.mxu0 %v2051
    %2592 = vmatpush1.bf16.msra.mxu0 %v2050
    %2593 = vmatprep.subr.bf16.mxu0 %v2059
    %2594 = vmatpush1.bf16.msra.mxu0 %v2058
    %2595 = vmatprep.subr.bf16.mxu0 %v2067
    %2596 = vmatpush1.bf16.msra.mxu0 %v2066
    %2597 = vmatprep.subr.bf16.mxu0 %v2075
    %2598 = vmatpush1.bf16.msra.mxu0 %v2074
    %2599 = vmatprep.subr.bf16.mxu0 %v2083
    %2600 = vmatpush1.bf16.msra.mxu0 %v2082
    %2601 = vmatprep.subr.bf16.mxu0 %v2091
    %2602 = vmatpush1.bf16.msra.mxu0 %v2090
    %2603 = vmatprep.subr.bf16.mxu0 %v2099
    %2604 = vmatpush1.bf16.msra.mxu0 %v2098
    %2605 = vmatprep.mubr.bf16.mxu0 %v779
    %2606 = vmatmul.mubr.bf16.gmra.mrb[0].mxu0 %v778
    %v2607 = vpop.f32.mrb[0].mxu0
    %v2608 = vadd.f32 %v2565, %v2607
    %v2609 = vpop.f32.mrb[0].mxu0
    %v2610 = vadd.f32 %v2567, %v2609
    %v2611 = vpop.f32.mrb[0].mxu0
    %v2612 = vadd.f32 %v2569, %v2611
    %v2613 = vpop.f32.mrb[0].mxu0
    %v2614 = vadd.f32 %v2571, %v2613
    %2615 = vdwg.mxu0
    %2616 = vmatprep.subr.bf16.mxu0 %v1853
    %2617 = vmatpush1.bf16.msra.mxu0 %v1852
    %2618 = vmatprep.subr.bf16.mxu0 %v1861
    %2619 = vmatpush1.bf16.msra.mxu0 %v1860
    %2620 = vmatprep.subr.bf16.mxu0 %v1869
    %2621 = vmatpush1.bf16.msra.mxu0 %v1868
    %2622 = vmatprep.subr.bf16.mxu0 %v1877
    %2623 = vmatpush1.bf16.msra.mxu0 %v1876
    %2624 = vmatprep.subr.bf16.mxu0 %v1885
    %2625 = vmatpush1.bf16.msra.mxu0 %v1884
    %2626 = vmatprep.subr.bf16.mxu0 %v1893
    %2627 = vmatpush1.bf16.msra.mxu0 %v1892
    %2628 = vmatprep.subr.bf16.mxu0 %v1901
    %2629 = vmatpush1.bf16.msra.mxu0 %v1900
    %2630 = vmatprep.subr.bf16.mxu0 %v1909
    %2631 = vmatpush1.bf16.msra.mxu0 %v1908
    %2632 = vmatprep.subr.bf16.mxu0 %v1917
    %2633 = vmatpush1.bf16.msra.mxu0 %v1916
    %2634 = vmatprep.subr.bf16.mxu0 %v1925
    %2635 = vmatpush1.bf16.msra.mxu0 %v1924
    %2636 = vmatprep.subr.bf16.mxu0 %v1933
    %2637 = vmatpush1.bf16.msra.mxu0 %v1932
    %2638 = vmatprep.subr.bf16.mxu0 %v1941
    %2639 = vmatpush1.bf16.msra.mxu0 %v1940
    %2640 = vmatprep.subr.bf16.mxu0 %v1949
    %2641 = vmatpush1.bf16.msra.mxu0 %v1948
    %2642 = vmatprep.subr.bf16.mxu0 %v1957
    %2643 = vmatpush1.bf16.msra.mxu0 %v1956
    %2644 = vmatprep.subr.bf16.mxu0 %v1965
    %2645 = vmatpush1.bf16.msra.mxu0 %v1964
    %2646 = vmatprep.subr.bf16.mxu0 %v1973
    %2647 = vmatpush1.bf16.msra.mxu0 %v1972
    %2648 = vmatprep.mubr.bf16.mxu0 %v777
    %2649 = vmatmul.mubr.bf16.gmra.mrb[0].mxu0 %v776
    %v2650 = vpop.f32.mrb[0].mxu0
    %v2651 = vadd.f32 %v1065, %v2650
    %v2652 = vpop.f32.mrb[0].mxu0
    %v2653 = vadd.f32 %v1069, %v2652
    %v2654 = vpop.f32.mrb[0].mxu0
    %v2655 = vadd.f32 %v1065, %v2654
    %v2656 = vpop.f32.mrb[0].mxu0
    %v2657 = vadd.f32 %v1069, %v2656
    %2658 = vdwg.mxu0
    %2659 = vmatprep.subr.bf16.mxu0 %v1981
    %2660 = vmatpush1.bf16.msra.mxu0 %v1980
    %2661 = vmatprep.subr.bf16.mxu0 %v1989
    %2662 = vmatpush1.bf16.msra.mxu0 %v1988
    %2663 = vmatprep.subr.bf16.mxu0 %v1997
    %2664 = vmatpush1.bf16.msra.mxu0 %v1996
    %2665 = vmatprep.subr.bf16.mxu0 %v2005
    %2666 = vmatpush1.bf16.msra.mxu0 %v2004
    %2667 = vmatprep.subr.bf16.mxu0 %v2013
    %2668 = vmatpush1.bf16.msra.mxu0 %v2012
    %2669 = vmatprep.subr.bf16.mxu0 %v2021
    %2670 = vmatpush1.bf16.msra.mxu0 %v2020
    %2671 = vmatprep.subr.bf16.mxu0 %v2029
    %2672 = vmatpush1.bf16.msra.mxu0 %v2028
    %2673 = vmatprep.subr.bf16.mxu0 %v2037
    %2674 = vmatpush1.bf16.msra.mxu0 %v2036
    %2675 = vmatprep.subr.bf16.mxu0 %v2045
    %2676 = vmatpush1.bf16.msra.mxu0 %v2044
    %2677 = vmatprep.subr.bf16.mxu0 %v2053
    %2678 = vmatpush1.bf16.msra.mxu0 %v2052
    %2679 = vmatprep.subr.bf16.mxu0 %v2061
    %2680 = vmatpush1.bf16.msra.mxu0 %v2060
    %2681 = vmatprep.subr.bf16.mxu0 %v2069
    %2682 = vmatpush1.bf16.msra.mxu0 %v2068
    %2683 = vmatprep.subr.bf16.mxu0 %v2077
    %2684 = vmatpush1.bf16.msra.mxu0 %v2076
    %2685 = vmatprep.subr.bf16.mxu0 %v2085
    %2686 = vmatpush1.bf16.msra.mxu0 %v2084
    %2687 = vmatprep.subr.bf16.mxu0 %v2093
    %2688 = vmatpush1.bf16.msra.mxu0 %v2092
    %2689 = vmatprep.subr.bf16.mxu0 %v2101
    %2690 = vmatpush1.bf16.msra.mxu0 %v2100
    %2691 = vmatprep.mubr.bf16.mxu0 %v779
    %2692 = vmatmul.mubr.bf16.gmra.mrb[0].mxu0 %v778
    %v2693 = vpop.f32.mrb[0].mxu0
    %v2694 = vadd.f32 %v2651, %v2693
    %v2695 = vpop.f32.mrb[0].mxu0
    %v2696 = vadd.f32 %v2653, %v2695
    %v2697 = vpop.f32.mrb[0].mxu0
    %v2698 = vadd.f32 %v2655, %v2697
    %v2699 = vpop.f32.mrb[0].mxu0
    %v2700 = vadd.f32 %v2657, %v2699
    %2701 = vdwg.mxu0
    %v2702 = vmul.f32 %v2436, 0.2
    %v2703 = vmul.f32 %v2438, 0.2
    %v2704 = vmul.f32 %v2522, 0.2
    %v2705 = vmul.f32 %v2524, 0.2
    %v2706 = vmul.f32 %v2608, 0.2
    %v2707 = vmul.f32 %v2610, 0.2
    %v2708 = vmul.f32 %v2694, 0.2
    %v2709 = vmul.f32 %v2696, 0.2
    %v2710 = vmul.f32 %v2440, 0.2
    %v2711 = vmul.f32 %v2442, 0.2
    %v2712 = vmul.f32 %v2526, 0.2
    %v2713 = vmul.f32 %v2528, 0.2
    %v2714 = vmul.f32 %v2612, 0.2
    %v2715 = vmul.f32 %v2614, 0.2
    %v2716 = vmul.f32 %v2698, 0.2
    %v2717 = vmul.f32 %v2700, 0.2
    %v2718 = vmax.f32 %v2436, %v2702
    %v2719 = vmax.f32 %v2438, %v2703
    %v2720 = vmax.f32 %v2522, %v2704
    %v2721 = vmax.f32 %v2524, %v2705
    %v2722 = vmax.f32 %v2608, %v2706
    %v2723 = vmax.f32 %v2610, %v2707
    %v2724 = vmax.f32 %v2694, %v2708
    %v2725 = vmax.f32 %v2696, %v2709
    %v2726 = vmax.f32 %v2440, %v2710
    %v2727 = vmax.f32 %v2442, %v2711
    %v2728 = vmax.f32 %v2526, %v2712
    %v2729 = vmax.f32 %v2528, %v2713
    %v2730 = vmax.f32 %v2612, %v2714
    %v2731 = vmax.f32 %v2614, %v2715
    %v2732 = vmax.f32 %v2698, %v2716
    %v2733 = vmax.f32 %v2700, %v2717
    %v2734 = vpack.c.bf16 %v2726, %v2718
    %v2735 = vpack.c.bf16 %v2727, %v2719
    %v2736 = vpack.c.bf16 %v2728, %v2720
    %v2737 = vpack.c.bf16 %v2729, %v2721
    %v2738 = vpack.c.bf16 %v2730, %v2722
    %v2739 = vpack.c.bf16 %v2731, %v2723
    %v2740 = vpack.c.bf16 %v2732, %v2724
    %v2741 = vpack.c.bf16 %v2733, %v2725
    %v2742 = vld [vmem:[#allocation14] sm:$0xff]
    %v2743 = vld [vmem:[#allocation14 + $0x8] sm:$0xff]
    %v2744 = vld [vmem:[#allocation14 + $0x10] sm:$0xff]
    %v2745 = vld [vmem:[#allocation14 + $0x18] sm:$0xf]
    %v2746 = vld [vmem:[#allocation14 + $0x1c] sm:$0xff]
    %v2747 = vld [vmem:[#allocation14 + $0x24] sm:$0xff]
    %v2748 = vld [vmem:[#allocation14 + $0x2c] sm:$0xff]
    %v2749 = vld [vmem:[#allocation14 + $0x34] sm:$0xf]
    %v2750 = vld [vmem:[#allocation14 + $0x38] sm:$0xff]
    %v2751 = vld [vmem:[#allocation14 + $0x40] sm:$0xff]
    %v2752 = vld [vmem:[#allocation14 + $0x48] sm:$0xff]
    %v2753 = vld [vmem:[#allocation14 + $0x50] sm:$0xf]
    %v2754 = vld [vmem:[#allocation14 + $0x54] sm:$0xff]
    %v2755 = vld [vmem:[#allocation14 + $0x5c] sm:$0xff]
    %v2756 = vld [vmem:[#allocation14 + $0x64] sm:$0xff]
    %v2757 = vld [vmem:[#allocation14 + $0x6c] sm:$0xf]
    %v2758 = vld [vmem:[#allocation14 + $0x70] sm:$0xff]
    %v2759 = vld [vmem:[#allocation14 + $0x78] sm:$0xff]
    %v2760 = vld [vmem:[#allocation14 + $0x80] sm:$0xff]
    %v2761 = vld [vmem:[#allocation14 + $0x88] sm:$0xf]
    %v2762 = vld [vmem:[#allocation14 + $0x8c] sm:$0xff]
    %v2763 = vld [vmem:[#allocation14 + $0x94] sm:$0xff]
    %v2764 = vld [vmem:[#allocation14 + $0x9c] sm:$0xff]
    %v2765 = vld [vmem:[#allocation14 + $0xa4] sm:$0xf]
    %v2766 = vld [vmem:[#allocation14 + $0xa8] sm:$0xff]
    %v2767 = vld [vmem:[#allocation14 + $0xb0] sm:$0xff]
    %v2768 = vld [vmem:[#allocation14 + $0xb8] sm:$0xff]
    %v2769 = vld [vmem:[#allocation14 + $0xc0] sm:$0xf]
    %v2770 = vld [vmem:[#allocation14 + $0xc4] sm:$0xff]
    %v2771 = vld [vmem:[#allocation14 + $0xcc] sm:$0xff]
    %v2772 = vld [vmem:[#allocation14 + $0xd4] sm:$0xff]
    %v2773 = vld [vmem:[#allocation14 + $0xdc] sm:$0xf]
    %v2774 = vld [vmem:[#allocation14 + $0xe0] sm:$0xff]
    %v2775 = vld [vmem:[#allocation14 + $0xe8] sm:$0xff]
    %v2776 = vld [vmem:[#allocation14 + $0xf0] sm:$0xff]
    %v2777 = vld [vmem:[#allocation14 + $0xf8] sm:$0xf]
    %v2778 = vld [vmem:[#allocation14 + $0xfc] sm:$0xff]
    %v2779 = vld [vmem:[#allocation14 + $0x104] sm:$0xff]
    %v2780 = vld [vmem:[#allocation14 + $0x10c] sm:$0xff]
    %v2781 = vld [vmem:[#allocation14 + $0x114] sm:$0xf]
    %v2782 = vld [vmem:[#allocation14 + $0x118] sm:$0xff]
    %v2783 = vld [vmem:[#allocation14 + $0x120] sm:$0xff]
    %v2784 = vld [vmem:[#allocation14 + $0x128] sm:$0xff]
    %v2785 = vld [vmem:[#allocation14 + $0x130] sm:$0xf]
    %v2786 = vld [vmem:[#allocation14 + $0x134] sm:$0xff]
    %v2787 = vld [vmem:[#allocation14 + $0x13c] sm:$0xff]
    %v2788 = vld [vmem:[#allocation14 + $0x144] sm:$0xff]
    %v2789 = vld [vmem:[#allocation14 + $0x14c] sm:$0xf]
    %v2790 = vld [vmem:[#allocation14 + $0x150] sm:$0xff]
    %v2791 = vld [vmem:[#allocation14 + $0x158] sm:$0xff]
    %v2792 = vld [vmem:[#allocation14 + $0x160] sm:$0xff]
    %v2793 = vld [vmem:[#allocation14 + $0x168] sm:$0xf]
    %v2794 = vld [vmem:[#allocation14 + $0x16c] sm:$0xff]
    %v2795 = vld [vmem:[#allocation14 + $0x174] sm:$0xff]
    %v2796 = vld [vmem:[#allocation14 + $0x17c] sm:$0xff]
    %v2797 = vld [vmem:[#allocation14 + $0x184] sm:$0xf]
    %v2798 = vld [vmem:[#allocation14 + $0x188] sm:$0xff]
    %v2799 = vld [vmem:[#allocation14 + $0x190] sm:$0xff]
    %v2800 = vld [vmem:[#allocation14 + $0x198] sm:$0xff]
    %v2801 = vld [vmem:[#allocation14 + $0x1a0] sm:$0xf]
    %v2802 = vld [vmem:[#allocation14 + $0x1a4] sm:$0xff]
    %v2803 = vld [vmem:[#allocation14 + $0x1ac] sm:$0xff]
    %v2804 = vld [vmem:[#allocation14 + $0x1b4] sm:$0xff]
    %v2805 = vld [vmem:[#allocation14 + $0x1bc] sm:$0xf]
    %v2806 = vld [vmem:[#allocation14 + $0x1c0] sm:$0xff]
    %v2807 = vld [vmem:[#allocation14 + $0x1c8] sm:$0xff]
    %v2808 = vld [vmem:[#allocation14 + $0x1d0] sm:$0xff]
    %v2809 = vld [vmem:[#allocation14 + $0x1d8] sm:$0xf]
    %v2810 = vld [vmem:[#allocation14 + $0x1dc] sm:$0xff]
    %v2811 = vld [vmem:[#allocation14 + $0x1e4] sm:$0xff]
    %v2812 = vld [vmem:[#allocation14 + $0x1ec] sm:$0xff]
    %v2813 = vld [vmem:[#allocation14 + $0x1f4] sm:$0xf]
    %v2814 = vld [vmem:[#allocation14 + $0x1f8] sm:$0xff]
    %v2815 = vld [vmem:[#allocation14 + $0x200] sm:$0xff]
    %v2816 = vld [vmem:[#allocation14 + $0x208] sm:$0xff]
    %v2817 = vld [vmem:[#allocation14 + $0x210] sm:$0xf]
    %v2818 = vld [vmem:[#allocation14 + $0x214] sm:$0xff]
    %v2819 = vld [vmem:[#allocation14 + $0x21c] sm:$0xff]
    %v2820 = vld [vmem:[#allocation14 + $0x224] sm:$0xff]
    %v2821 = vld [vmem:[#allocation14 + $0x22c] sm:$0xf]
    %v2822 = vld [vmem:[#allocation14 + $0x230] sm:$0xff]
    %v2823 = vld [vmem:[#allocation14 + $0x238] sm:$0xff]
    %v2824 = vld [vmem:[#allocation14 + $0x240] sm:$0xff]
    %v2825 = vld [vmem:[#allocation14 + $0x248] sm:$0xf]
    %v2826 = vld [vmem:[#allocation14 + $0x24c] sm:$0xff]
    %v2827 = vld [vmem:[#allocation14 + $0x254] sm:$0xff]
    %v2828 = vld [vmem:[#allocation14 + $0x25c] sm:$0xff]
    %v2829 = vld [vmem:[#allocation14 + $0x264] sm:$0xf]
    %v2830 = vld [vmem:[#allocation14 + $0x268] sm:$0xff]
    %v2831 = vld [vmem:[#allocation14 + $0x270] sm:$0xff]
    %v2832 = vld [vmem:[#allocation14 + $0x278] sm:$0xff]
    %v2833 = vld [vmem:[#allocation14 + $0x280] sm:$0xf]
    %v2834 = vld [vmem:[#allocation14 + $0x284] sm:$0xff]
    %v2835 = vld [vmem:[#allocation14 + $0x28c] sm:$0xff]
    %v2836 = vld [vmem:[#allocation14 + $0x294] sm:$0xff]
    %v2837 = vld [vmem:[#allocation14 + $0x29c] sm:$0xf]
    %v2838 = vld [vmem:[#allocation14 + $0x2a0] sm:$0xff]
    %v2839 = vld [vmem:[#allocation14 + $0x2a8] sm:$0xff]
    %v2840 = vld [vmem:[#allocation14 + $0x2b0] sm:$0xff]
    %v2841 = vld [vmem:[#allocation14 + $0x2b8] sm:$0xf]
    %v2842 = vld [vmem:[#allocation14 + $0x2bc] sm:$0xff]
    %v2843 = vld [vmem:[#allocation14 + $0x2c4] sm:$0xff]
    %v2844 = vld [vmem:[#allocation14 + $0x2cc] sm:$0xff]
    %v2845 = vld [vmem:[#allocation14 + $0x2d4] sm:$0xf]
    %v2846 = vld [vmem:[#allocation14 + $0x2d8] sm:$0xff]
    %v2847 = vld [vmem:[#allocation14 + $0x2e0] sm:$0xff]
    %v2848 = vld [vmem:[#allocation14 + $0x2e8] sm:$0xff]
    %v2849 = vld [vmem:[#allocation14 + $0x2f0] sm:$0xf]
    %v2850 = vld [vmem:[#allocation14 + $0x2f4] sm:$0xff]
    %v2851 = vld [vmem:[#allocation14 + $0x2fc] sm:$0xff]
    %v2852 = vld [vmem:[#allocation14 + $0x304] sm:$0xff]
    %v2853 = vld [vmem:[#allocation14 + $0x30c] sm:$0xf]
    %v2854 = vld [vmem:[#allocation14 + $0x310] sm:$0xff]
    %v2855 = vld [vmem:[#allocation14 + $0x318] sm:$0xff]
    %v2856 = vld [vmem:[#allocation14 + $0x320] sm:$0xff]
    %v2857 = vld [vmem:[#allocation14 + $0x328] sm:$0xf]
    %v2858 = vld [vmem:[#allocation14 + $0x32c] sm:$0xff]
    %v2859 = vld [vmem:[#allocation14 + $0x334] sm:$0xff]
    %v2860 = vld [vmem:[#allocation14 + $0x33c] sm:$0xff]
    %v2861 = vld [vmem:[#allocation14 + $0x344] sm:$0xf]
    %v2862 = vld [vmem:[#allocation14 + $0x348] sm:$0xff]
    %v2863 = vld [vmem:[#allocation14 + $0x350] sm:$0xff]
    %v2864 = vld [vmem:[#allocation14 + $0x358] sm:$0xff]
    %v2865 = vld [vmem:[#allocation14 + $0x360] sm:$0xf]
    %v2866 = vld [vmem:[#allocation14 + $0x364] sm:$0xff]
    %v2867 = vld [vmem:[#allocation14 + $0x36c] sm:$0xff]
    %v2868 = vld [vmem:[#allocation14 + $0x374] sm:$0xff]
    %v2869 = vld [vmem:[#allocation14 + $0x37c] sm:$0xf]
    %v2870 = vld [vmem:[#allocation14 + $0x380] sm:$0xff]
    %v2871 = vld [vmem:[#allocation14 + $0x388] sm:$0xff]
    %v2872 = vld [vmem:[#allocation14 + $0x390] sm:$0xff]
    %v2873 = vld [vmem:[#allocation14 + $0x398] sm:$0xf]
    %v2874 = vld [vmem:[#allocation14 + $0x39c] sm:$0xff]
    %v2875 = vld [vmem:[#allocation14 + $0x3a4] sm:$0xff]
    %v2876 = vld [vmem:[#allocation14 + $0x3ac] sm:$0xff]
    %v2877 = vld [vmem:[#allocation14 + $0x3b4] sm:$0xf]
    %v2878 = vld [vmem:[#allocation14 + $0x3b8] sm:$0xff]
    %v2879 = vld [vmem:[#allocation14 + $0x3c0] sm:$0xff]
    %v2880 = vld [vmem:[#allocation14 + $0x3c8] sm:$0xff]
    %v2881 = vld [vmem:[#allocation14 + $0x3d0] sm:$0xf]
    %v2882 = vld [vmem:[#allocation14 + $0x3d4] sm:$0xff]
    %v2883 = vld [vmem:[#allocation14 + $0x3dc] sm:$0xff]
    %v2884 = vld [vmem:[#allocation14 + $0x3e4] sm:$0xff]
    %v2885 = vld [vmem:[#allocation14 + $0x3ec] sm:$0xf]
    %v2886 = vld [vmem:[#allocation14 + $0x3f0] sm:$0xff]
    %v2887 = vld [vmem:[#allocation14 + $0x3f8] sm:$0xff]
    %v2888 = vld [vmem:[#allocation14 + $0x400] sm:$0xff]
    %v2889 = vld [vmem:[#allocation14 + $0x408] sm:$0xf]
    %v2890 = vld [vmem:[#allocation14 + $0x40c] sm:$0xff]
    %v2891 = vld [vmem:[#allocation14 + $0x414] sm:$0xff]
    %v2892 = vld [vmem:[#allocation14 + $0x41c] sm:$0xff]
    %v2893 = vld [vmem:[#allocation14 + $0x424] sm:$0xf]
    %v2894 = vld [vmem:[#allocation14 + $0x428] sm:$0xff]
    %v2895 = vld [vmem:[#allocation14 + $0x430] sm:$0xff]
    %v2896 = vld [vmem:[#allocation14 + $0x438] sm:$0xff]
    %v2897 = vld [vmem:[#allocation14 + $0x440] sm:$0xf]
    %v2898 = vld [vmem:[#allocation14 + $0x444] sm:$0xff]
    %v2899 = vld [vmem:[#allocation14 + $0x44c] sm:$0xff]
    %v2900 = vld [vmem:[#allocation14 + $0x454] sm:$0xff]
    %v2901 = vld [vmem:[#allocation14 + $0x45c] sm:$0xf]
    %v2902 = vld [vmem:[#allocation14 + $0x460] sm:$0xff]
    %v2903 = vld [vmem:[#allocation14 + $0x468] sm:$0xff]
    %v2904 = vld [vmem:[#allocation14 + $0x470] sm:$0xff]
    %v2905 = vld [vmem:[#allocation14 + $0x478] sm:$0xf]
    %v2906 = vld [vmem:[#allocation14 + $0x47c] sm:$0xff]
    %v2907 = vld [vmem:[#allocation14 + $0x484] sm:$0xff]
    %v2908 = vld [vmem:[#allocation14 + $0x48c] sm:$0xff]
    %v2909 = vld [vmem:[#allocation14 + $0x494] sm:$0xf]
    %v2910 = vld [vmem:[#allocation14 + $0x498] sm:$0xff]
    %v2911 = vld [vmem:[#allocation14 + $0x4a0] sm:$0xff]
    %v2912 = vld [vmem:[#allocation14 + $0x4a8] sm:$0xff]
    %v2913 = vld [vmem:[#allocation14 + $0x4b0] sm:$0xf]
    %v2914 = vld [vmem:[#allocation14 + $0x4b4] sm:$0xff]
    %v2915 = vld [vmem:[#allocation14 + $0x4bc] sm:$0xff]
    %v2916 = vld [vmem:[#allocation14 + $0x4c4] sm:$0xff]
    %v2917 = vld [vmem:[#allocation14 + $0x4cc] sm:$0xf]
    %v2918 = vld [vmem:[#allocation14 + $0x4d0] sm:$0xff]
    %v2919 = vld [vmem:[#allocation14 + $0x4d8] sm:$0xff]
    %v2920 = vld [vmem:[#allocation14 + $0x4e0] sm:$0xff]
    %v2921 = vld [vmem:[#allocation14 + $0x4e8] sm:$0xf]
    %v2922 = vld [vmem:[#allocation14 + $0x4ec] sm:$0xff]
    %v2923 = vld [vmem:[#allocation14 + $0x4f4] sm:$0xff]
    %v2924 = vld [vmem:[#allocation14 + $0x4fc] sm:$0xff]
    %v2925 = vld [vmem:[#allocation14 + $0x504] sm:$0xf]
    %v2926 = vld [vmem:[#allocation14 + $0x508] sm:$0xff]
    %v2927 = vld [vmem:[#allocation14 + $0x510] sm:$0xff]
    %v2928 = vld [vmem:[#allocation14 + $0x518] sm:$0xff]
    %v2929 = vld [vmem:[#allocation14 + $0x520] sm:$0xf]
    %v2930 = vld [vmem:[#allocation14 + $0x524] sm:$0xff]
    %v2931 = vld [vmem:[#allocation14 + $0x52c] sm:$0xff]
    %v2932 = vld [vmem:[#allocation14 + $0x534] sm:$0xff]
    %v2933 = vld [vmem:[#allocation14 + $0x53c] sm:$0xf]
    %v2934 = vld [vmem:[#allocation14 + $0x540] sm:$0xff]
    %v2935 = vld [vmem:[#allocation14 + $0x548] sm:$0xff]
    %v2936 = vld [vmem:[#allocation14 + $0x550] sm:$0xff]
    %v2937 = vld [vmem:[#allocation14 + $0x558] sm:$0xf]
    %v2938 = vld [vmem:[#allocation14 + $0x55c] sm:$0xff]
    %v2939 = vld [vmem:[#allocation14 + $0x564] sm:$0xff]
    %v2940 = vld [vmem:[#allocation14 + $0x56c] sm:$0xff]
    %v2941 = vld [vmem:[#allocation14 + $0x574] sm:$0xf]
    %v2942 = vld [vmem:[#allocation14 + $0x578] sm:$0xff]
    %v2943 = vld [vmem:[#allocation14 + $0x580] sm:$0xff]
    %v2944 = vld [vmem:[#allocation14 + $0x588] sm:$0xff]
    %v2945 = vld [vmem:[#allocation14 + $0x590] sm:$0xf]
    %v2946 = vld [vmem:[#allocation14 + $0x594] sm:$0xff]
    %v2947 = vld [vmem:[#allocation14 + $0x59c] sm:$0xff]
    %v2948 = vld [vmem:[#allocation14 + $0x5a4] sm:$0xff]
    %v2949 = vld [vmem:[#allocation14 + $0x5ac] sm:$0xf]
    %v2950 = vld [vmem:[#allocation14 + $0x5b0] sm:$0xff]
    %v2951 = vld [vmem:[#allocation14 + $0x5b8] sm:$0xff]
    %v2952 = vld [vmem:[#allocation14 + $0x5c0] sm:$0xff]
    %v2953 = vld [vmem:[#allocation14 + $0x5c8] sm:$0xf]
    %v2954 = vld [vmem:[#allocation14 + $0x5cc] sm:$0xff]
    %v2955 = vld [vmem:[#allocation14 + $0x5d4] sm:$0xff]
    %v2956 = vld [vmem:[#allocation14 + $0x5dc] sm:$0xff]
    %v2957 = vld [vmem:[#allocation14 + $0x5e4] sm:$0xf]
    %v2958 = vld [vmem:[#allocation14 + $0x5e8] sm:$0xff]
    %v2959 = vld [vmem:[#allocation14 + $0x5f0] sm:$0xff]
    %v2960 = vld [vmem:[#allocation14 + $0x5f8] sm:$0xff]
    %v2961 = vld [vmem:[#allocation14 + $0x600] sm:$0xf]
    %v2962 = vld [vmem:[#allocation14 + $0x604] sm:$0xff]
    %v2963 = vld [vmem:[#allocation14 + $0x60c] sm:$0xff]
    %v2964 = vld [vmem:[#allocation14 + $0x614] sm:$0xff]
    %v2965 = vld [vmem:[#allocation14 + $0x61c] sm:$0xf]
    %v2966 = vld [vmem:[#allocation14 + $0x620] sm:$0xff]
    %v2967 = vld [vmem:[#allocation14 + $0x628] sm:$0xff]
    %v2968 = vld [vmem:[#allocation14 + $0x630] sm:$0xff]
    %v2969 = vld [vmem:[#allocation14 + $0x638] sm:$0xf]
    %v2970 = vld [vmem:[#allocation14 + $0x63c] sm:$0xff]
    %v2971 = vld [vmem:[#allocation14 + $0x644] sm:$0xff]
    %v2972 = vld [vmem:[#allocation14 + $0x64c] sm:$0xff]
    %v2973 = vld [vmem:[#allocation14 + $0x654] sm:$0xf]
    %v2974 = vld [vmem:[#allocation14 + $0x658] sm:$0xff]
    %v2975 = vld [vmem:[#allocation14 + $0x660] sm:$0xff]
    %v2976 = vld [vmem:[#allocation14 + $0x668] sm:$0xff]
    %v2977 = vld [vmem:[#allocation14 + $0x670] sm:$0xf]
    %v2978 = vld [vmem:[#allocation14 + $0x674] sm:$0xff]
    %v2979 = vld [vmem:[#allocation14 + $0x67c] sm:$0xff]
    %v2980 = vld [vmem:[#allocation14 + $0x684] sm:$0xff]
    %v2981 = vld [vmem:[#allocation14 + $0x68c] sm:$0xf]
    %v2982 = vld [vmem:[#allocation14 + $0x690] sm:$0xff]
    %v2983 = vld [vmem:[#allocation14 + $0x698] sm:$0xff]
    %v2984 = vld [vmem:[#allocation14 + $0x6a0] sm:$0xff]
    %v2985 = vld [vmem:[#allocation14 + $0x6a8] sm:$0xf]
    %v2986 = vld [vmem:[#allocation14 + $0x6ac] sm:$0xff]
    %v2987 = vld [vmem:[#allocation14 + $0x6b4] sm:$0xff]
    %v2988 = vld [vmem:[#allocation14 + $0x6bc] sm:$0xff]
    %v2989 = vld [vmem:[#allocation14 + $0x6c4] sm:$0xf]
    %v2990 = vld [vmem:[#allocation14 + $0x6c8] sm:$0xff]
    %v2991 = vld [vmem:[#allocation14 + $0x6d0] sm:$0xff]
    %v2992 = vld [vmem:[#allocation14 + $0x6d8] sm:$0xff]
    %v2993 = vld [vmem:[#allocation14 + $0x6e0] sm:$0xf]
    %v2994 = vld [vmem:[#allocation14 + $0x6e4] sm:$0xff]
    %v2995 = vld [vmem:[#allocation14 + $0x6ec] sm:$0xff]
    %v2996 = vld [vmem:[#allocation14 + $0x6f4] sm:$0xff]
    %v2997 = vld [vmem:[#allocation14 + $0x6fc] sm:$0xf]
    %v2998 = vld [vmem:[#allocation14 + $0x700] sm:$0xff]
    %v2999 = vld [vmem:[#allocation14 + $0x708] sm:$0xff]
    %v3000 = vld [vmem:[#allocation14 + $0x710] sm:$0xff]
    %v3001 = vld [vmem:[#allocation14 + $0x718] sm:$0xf]
    %v3002 = vld [vmem:[#allocation14 + $0x71c] sm:$0xff]
    %v3003 = vld [vmem:[#allocation14 + $0x724] sm:$0xff]
    %v3004 = vld [vmem:[#allocation14 + $0x72c] sm:$0xff]
    %v3005 = vld [vmem:[#allocation14 + $0x734] sm:$0xf]
    %v3006 = vld [vmem:[#allocation14 + $0x738] sm:$0xff]
    %v3007 = vld [vmem:[#allocation14 + $0x740] sm:$0xff]
    %v3008 = vld [vmem:[#allocation14 + $0x748] sm:$0xff]
    %v3009 = vld [vmem:[#allocation14 + $0x750] sm:$0xf]
    %v3010 = vld [vmem:[#allocation14 + $0x754] sm:$0xff]
    %v3011 = vld [vmem:[#allocation14 + $0x75c] sm:$0xff]
    %v3012 = vld [vmem:[#allocation14 + $0x764] sm:$0xff]
    %v3013 = vld [vmem:[#allocation14 + $0x76c] sm:$0xf]
    %v3014 = vld [vmem:[#allocation14 + $0x770] sm:$0xff]
    %v3015 = vld [vmem:[#allocation14 + $0x778] sm:$0xff]
    %v3016 = vld [vmem:[#allocation14 + $0x780] sm:$0xff]
    %v3017 = vld [vmem:[#allocation14 + $0x788] sm:$0xf]
    %v3018 = vld [vmem:[#allocation14 + $0x78c] sm:$0xff]
    %v3019 = vld [vmem:[#allocation14 + $0x794] sm:$0xff]
    %v3020 = vld [vmem:[#allocation14 + $0x79c] sm:$0xff]
    %v3021 = vld [vmem:[#allocation14 + $0x7a4] sm:$0xf]
    %v3022 = vld [vmem:[#allocation14 + $0x7a8] sm:$0xff]
    %v3023 = vld [vmem:[#allocation14 + $0x7b0] sm:$0xff]
    %v3024 = vld [vmem:[#allocation14 + $0x7b8] sm:$0xff]
    %v3025 = vld [vmem:[#allocation14 + $0x7c0] sm:$0xf]
    %v3026 = vld [vmem:[#allocation14 + $0x7c4] sm:$0xff]
    %v3027 = vld [vmem:[#allocation14 + $0x7cc] sm:$0xff]
    %v3028 = vld [vmem:[#allocation14 + $0x7d4] sm:$0xff]
    %v3029 = vld [vmem:[#allocation14 + $0x7dc] sm:$0xf]
    %v3030 = vld [vmem:[#allocation14 + $0x7e0] sm:$0xff]
    %v3031 = vld [vmem:[#allocation14 + $0x7e8] sm:$0xff]
    %v3032 = vld [vmem:[#allocation14 + $0x7f0] sm:$0xff]
    %v3033 = vld [vmem:[#allocation14 + $0x7f8] sm:$0xf]
    %v3034 = vld [vmem:[#allocation14 + $0x7fc] sm:$0xff]
    %v3035 = vld [vmem:[#allocation14 + $0x804] sm:$0xff]
    %v3036 = vld [vmem:[#allocation14 + $0x80c] sm:$0xff]
    %v3037 = vld [vmem:[#allocation14 + $0x814] sm:$0xf]
    %v3038 = vld [vmem:[#allocation14 + $0x818] sm:$0xff]
    %v3039 = vld [vmem:[#allocation14 + $0x820] sm:$0xff]
    %v3040 = vld [vmem:[#allocation14 + $0x828] sm:$0xff]
    %v3041 = vld [vmem:[#allocation14 + $0x830] sm:$0xf]
    %v3042 = vld [vmem:[#allocation14 + $0x834] sm:$0xff]
    %v3043 = vld [vmem:[#allocation14 + $0x83c] sm:$0xff]
    %v3044 = vld [vmem:[#allocation14 + $0x844] sm:$0xff]
    %v3045 = vld [vmem:[#allocation14 + $0x84c] sm:$0xf]
    %v3046 = vld [vmem:[#allocation14 + $0x850] sm:$0xff]
    %v3047 = vld [vmem:[#allocation14 + $0x858] sm:$0xff]
    %v3048 = vld [vmem:[#allocation14 + $0x860] sm:$0xff]
    %v3049 = vld [vmem:[#allocation14 + $0x868] sm:$0xf]
    %v3050 = vld [vmem:[#allocation14 + $0x86c] sm:$0xff]
    %v3051 = vld [vmem:[#allocation14 + $0x874] sm:$0xff]
    %v3052 = vld [vmem:[#allocation14 + $0x87c] sm:$0xff]
    %v3053 = vld [vmem:[#allocation14 + $0x884] sm:$0xf]
    %v3054 = vld [vmem:[#allocation14 + $0x888] sm:$0xff]
    %v3055 = vld [vmem:[#allocation14 + $0x890] sm:$0xff]
    %v3056 = vld [vmem:[#allocation14 + $0x898] sm:$0xff]
    %v3057 = vld [vmem:[#allocation14 + $0x8a0] sm:$0xf]
    %v3058 = vld [vmem:[#allocation14 + $0x8a4] sm:$0xff]
    %v3059 = vld [vmem:[#allocation14 + $0x8ac] sm:$0xff]
    %v3060 = vld [vmem:[#allocation14 + $0x8b4] sm:$0xff]
    %v3061 = vld [vmem:[#allocation14 + $0x8bc] sm:$0xf]
    %v3062 = vld [vmem:[#allocation14 + $0x8c0] sm:$0xff]
    %v3063 = vld [vmem:[#allocation14 + $0x8c8] sm:$0xff]
    %v3064 = vld [vmem:[#allocation14 + $0x8d0] sm:$0xff]
    %v3065 = vld [vmem:[#allocation14 + $0x8d8] sm:$0xf]
    %v3066 = vld [vmem:[#allocation14 + $0x8dc] sm:$0xff]
    %v3067 = vld [vmem:[#allocation14 + $0x8e4] sm:$0xff]
    %v3068 = vld [vmem:[#allocation14 + $0x8ec] sm:$0xff]
    %v3069 = vld [vmem:[#allocation14 + $0x8f4] sm:$0xf]
    %v3070 = vld [vmem:[#allocation14 + $0x8f8] sm:$0xff]
    %v3071 = vld [vmem:[#allocation14 + $0x900] sm:$0xff]
    %v3072 = vld [vmem:[#allocation14 + $0x908] sm:$0xff]
    %v3073 = vld [vmem:[#allocation14 + $0x910] sm:$0xf]
    %v3074 = vld [vmem:[#allocation14 + $0x914] sm:$0xff]
    %v3075 = vld [vmem:[#allocation14 + $0x91c] sm:$0xff]
    %v3076 = vld [vmem:[#allocation14 + $0x924] sm:$0xff]
    %v3077 = vld [vmem:[#allocation14 + $0x92c] sm:$0xf]
    %v3078 = vld [vmem:[#allocation14 + $0x930] sm:$0xff]
    %v3079 = vld [vmem:[#allocation14 + $0x938] sm:$0xff]
    %v3080 = vld [vmem:[#allocation14 + $0x940] sm:$0xff]
    %v3081 = vld [vmem:[#allocation14 + $0x948] sm:$0xf]
    %v3082 = vld [vmem:[#allocation14 + $0x94c] sm:$0xff]
    %v3083 = vld [vmem:[#allocation14 + $0x954] sm:$0xff]
    %v3084 = vld [vmem:[#allocation14 + $0x95c] sm:$0xff]
    %v3085 = vld [vmem:[#allocation14 + $0x964] sm:$0xf]
    %v3086 = vld [vmem:[#allocation14 + $0x968] sm:$0xff]
    %v3087 = vld [vmem:[#allocation14 + $0x970] sm:$0xff]
    %v3088 = vld [vmem:[#allocation14 + $0x978] sm:$0xff]
    %v3089 = vld [vmem:[#allocation14 + $0x980] sm:$0xf]
    %v3090 = vld [vmem:[#allocation14 + $0x984] sm:$0xff]
    %v3091 = vld [vmem:[#allocation14 + $0x98c] sm:$0xff]
    %v3092 = vld [vmem:[#allocation14 + $0x994] sm:$0xff]
    %v3093 = vld [vmem:[#allocation14 + $0x99c] sm:$0xf]
    %v3094 = vld [vmem:[#allocation14 + $0x9a0] sm:$0xff]
    %v3095 = vld [vmem:[#allocation14 + $0x9a8] sm:$0xff]
    %v3096 = vld [vmem:[#allocation14 + $0x9b0] sm:$0xff]
    %v3097 = vld [vmem:[#allocation14 + $0x9b8] sm:$0xf]
    %v3098 = vld [vmem:[#allocation14 + $0x9bc] sm:$0xff]
    %v3099 = vld [vmem:[#allocation14 + $0x9c4] sm:$0xff]
    %v3100 = vld [vmem:[#allocation14 + $0x9cc] sm:$0xff]
    %v3101 = vld [vmem:[#allocation14 + $0x9d4] sm:$0xf]
    %v3102 = vld [vmem:[#allocation14 + $0x9d8] sm:$0xff]
    %v3103 = vld [vmem:[#allocation14 + $0x9e0] sm:$0xff]
    %v3104 = vld [vmem:[#allocation14 + $0x9e8] sm:$0xff]
    %v3105 = vld [vmem:[#allocation14 + $0x9f0] sm:$0xf]
    %v3106 = vld [vmem:[#allocation14 + $0x9f4] sm:$0xff]
    %v3107 = vld [vmem:[#allocation14 + $0x9fc] sm:$0xff]
    %v3108 = vld [vmem:[#allocation14 + $0xa04] sm:$0xff]
    %v3109 = vld [vmem:[#allocation14 + $0xa0c] sm:$0xf]
    %v3110 = vld [vmem:[#allocation14 + $0xa10] sm:$0xff]
    %v3111 = vld [vmem:[#allocation14 + $0xa18] sm:$0xff]
    %v3112 = vld [vmem:[#allocation14 + $0xa20] sm:$0xff]
    %v3113 = vld [vmem:[#allocation14 + $0xa28] sm:$0xf]
    %v3114 = vld [vmem:[#allocation14 + $0xa2c] sm:$0xff]
    %v3115 = vld [vmem:[#allocation14 + $0xa34] sm:$0xff]
    %v3116 = vld [vmem:[#allocation14 + $0xa3c] sm:$0xff]
    %v3117 = vld [vmem:[#allocation14 + $0xa44] sm:$0xf]
    %v3118 = vld [vmem:[#allocation14 + $0xa48] sm:$0xff]
    %v3119 = vld [vmem:[#allocation14 + $0xa50] sm:$0xff]
    %v3120 = vld [vmem:[#allocation14 + $0xa58] sm:$0xff]
    %v3121 = vld [vmem:[#allocation14 + $0xa60] sm:$0xf]
    %v3122 = vld [vmem:[#allocation14 + $0xa64] sm:$0xff]
    %v3123 = vld [vmem:[#allocation14 + $0xa6c] sm:$0xff]
    %v3124 = vld [vmem:[#allocation14 + $0xa74] sm:$0xff]
    %v3125 = vld [vmem:[#allocation14 + $0xa7c] sm:$0xf]
    %v3126 = vld [vmem:[#allocation14 + $0xa80] sm:$0xff]
    %v3127 = vld [vmem:[#allocation14 + $0xa88] sm:$0xff]
    %v3128 = vld [vmem:[#allocation14 + $0xa90] sm:$0xff]
    %v3129 = vld [vmem:[#allocation14 + $0xa98] sm:$0xf]
    %v3130 = vld [vmem:[#allocation14 + $0xa9c] sm:$0xff]
    %v3131 = vld [vmem:[#allocation14 + $0xaa4] sm:$0xff]
    %v3132 = vld [vmem:[#allocation14 + $0xaac] sm:$0xff]
    %v3133 = vld [vmem:[#allocation14 + $0xab4] sm:$0xf]
    %v3134 = vld [vmem:[#allocation14 + $0xab8] sm:$0xff]
    %v3135 = vld [vmem:[#allocation14 + $0xac0] sm:$0xff]
    %v3136 = vld [vmem:[#allocation14 + $0xac8] sm:$0xff]
    %v3137 = vld [vmem:[#allocation14 + $0xad0] sm:$0xf]
    %v3138 = vld [vmem:[#allocation14 + $0xad4] sm:$0xff]
    %v3139 = vld [vmem:[#allocation14 + $0xadc] sm:$0xff]
    %v3140 = vld [vmem:[#allocation14 + $0xae4] sm:$0xff]
    %v3141 = vld [vmem:[#allocation14 + $0xaec] sm:$0xf]
    %v3142 = vld [vmem:[#allocation14 + $0xaf0] sm:$0xff]
    %v3143 = vld [vmem:[#allocation14 + $0xaf8] sm:$0xff]
    %v3144 = vld [vmem:[#allocation14 + $0xb00] sm:$0xff]
    %v3145 = vld [vmem:[#allocation14 + $0xb08] sm:$0xf]
    %v3146 = vld [vmem:[#allocation14 + $0xb0c] sm:$0xff]
    %v3147 = vld [vmem:[#allocation14 + $0xb14] sm:$0xff]
    %v3148 = vld [vmem:[#allocation14 + $0xb1c] sm:$0xff]
    %v3149 = vld [vmem:[#allocation14 + $0xb24] sm:$0xf]
    %v3150 = vld [vmem:[#allocation14 + $0xb28] sm:$0xff]
    %v3151 = vld [vmem:[#allocation14 + $0xb30] sm:$0xff]
    %v3152 = vld [vmem:[#allocation14 + $0xb38] sm:$0xff]
    %v3153 = vld [vmem:[#allocation14 + $0xb40] sm:$0xf]
    %v3154 = vld [vmem:[#allocation14 + $0xb44] sm:$0xff]
    %v3155 = vld [vmem:[#allocation14 + $0xb4c] sm:$0xff]
    %v3156 = vld [vmem:[#allocation14 + $0xb54] sm:$0xff]
    %v3157 = vld [vmem:[#allocation14 + $0xb5c] sm:$0xf]
    %v3158 = vld [vmem:[#allocation14 + $0xb60] sm:$0xff]
    %v3159 = vld [vmem:[#allocation14 + $0xb68] sm:$0xff]
    %v3160 = vld [vmem:[#allocation14 + $0xb70] sm:$0xff]
    %v3161 = vld [vmem:[#allocation14 + $0xb78] sm:$0xf]
    %v3162 = vld [vmem:[#allocation14 + $0xb7c] sm:$0xff]
    %v3163 = vld [vmem:[#allocation14 + $0xb84] sm:$0xff]
    %v3164 = vld [vmem:[#allocation14 + $0xb8c] sm:$0xff]
    %v3165 = vld [vmem:[#allocation14 + $0xb94] sm:$0xf]
    %v3166 = vld [vmem:[#allocation14 + $0xb98] sm:$0xff]
    %v3167 = vld [vmem:[#allocation14 + $0xba0] sm:$0xff]
    %v3168 = vld [vmem:[#allocation14 + $0xba8] sm:$0xff]
    %v3169 = vld [vmem:[#allocation14 + $0xbb0] sm:$0xf]
    %v3170 = vld [vmem:[#allocation14 + $0xbb4] sm:$0xff]
    %v3171 = vld [vmem:[#allocation14 + $0xbbc] sm:$0xff]
    %v3172 = vld [vmem:[#allocation14 + $0xbc4] sm:$0xff]
    %v3173 = vld [vmem:[#allocation14 + $0xbcc] sm:$0xf]
    %v3174 = vld [vmem:[#allocation14 + $0xbd0] sm:$0xff]
    %v3175 = vld [vmem:[#allocation14 + $0xbd8] sm:$0xff]
    %v3176 = vld [vmem:[#allocation14 + $0xbe0] sm:$0xff]
    %v3177 = vld [vmem:[#allocation14 + $0xbe8] sm:$0xf]
    %v3178 = vld [vmem:[#allocation14 + $0xbec] sm:$0xff]
    %v3179 = vld [vmem:[#allocation14 + $0xbf4] sm:$0xff]
    %v3180 = vld [vmem:[#allocation14 + $0xbfc] sm:$0xff]
    %v3181 = vld [vmem:[#allocation14 + $0xc04] sm:$0xf]
    %v3182 = vld [vmem:[#allocation14 + $0xc08] sm:$0xff]
    %v3183 = vld [vmem:[#allocation14 + $0xc10] sm:$0xff]
    %v3184 = vld [vmem:[#allocation14 + $0xc18] sm:$0xff]
    %v3185 = vld [vmem:[#allocation14 + $0xc20] sm:$0xf]
    %v3186 = vld [vmem:[#allocation14 + $0xc24] sm:$0xff]
    %v3187 = vld [vmem:[#allocation14 + $0xc2c] sm:$0xff]
    %v3188 = vld [vmem:[#allocation14 + $0xc34] sm:$0xff]
    %v3189 = vld [vmem:[#allocation14 + $0xc3c] sm:$0xf]
    %v3190 = vld [vmem:[#allocation14 + $0xc40] sm:$0xff]
    %v3191 = vld [vmem:[#allocation14 + $0xc48] sm:$0xff]
    %v3192 = vld [vmem:[#allocation14 + $0xc50] sm:$0xff]
    %v3193 = vld [vmem:[#allocation14 + $0xc58] sm:$0xf]
    %v3194 = vld [vmem:[#allocation14 + $0xc5c] sm:$0xff]
    %v3195 = vld [vmem:[#allocation14 + $0xc64] sm:$0xff]
    %v3196 = vld [vmem:[#allocation14 + $0xc6c] sm:$0xff]
    %v3197 = vld [vmem:[#allocation14 + $0xc74] sm:$0xf]
    %v3198 = vld [vmem:[#allocation14 + $0xc78] sm:$0xff]
    %v3199 = vld [vmem:[#allocation14 + $0xc80] sm:$0xff]
    %v3200 = vld [vmem:[#allocation14 + $0xc88] sm:$0xff]
    %v3201 = vld [vmem:[#allocation14 + $0xc90] sm:$0xf]
    %v3202 = vld [vmem:[#allocation14 + $0xc94] sm:$0xff]
    %v3203 = vld [vmem:[#allocation14 + $0xc9c] sm:$0xff]
    %v3204 = vld [vmem:[#allocation14 + $0xca4] sm:$0xff]
    %v3205 = vld [vmem:[#allocation14 + $0xcac] sm:$0xf]
    %v3206 = vld [vmem:[#allocation14 + $0xcb0] sm:$0xff]
    %v3207 = vld [vmem:[#allocation14 + $0xcb8] sm:$0xff]
    %v3208 = vld [vmem:[#allocation14 + $0xcc0] sm:$0xff]
    %v3209 = vld [vmem:[#allocation14 + $0xcc8] sm:$0xf]
    %v3210 = vld [vmem:[#allocation14 + $0xccc] sm:$0xff]
    %v3211 = vld [vmem:[#allocation14 + $0xcd4] sm:$0xff]
    %v3212 = vld [vmem:[#allocation14 + $0xcdc] sm:$0xff]
    %v3213 = vld [vmem:[#allocation14 + $0xce4] sm:$0xf]
    %v3214 = vld [vmem:[#allocation14 + $0xce8] sm:$0xff]
    %v3215 = vld [vmem:[#allocation14 + $0xcf0] sm:$0xff]
    %v3216 = vld [vmem:[#allocation14 + $0xcf8] sm:$0xff]
    %v3217 = vld [vmem:[#allocation14 + $0xd00] sm:$0xf]
    %v3218 = vld [vmem:[#allocation14 + $0xd04] sm:$0xff]
    %v3219 = vld [vmem:[#allocation14 + $0xd0c] sm:$0xff]
    %v3220 = vld [vmem:[#allocation14 + $0xd14] sm:$0xff]
    %v3221 = vld [vmem:[#allocation14 + $0xd1c] sm:$0xf]
    %v3222 = vld [vmem:[#allocation14 + $0xd20] sm:$0xff]
    %v3223 = vld [vmem:[#allocation14 + $0xd28] sm:$0xff]
    %v3224 = vld [vmem:[#allocation14 + $0xd30] sm:$0xff]
    %v3225 = vld [vmem:[#allocation14 + $0xd38] sm:$0xf]
    %v3226 = vld [vmem:[#allocation14 + $0xd3c] sm:$0xff]
    %v3227 = vld [vmem:[#allocation14 + $0xd44] sm:$0xff]
    %v3228 = vld [vmem:[#allocation14 + $0xd4c] sm:$0xff]
    %v3229 = vld [vmem:[#allocation14 + $0xd54] sm:$0xf]
    %v3230 = vld [vmem:[#allocation14 + $0xd58] sm:$0xff]
    %v3231 = vld [vmem:[#allocation14 + $0xd60] sm:$0xff]
    %v3232 = vld [vmem:[#allocation14 + $0xd68] sm:$0xff]
    %v3233 = vld [vmem:[#allocation14 + $0xd70] sm:$0xf]
    %v3234 = vld [vmem:[#allocation14 + $0xd74] sm:$0xff]
    %v3235 = vld [vmem:[#allocation14 + $0xd7c] sm:$0xff]
    %v3236 = vld [vmem:[#allocation14 + $0xd84] sm:$0xff]
    %v3237 = vld [vmem:[#allocation14 + $0xd8c] sm:$0xf]
    %v3238 = vld [vmem:[#allocation14 + $0xd90] sm:$0xff]
    %v3239 = vld [vmem:[#allocation14 + $0xd98] sm:$0xff]
    %v3240 = vld [vmem:[#allocation14 + $0xda0] sm:$0xff]
    %v3241 = vld [vmem:[#allocation14 + $0xda8] sm:$0xf]
    %v3242 = vld [vmem:[#allocation14 + $0xdac] sm:$0xff]
    %v3243 = vld [vmem:[#allocation14 + $0xdb4] sm:$0xff]
    %v3244 = vld [vmem:[#allocation14 + $0xdbc] sm:$0xff]
    %v3245 = vld [vmem:[#allocation14 + $0xdc4] sm:$0xf]
    %v3246 = vld [vmem:[#allocation14 + $0xdc8] sm:$0xff]
    %v3247 = vld [vmem:[#allocation14 + $0xdd0] sm:$0xff]
    %v3248 = vld [vmem:[#allocation14 + $0xdd8] sm:$0xff]
    %v3249 = vld [vmem:[#allocation14 + $0xde0] sm:$0xf]
    %v3250 = vld [vmem:[#allocation14 + $0xde4] sm:$0xff]
    %v3251 = vld [vmem:[#allocation14 + $0xdec] sm:$0xff]
    %v3252 = vld [vmem:[#allocation14 + $0xdf4] sm:$0xff]
    %v3253 = vld [vmem:[#allocation14 + $0xdfc] sm:$0xf]
    %v3254 = vld [vmem:[#allocation16] sm:$0xff]
    %v3256 = vlaneseq
    %v3257 = vshrl.u32 %v3256, 7
    %v3258 = vsub.s32 0, %v3257
    %v3259 = vrot.slane %v3254, %v3258
    %v3260 = vlaneseq
    %v3261 = vshrl.u32 %v3260, 7
    %v3262 = vsub.s32 1, %v3261
    %v3263 = vrot.slane %v3254, %v3262
    %v3264 = vlaneseq
    %v3265 = vshrl.u32 %v3264, 7
    %v3266 = vsub.s32 2, %v3265
    %v3267 = vrot.slane %v3254, %v3266
    %v3268 = vlaneseq
    %v3269 = vshrl.u32 %v3268, 7
    %v3270 = vsub.s32 3, %v3269
    %v3271 = vrot.slane %v3254, %v3270
    %v3272 = vlaneseq
    %v3273 = vshrl.u32 %v3272, 7
    %v3274 = vsub.s32 4, %v3273
    %v3275 = vrot.slane %v3254, %v3274
    %v3276 = vlaneseq
    %v3277 = vshrl.u32 %v3276, 7
    %v3278 = vsub.s32 5, %v3277
    %v3279 = vrot.slane %v3254, %v3278
    %v3280 = vlaneseq
    %v3281 = vshrl.u32 %v3280, 7
    %v3282 = vsub.s32 6, %v3281
    %v3283 = vrot.slane %v3254, %v3282
    %v3803 = vunpack.c.l.b16 %v2742
    %v3804 = vunpack.c.h.b16 %v2742
    %v3805 = vunpack.c.l.b16 %v2743
    %v3806 = vunpack.c.h.b16 %v2743
    %v3807 = vunpack.c.l.b16 %v2744
    %v3808 = vunpack.c.h.b16 %v2744
    %v3809 = vunpack.c.l.b16 %v2745
    %v3810 = vunpack.c.l.b16 %v2746
    %v3811 = vunpack.c.h.b16 %v2746
    %v3812 = vunpack.c.l.b16 %v2747
    %v3813 = vunpack.c.h.b16 %v2747
    %v3814 = vunpack.c.l.b16 %v2748
    %v3815 = vunpack.c.h.b16 %v2748
    %v3816 = vunpack.c.l.b16 %v2749
    %v3817 = vunpack.c.l.b16 %v2750
    %v3818 = vunpack.c.h.b16 %v2750
    %v3819 = vunpack.c.l.b16 %v2751
    %v3820 = vunpack.c.h.b16 %v2751
    %v3821 = vunpack.c.l.b16 %v2752
    %v3822 = vunpack.c.h.b16 %v2752
    %v3823 = vunpack.c.l.b16 %v2753
    %v3824 = vunpack.c.l.b16 %v2754
    %v3825 = vunpack.c.h.b16 %v2754
    %v3826 = vunpack.c.l.b16 %v2755
    %v3827 = vunpack.c.h.b16 %v2755
    %v3828 = vunpack.c.l.b16 %v2756
    %v3829 = vunpack.c.h.b16 %v2756
    %v3830 = vunpack.c.l.b16 %v2757
    %v3831 = vunpack.c.l.b16 %v2758
    %v3832 = vunpack.c.h.b16 %v2758
    %v3833 = vunpack.c.l.b16 %v2759
    %v3834 = vunpack.c.h.b16 %v2759
    %v3835 = vunpack.c.l.b16 %v2760
    %v3836 = vunpack.c.h.b16 %v2760
    %v3837 = vunpack.c.l.b16 %v2761
    %v3838 = vunpack.c.l.b16 %v2762
    %v3839 = vunpack.c.h.b16 %v2762
    %v3840 = vunpack.c.l.b16 %v2763
    %v3841 = vunpack.c.h.b16 %v2763
    %v3842 = vunpack.c.l.b16 %v2764
    %v3843 = vunpack.c.h.b16 %v2764
    %v3844 = vunpack.c.l.b16 %v2765
    %v3845 = vunpack.c.l.b16 %v2766
    %v3846 = vunpack.c.h.b16 %v2766
    %v3847 = vunpack.c.l.b16 %v2767
    %v3848 = vunpack.c.h.b16 %v2767
    %v3849 = vunpack.c.l.b16 %v2768
    %v3850 = vunpack.c.h.b16 %v2768
    %v3851 = vunpack.c.l.b16 %v2769
    %v3852 = vunpack.c.l.b16 %v2770
    %v3853 = vunpack.c.h.b16 %v2770
    %v3854 = vunpack.c.l.b16 %v2771
    %v3855 = vunpack.c.h.b16 %v2771
    %v3856 = vunpack.c.l.b16 %v2772
    %v3857 = vunpack.c.h.b16 %v2772
    %v3858 = vunpack.c.l.b16 %v2773
    %v3859 = vunpack.c.l.b16 %v2774
    %v3860 = vunpack.c.h.b16 %v2774
    %v3861 = vunpack.c.l.b16 %v2775
    %v3862 = vunpack.c.h.b16 %v2775
    %v3863 = vunpack.c.l.b16 %v2776
    %v3864 = vunpack.c.h.b16 %v2776
    %v3865 = vunpack.c.l.b16 %v2777
    %v3866 = vunpack.c.l.b16 %v2778
    %v3867 = vunpack.c.h.b16 %v2778
    %v3868 = vunpack.c.l.b16 %v2779
    %v3869 = vunpack.c.h.b16 %v2779
    %v3870 = vunpack.c.l.b16 %v2780
    %v3871 = vunpack.c.h.b16 %v2780
    %v3872 = vunpack.c.l.b16 %v2781
    %v3873 = vunpack.c.l.b16 %v2782
    %v3874 = vunpack.c.h.b16 %v2782
    %v3875 = vunpack.c.l.b16 %v2783
    %v3876 = vunpack.c.h.b16 %v2783
    %v3877 = vunpack.c.l.b16 %v2784
    %v3878 = vunpack.c.h.b16 %v2784
    %v3879 = vunpack.c.l.b16 %v2785
    %v3880 = vunpack.c.l.b16 %v2786
    %v3881 = vunpack.c.h.b16 %v2786
    %v3882 = vunpack.c.l.b16 %v2787
    %v3883 = vunpack.c.h.b16 %v2787
    %v3884 = vunpack.c.l.b16 %v2788
    %v3885 = vunpack.c.h.b16 %v2788
    %v3886 = vunpack.c.l.b16 %v2789
    %v3887 = vunpack.c.l.b16 %v2790
    %v3888 = vunpack.c.h.b16 %v2790
    %v3889 = vunpack.c.l.b16 %v2791
    %v3890 = vunpack.c.h.b16 %v2791
    %v3891 = vunpack.c.l.b16 %v2792
    %v3892 = vunpack.c.h.b16 %v2792
    %v3893 = vunpack.c.l.b16 %v2793
    %v3894 = vunpack.c.l.b16 %v2794
    %v3895 = vunpack.c.h.b16 %v2794
    %v3896 = vunpack.c.l.b16 %v2795
    %v3897 = vunpack.c.h.b16 %v2795
    %v3898 = vunpack.c.l.b16 %v2796
    %v3899 = vunpack.c.h.b16 %v2796
    %v3900 = vunpack.c.l.b16 %v2797
    %v3901 = vunpack.c.l.b16 %v2798
    %v3902 = vunpack.c.h.b16 %v2798
    %v3903 = vunpack.c.l.b16 %v2799
    %v3904 = vunpack.c.h.b16 %v2799
    %v3905 = vunpack.c.l.b16 %v2800
    %v3906 = vunpack.c.h.b16 %v2800
    %v3907 = vunpack.c.l.b16 %v2801
    %v3908 = vunpack.c.l.b16 %v2802
    %v3909 = vunpack.c.h.b16 %v2802
    %v3910 = vunpack.c.l.b16 %v2803
    %v3911 = vunpack.c.h.b16 %v2803
    %v3912 = vunpack.c.l.b16 %v2804
    %v3913 = vunpack.c.h.b16 %v2804
    %v3914 = vunpack.c.l.b16 %v2805
    %v3915 = vunpack.c.l.b16 %v2806
    %v3916 = vunpack.c.h.b16 %v2806
    %v3917 = vunpack.c.l.b16 %v2807
    %v3918 = vunpack.c.h.b16 %v2807
    %v3919 = vunpack.c.l.b16 %v2808
    %v3920 = vunpack.c.h.b16 %v2808
    %v3921 = vunpack.c.l.b16 %v2809
    %v3922 = vunpack.c.l.b16 %v2810
    %v3923 = vunpack.c.h.b16 %v2810
    %v3924 = vunpack.c.l.b16 %v2811
    %v3925 = vunpack.c.h.b16 %v2811
    %v3926 = vunpack.c.l.b16 %v2812
    %v3927 = vunpack.c.h.b16 %v2812
    %v3928 = vunpack.c.l.b16 %v2813
    %v3929 = vunpack.c.l.b16 %v2814
    %v3930 = vunpack.c.h.b16 %v2814
    %v3931 = vunpack.c.l.b16 %v2815
    %v3932 = vunpack.c.h.b16 %v2815
    %v3933 = vunpack.c.l.b16 %v2816
    %v3934 = vunpack.c.h.b16 %v2816
    %v3935 = vunpack.c.l.b16 %v2817
    %v3936 = vunpack.c.l.b16 %v2818
    %v3937 = vunpack.c.h.b16 %v2818
    %v3938 = vunpack.c.l.b16 %v2819
    %v3939 = vunpack.c.h.b16 %v2819
    %v3940 = vunpack.c.l.b16 %v2820
    %v3941 = vunpack.c.h.b16 %v2820
    %v3942 = vunpack.c.l.b16 %v2821
    %v3943 = vunpack.c.l.b16 %v2822
    %v3944 = vunpack.c.h.b16 %v2822
    %v3945 = vunpack.c.l.b16 %v2823
    %v3946 = vunpack.c.h.b16 %v2823
    %v3947 = vunpack.c.l.b16 %v2824
    %v3948 = vunpack.c.h.b16 %v2824
    %v3949 = vunpack.c.l.b16 %v2825
    %v3950 = vunpack.c.l.b16 %v2826
    %v3951 = vunpack.c.h.b16 %v2826
    %v3952 = vunpack.c.l.b16 %v2827
    %v3953 = vunpack.c.h.b16 %v2827
    %v3954 = vunpack.c.l.b16 %v2828
    %v3955 = vunpack.c.h.b16 %v2828
    %v3956 = vunpack.c.l.b16 %v2829
    %v3957 = vunpack.c.l.b16 %v2830
    %v3958 = vunpack.c.h.b16 %v2830
    %v3959 = vunpack.c.l.b16 %v2831
    %v3960 = vunpack.c.h.b16 %v2831
    %v3961 = vunpack.c.l.b16 %v2832
    %v3962 = vunpack.c.h.b16 %v2832
    %v3963 = vunpack.c.l.b16 %v2833
    %v3964 = vunpack.c.l.b16 %v2834
    %v3965 = vunpack.c.h.b16 %v2834
    %v3966 = vunpack.c.l.b16 %v2835
    %v3967 = vunpack.c.h.b16 %v2835
    %v3968 = vunpack.c.l.b16 %v2836
    %v3969 = vunpack.c.h.b16 %v2836
    %v3970 = vunpack.c.l.b16 %v2837
    %v3971 = vunpack.c.l.b16 %v2838
    %v3972 = vunpack.c.h.b16 %v2838
    %v3973 = vunpack.c.l.b16 %v2839
    %v3974 = vunpack.c.h.b16 %v2839
    %v3975 = vunpack.c.l.b16 %v2840
    %v3976 = vunpack.c.h.b16 %v2840
    %v3977 = vunpack.c.l.b16 %v2841
    %v3978 = vunpack.c.l.b16 %v2842
    %v3979 = vunpack.c.h.b16 %v2842
    %v3980 = vunpack.c.l.b16 %v2843
    %v3981 = vunpack.c.h.b16 %v2843
    %v3982 = vunpack.c.l.b16 %v2844
    %v3983 = vunpack.c.h.b16 %v2844
    %v3984 = vunpack.c.l.b16 %v2845
    %v3985 = vunpack.c.l.b16 %v2846
    %v3986 = vunpack.c.h.b16 %v2846
    %v3987 = vunpack.c.l.b16 %v2847
    %v3988 = vunpack.c.h.b16 %v2847
    %v3989 = vunpack.c.l.b16 %v2848
    %v3990 = vunpack.c.h.b16 %v2848
    %v3991 = vunpack.c.l.b16 %v2849
    %v3992 = vunpack.c.l.b16 %v2850
    %v3993 = vunpack.c.h.b16 %v2850
    %v3994 = vunpack.c.l.b16 %v2851
    %v3995 = vunpack.c.h.b16 %v2851
    %v3996 = vunpack.c.l.b16 %v2852
    %v3997 = vunpack.c.h.b16 %v2852
    %v3998 = vunpack.c.l.b16 %v2853
    %v3999 = vunpack.c.l.b16 %v2854
    %v4000 = vunpack.c.h.b16 %v2854
    %v4001 = vunpack.c.l.b16 %v2855
    %v4002 = vunpack.c.h.b16 %v2855
    %v4003 = vunpack.c.l.b16 %v2856
    %v4004 = vunpack.c.h.b16 %v2856
    %v4005 = vunpack.c.l.b16 %v2857
    %v4006 = vunpack.c.l.b16 %v2858
    %v4007 = vunpack.c.h.b16 %v2858
    %v4008 = vunpack.c.l.b16 %v2859
    %v4009 = vunpack.c.h.b16 %v2859
    %v4010 = vunpack.c.l.b16 %v2860
    %v4011 = vunpack.c.h.b16 %v2860
    %v4012 = vunpack.c.l.b16 %v2861
    %v4013 = vunpack.c.l.b16 %v2862
    %v4014 = vunpack.c.h.b16 %v2862
    %v4015 = vunpack.c.l.b16 %v2863
    %v4016 = vunpack.c.h.b16 %v2863
    %v4017 = vunpack.c.l.b16 %v2864
    %v4018 = vunpack.c.h.b16 %v2864
    %v4019 = vunpack.c.l.b16 %v2865
    %v4020 = vunpack.c.l.b16 %v2866
    %v4021 = vunpack.c.h.b16 %v2866
    %v4022 = vunpack.c.l.b16 %v2867
    %v4023 = vunpack.c.h.b16 %v2867
    %v4024 = vunpack.c.l.b16 %v2868
    %v4025 = vunpack.c.h.b16 %v2868
    %v4026 = vunpack.c.l.b16 %v2869
    %v4027 = vunpack.c.l.b16 %v2870
    %v4028 = vunpack.c.h.b16 %v2870
    %v4029 = vunpack.c.l.b16 %v2871
    %v4030 = vunpack.c.h.b16 %v2871
    %v4031 = vunpack.c.l.b16 %v2872
    %v4032 = vunpack.c.h.b16 %v2872
    %v4033 = vunpack.c.l.b16 %v2873
    %v4034 = vunpack.c.l.b16 %v2874
    %v4035 = vunpack.c.h.b16 %v2874
    %v4036 = vunpack.c.l.b16 %v2875
    %v4037 = vunpack.c.h.b16 %v2875
    %v4038 = vunpack.c.l.b16 %v2876
    %v4039 = vunpack.c.h.b16 %v2876
    %v4040 = vunpack.c.l.b16 %v2877
    %v4041 = vunpack.c.l.b16 %v2878
    %v4042 = vunpack.c.h.b16 %v2878
    %v4043 = vunpack.c.l.b16 %v2879
    %v4044 = vunpack.c.h.b16 %v2879
    %v4045 = vunpack.c.l.b16 %v2880
    %v4046 = vunpack.c.h.b16 %v2880
    %v4047 = vunpack.c.l.b16 %v2881
    %v4048 = vunpack.c.l.b16 %v2882
    %v4049 = vunpack.c.h.b16 %v2882
    %v4050 = vunpack.c.l.b16 %v2883
    %v4051 = vunpack.c.h.b16 %v2883
    %v4052 = vunpack.c.l.b16 %v2884
    %v4053 = vunpack.c.h.b16 %v2884
    %v4054 = vunpack.c.l.b16 %v2885
    %v4055 = vunpack.c.l.b16 %v2886
    %v4056 = vunpack.c.h.b16 %v2886
    %v4057 = vunpack.c.l.b16 %v2887
    %v4058 = vunpack.c.h.b16 %v2887
    %v4059 = vunpack.c.l.b16 %v2888
    %v4060 = vunpack.c.h.b16 %v2888
    %v4061 = vunpack.c.l.b16 %v2889
    %v4062 = vunpack.c.l.b16 %v2890
    %v4063 = vunpack.c.h.b16 %v2890
    %v4064 = vunpack.c.l.b16 %v2891
    %v4065 = vunpack.c.h.b16 %v2891
    %v4066 = vunpack.c.l.b16 %v2892
    %v4067 = vunpack.c.h.b16 %v2892
    %v4068 = vunpack.c.l.b16 %v2893
    %v4069 = vunpack.c.l.b16 %v2894
    %v4070 = vunpack.c.h.b16 %v2894
    %v4071 = vunpack.c.l.b16 %v2895
    %v4072 = vunpack.c.h.b16 %v2895
    %v4073 = vunpack.c.l.b16 %v2896
    %v4074 = vunpack.c.h.b16 %v2896
    %v4075 = vunpack.c.l.b16 %v2897
    %v4076 = vunpack.c.l.b16 %v2898
    %v4077 = vunpack.c.h.b16 %v2898
    %v4078 = vunpack.c.l.b16 %v2899
    %v4079 = vunpack.c.h.b16 %v2899
    %v4080 = vunpack.c.l.b16 %v2900
    %v4081 = vunpack.c.h.b16 %v2900
    %v4082 = vunpack.c.l.b16 %v2901
    %v4083 = vunpack.c.l.b16 %v2902
    %v4084 = vunpack.c.h.b16 %v2902
    %v4085 = vunpack.c.l.b16 %v2903
    %v4086 = vunpack.c.h.b16 %v2903
    %v4087 = vunpack.c.l.b16 %v2904
    %v4088 = vunpack.c.h.b16 %v2904
    %v4089 = vunpack.c.l.b16 %v2905
    %v4090 = vunpack.c.l.b16 %v2906
    %v4091 = vunpack.c.h.b16 %v2906
    %v4092 = vunpack.c.l.b16 %v2907
    %v4093 = vunpack.c.h.b16 %v2907
    %v4094 = vunpack.c.l.b16 %v2908
    %v4095 = vunpack.c.h.b16 %v2908
    %v4096 = vunpack.c.l.b16 %v2909
    %v4097 = vunpack.c.l.b16 %v2910
    %v4098 = vunpack.c.h.b16 %v2910
    %v4099 = vunpack.c.l.b16 %v2911
    %v4100 = vunpack.c.h.b16 %v2911
    %v4101 = vunpack.c.l.b16 %v2912
    %v4102 = vunpack.c.h.b16 %v2912
    %v4103 = vunpack.c.l.b16 %v2913
    %v4104 = vunpack.c.l.b16 %v2914
    %v4105 = vunpack.c.h.b16 %v2914
    %v4106 = vunpack.c.l.b16 %v2915
    %v4107 = vunpack.c.h.b16 %v2915
    %v4108 = vunpack.c.l.b16 %v2916
    %v4109 = vunpack.c.h.b16 %v2916
    %v4110 = vunpack.c.l.b16 %v2917
    %v4111 = vunpack.c.l.b16 %v2918
    %v4112 = vunpack.c.h.b16 %v2918
    %v4113 = vunpack.c.l.b16 %v2919
    %v4114 = vunpack.c.h.b16 %v2919
    %v4115 = vunpack.c.l.b16 %v2920
    %v4116 = vunpack.c.h.b16 %v2920
    %v4117 = vunpack.c.l.b16 %v2921
    %v4118 = vunpack.c.l.b16 %v2922
    %v4119 = vunpack.c.h.b16 %v2922
    %v4120 = vunpack.c.l.b16 %v2923
    %v4121 = vunpack.c.h.b16 %v2923
    %v4122 = vunpack.c.l.b16 %v2924
    %v4123 = vunpack.c.h.b16 %v2924
    %v4124 = vunpack.c.l.b16 %v2925
    %v4125 = vunpack.c.l.b16 %v2926
    %v4126 = vunpack.c.h.b16 %v2926
    %v4127 = vunpack.c.l.b16 %v2927
    %v4128 = vunpack.c.h.b16 %v2927
    %v4129 = vunpack.c.l.b16 %v2928
    %v4130 = vunpack.c.h.b16 %v2928
    %v4131 = vunpack.c.l.b16 %v2929
    %v4132 = vunpack.c.l.b16 %v2930
    %v4133 = vunpack.c.h.b16 %v2930
    %v4134 = vunpack.c.l.b16 %v2931
    %v4135 = vunpack.c.h.b16 %v2931
    %v4136 = vunpack.c.l.b16 %v2932
    %v4137 = vunpack.c.h.b16 %v2932
    %v4138 = vunpack.c.l.b16 %v2933
    %v4139 = vunpack.c.l.b16 %v2934
    %v4140 = vunpack.c.h.b16 %v2934
    %v4141 = vunpack.c.l.b16 %v2935
    %v4142 = vunpack.c.h.b16 %v2935
    %v4143 = vunpack.c.l.b16 %v2936
    %v4144 = vunpack.c.h.b16 %v2936
    %v4145 = vunpack.c.l.b16 %v2937
    %v4146 = vunpack.c.l.b16 %v2938
    %v4147 = vunpack.c.h.b16 %v2938
    %v4148 = vunpack.c.l.b16 %v2939
    %v4149 = vunpack.c.h.b16 %v2939
    %v4150 = vunpack.c.l.b16 %v2940
    %v4151 = vunpack.c.h.b16 %v2940
    %v4152 = vunpack.c.l.b16 %v2941
    %v4153 = vunpack.c.l.b16 %v2942
    %v4154 = vunpack.c.h.b16 %v2942
    %v4155 = vunpack.c.l.b16 %v2943
    %v4156 = vunpack.c.h.b16 %v2943
    %v4157 = vunpack.c.l.b16 %v2944
    %v4158 = vunpack.c.h.b16 %v2944
    %v4159 = vunpack.c.l.b16 %v2945
    %v4160 = vunpack.c.l.b16 %v2946
    %v4161 = vunpack.c.h.b16 %v2946
    %v4162 = vunpack.c.l.b16 %v2947
    %v4163 = vunpack.c.h.b16 %v2947
    %v4164 = vunpack.c.l.b16 %v2948
    %v4165 = vunpack.c.h.b16 %v2948
    %v4166 = vunpack.c.l.b16 %v2949
    %v4167 = vunpack.c.l.b16 %v2950
    %v4168 = vunpack.c.h.b16 %v2950
    %v4169 = vunpack.c.l.b16 %v2951
    %v4170 = vunpack.c.h.b16 %v2951
    %v4171 = vunpack.c.l.b16 %v2952
    %v4172 = vunpack.c.h.b16 %v2952
    %v4173 = vunpack.c.l.b16 %v2953
    %v4174 = vunpack.c.l.b16 %v2954
    %v4175 = vunpack.c.h.b16 %v2954
    %v4176 = vunpack.c.l.b16 %v2955
    %v4177 = vunpack.c.h.b16 %v2955
    %v4178 = vunpack.c.l.b16 %v2956
    %v4179 = vunpack.c.h.b16 %v2956
    %v4180 = vunpack.c.l.b16 %v2957
    %v4181 = vunpack.c.l.b16 %v2958
    %v4182 = vunpack.c.h.b16 %v2958
    %v4183 = vunpack.c.l.b16 %v2959
    %v4184 = vunpack.c.h.b16 %v2959
    %v4185 = vunpack.c.l.b16 %v2960
    %v4186 = vunpack.c.h.b16 %v2960
    %v4187 = vunpack.c.l.b16 %v2961
    %v4188 = vunpack.c.l.b16 %v2962
    %v4189 = vunpack.c.h.b16 %v2962
    %v4190 = vunpack.c.l.b16 %v2963
    %v4191 = vunpack.c.h.b16 %v2963
    %v4192 = vunpack.c.l.b16 %v2964
    %v4193 = vunpack.c.h.b16 %v2964
    %v4194 = vunpack.c.l.b16 %v2965
    %v4195 = vunpack.c.l.b16 %v2966
    %v4196 = vunpack.c.h.b16 %v2966
    %v4197 = vunpack.c.l.b16 %v2967
    %v4198 = vunpack.c.h.b16 %v2967
    %v4199 = vunpack.c.l.b16 %v2968
    %v4200 = vunpack.c.h.b16 %v2968
    %v4201 = vunpack.c.l.b16 %v2969
    %v4202 = vunpack.c.l.b16 %v2970
    %v4203 = vunpack.c.h.b16 %v2970
    %v4204 = vunpack.c.l.b16 %v2971
    %v4205 = vunpack.c.h.b16 %v2971
    %v4206 = vunpack.c.l.b16 %v2972
    %v4207 = vunpack.c.h.b16 %v2972
    %v4208 = vunpack.c.l.b16 %v2973
    %v4209 = vunpack.c.l.b16 %v2974
    %v4210 = vunpack.c.h.b16 %v2974
    %v4211 = vunpack.c.l.b16 %v2975
    %v4212 = vunpack.c.h.b16 %v2975
    %v4213 = vunpack.c.l.b16 %v2976
    %v4214 = vunpack.c.h.b16 %v2976
    %v4215 = vunpack.c.l.b16 %v2977
    %v4216 = vunpack.c.l.b16 %v2978
    %v4217 = vunpack.c.h.b16 %v2978
    %v4218 = vunpack.c.l.b16 %v2979
    %v4219 = vunpack.c.h.b16 %v2979
    %v4220 = vunpack.c.l.b16 %v2980
    %v4221 = vunpack.c.h.b16 %v2980
    %v4222 = vunpack.c.l.b16 %v2981
    %v4223 = vunpack.c.l.b16 %v2982
    %v4224 = vunpack.c.h.b16 %v2982
    %v4225 = vunpack.c.l.b16 %v2983
    %v4226 = vunpack.c.h.b16 %v2983
    %v4227 = vunpack.c.l.b16 %v2984
    %v4228 = vunpack.c.h.b16 %v2984
    %v4229 = vunpack.c.l.b16 %v2985
    %v4230 = vunpack.c.l.b16 %v2986
    %v4231 = vunpack.c.h.b16 %v2986
    %v4232 = vunpack.c.l.b16 %v2987
    %v4233 = vunpack.c.h.b16 %v2987
    %v4234 = vunpack.c.l.b16 %v2988
    %v4235 = vunpack.c.h.b16 %v2988
    %v4236 = vunpack.c.l.b16 %v2989
    %v4237 = vunpack.c.l.b16 %v2990
    %v4238 = vunpack.c.h.b16 %v2990
    %v4239 = vunpack.c.l.b16 %v2991
    %v4240 = vunpack.c.h.b16 %v2991
    %v4241 = vunpack.c.l.b16 %v2992
    %v4242 = vunpack.c.h.b16 %v2992
    %v4243 = vunpack.c.l.b16 %v2993
    %v4244 = vunpack.c.l.b16 %v2994
    %v4245 = vunpack.c.h.b16 %v2994
    %v4246 = vunpack.c.l.b16 %v2995
    %v4247 = vunpack.c.h.b16 %v2995
    %v4248 = vunpack.c.l.b16 %v2996
    %v4249 = vunpack.c.h.b16 %v2996
    %v4250 = vunpack.c.l.b16 %v2997
    %v4251 = vunpack.c.l.b16 %v2998
    %v4252 = vunpack.c.h.b16 %v2998
    %v4253 = vunpack.c.l.b16 %v2999
    %v4254 = vunpack.c.h.b16 %v2999
    %v4255 = vunpack.c.l.b16 %v3000
    %v4256 = vunpack.c.h.b16 %v3000
    %v4257 = vunpack.c.l.b16 %v3001
    %v4258 = vunpack.c.l.b16 %v3002
    %v4259 = vunpack.c.h.b16 %v3002
    %v4260 = vunpack.c.l.b16 %v3003
    %v4261 = vunpack.c.h.b16 %v3003
    %v4262 = vunpack.c.l.b16 %v3004
    %v4263 = vunpack.c.h.b16 %v3004
    %v4264 = vunpack.c.l.b16 %v3005
    %v4265 = vunpack.c.l.b16 %v3006
    %v4266 = vunpack.c.h.b16 %v3006
    %v4267 = vunpack.c.l.b16 %v3007
    %v4268 = vunpack.c.h.b16 %v3007
    %v4269 = vunpack.c.l.b16 %v3008
    %v4270 = vunpack.c.h.b16 %v3008
    %v4271 = vunpack.c.l.b16 %v3009
    %v4272 = vunpack.c.l.b16 %v3010
    %v4273 = vunpack.c.h.b16 %v3010
    %v4274 = vunpack.c.l.b16 %v3011
    %v4275 = vunpack.c.h.b16 %v3011
    %v4276 = vunpack.c.l.b16 %v3012
    %v4277 = vunpack.c.h.b16 %v3012
    %v4278 = vunpack.c.l.b16 %v3013
    %v4279 = vunpack.c.l.b16 %v3014
    %v4280 = vunpack.c.h.b16 %v3014
    %v4281 = vunpack.c.l.b16 %v3015
    %v4282 = vunpack.c.h.b16 %v3015
    %v4283 = vunpack.c.l.b16 %v3016
    %v4284 = vunpack.c.h.b16 %v3016
    %v4285 = vunpack.c.l.b16 %v3017
    %v4286 = vunpack.c.l.b16 %v3018
    %v4287 = vunpack.c.h.b16 %v3018
    %v4288 = vunpack.c.l.b16 %v3019
    %v4289 = vunpack.c.h.b16 %v3019
    %v4290 = vunpack.c.l.b16 %v3020
    %v4291 = vunpack.c.h.b16 %v3020
    %v4292 = vunpack.c.l.b16 %v3021
    %v4293 = vunpack.c.l.b16 %v3022
    %v4294 = vunpack.c.h.b16 %v3022
    %v4295 = vunpack.c.l.b16 %v3023
    %v4296 = vunpack.c.h.b16 %v3023
    %v4297 = vunpack.c.l.b16 %v3024
    %v4298 = vunpack.c.h.b16 %v3024
    %v4299 = vunpack.c.l.b16 %v3025
    %v4300 = vunpack.c.l.b16 %v3026
    %v4301 = vunpack.c.h.b16 %v3026
    %v4302 = vunpack.c.l.b16 %v3027
    %v4303 = vunpack.c.h.b16 %v3027
    %v4304 = vunpack.c.l.b16 %v3028
    %v4305 = vunpack.c.h.b16 %v3028
    %v4306 = vunpack.c.l.b16 %v3029
    %v4307 = vunpack.c.l.b16 %v3030
    %v4308 = vunpack.c.h.b16 %v3030
    %v4309 = vunpack.c.l.b16 %v3031
    %v4310 = vunpack.c.h.b16 %v3031
    %v4311 = vunpack.c.l.b16 %v3032
    %v4312 = vunpack.c.h.b16 %v3032
    %v4313 = vunpack.c.l.b16 %v3033
    %v4314 = vunpack.c.l.b16 %v3034
    %v4315 = vunpack.c.h.b16 %v3034
    %v4316 = vunpack.c.l.b16 %v3035
    %v4317 = vunpack.c.h.b16 %v3035
    %v4318 = vunpack.c.l.b16 %v3036
    %v4319 = vunpack.c.h.b16 %v3036
    %v4320 = vunpack.c.l.b16 %v3037
    %v4321 = vunpack.c.l.b16 %v3038
    %v4322 = vunpack.c.h.b16 %v3038
    %v4323 = vunpack.c.l.b16 %v3039
    %v4324 = vunpack.c.h.b16 %v3039
    %v4325 = vunpack.c.l.b16 %v3040
    %v4326 = vunpack.c.h.b16 %v3040
    %v4327 = vunpack.c.l.b16 %v3041
    %v4328 = vunpack.c.l.b16 %v3042
    %v4329 = vunpack.c.h.b16 %v3042
    %v4330 = vunpack.c.l.b16 %v3043
    %v4331 = vunpack.c.h.b16 %v3043
    %v4332 = vunpack.c.l.b16 %v3044
    %v4333 = vunpack.c.h.b16 %v3044
    %v4334 = vunpack.c.l.b16 %v3045
    %v4335 = vunpack.c.l.b16 %v3046
    %v4336 = vunpack.c.h.b16 %v3046
    %v4337 = vunpack.c.l.b16 %v3047
    %v4338 = vunpack.c.h.b16 %v3047
    %v4339 = vunpack.c.l.b16 %v3048
    %v4340 = vunpack.c.h.b16 %v3048
    %v4341 = vunpack.c.l.b16 %v3049
    %v4342 = vunpack.c.l.b16 %v3050
    %v4343 = vunpack.c.h.b16 %v3050
    %v4344 = vunpack.c.l.b16 %v3051
    %v4345 = vunpack.c.h.b16 %v3051
    %v4346 = vunpack.c.l.b16 %v3052
    %v4347 = vunpack.c.h.b16 %v3052
    %v4348 = vunpack.c.l.b16 %v3053
    %v4349 = vunpack.c.l.b16 %v3054
    %v4350 = vunpack.c.h.b16 %v3054
    %v4351 = vunpack.c.l.b16 %v3055
    %v4352 = vunpack.c.h.b16 %v3055
    %v4353 = vunpack.c.l.b16 %v3056
    %v4354 = vunpack.c.h.b16 %v3056
    %v4355 = vunpack.c.l.b16 %v3057
    %v4356 = vunpack.c.l.b16 %v3058
    %v4357 = vunpack.c.h.b16 %v3058
    %v4358 = vunpack.c.l.b16 %v3059
    %v4359 = vunpack.c.h.b16 %v3059
    %v4360 = vunpack.c.l.b16 %v3060
    %v4361 = vunpack.c.h.b16 %v3060
    %v4362 = vunpack.c.l.b16 %v3061
    %v4363 = vunpack.c.l.b16 %v3062
    %v4364 = vunpack.c.h.b16 %v3062
    %v4365 = vunpack.c.l.b16 %v3063
    %v4366 = vunpack.c.h.b16 %v3063
    %v4367 = vunpack.c.l.b16 %v3064
    %v4368 = vunpack.c.h.b16 %v3064
    %v4369 = vunpack.c.l.b16 %v3065
    %v4370 = vunpack.c.l.b16 %v3066
    %v4371 = vunpack.c.h.b16 %v3066
    %v4372 = vunpack.c.l.b16 %v3067
    %v4373 = vunpack.c.h.b16 %v3067
    %v4374 = vunpack.c.l.b16 %v3068
    %v4375 = vunpack.c.h.b16 %v3068
    %v4376 = vunpack.c.l.b16 %v3069
    %v4377 = vunpack.c.l.b16 %v3070
    %v4378 = vunpack.c.h.b16 %v3070
    %v4379 = vunpack.c.l.b16 %v3071
    %v4380 = vunpack.c.h.b16 %v3071
    %v4381 = vunpack.c.l.b16 %v3072
    %v4382 = vunpack.c.h.b16 %v3072
    %v4383 = vunpack.c.l.b16 %v3073
    %v4384 = vunpack.c.l.b16 %v3074
    %v4385 = vunpack.c.h.b16 %v3074
    %v4386 = vunpack.c.l.b16 %v3075
    %v4387 = vunpack.c.h.b16 %v3075
    %v4388 = vunpack.c.l.b16 %v3076
    %v4389 = vunpack.c.h.b16 %v3076
    %v4390 = vunpack.c.l.b16 %v3077
    %v4391 = vunpack.c.l.b16 %v3078
    %v4392 = vunpack.c.h.b16 %v3078
    %v4393 = vunpack.c.l.b16 %v3079
    %v4394 = vunpack.c.h.b16 %v3079
    %v4395 = vunpack.c.l.b16 %v3080
    %v4396 = vunpack.c.h.b16 %v3080
    %v4397 = vunpack.c.l.b16 %v3081
    %v4398 = vunpack.c.l.b16 %v3082
    %v4399 = vunpack.c.h.b16 %v3082
    %v4400 = vunpack.c.l.b16 %v3083
    %v4401 = vunpack.c.h.b16 %v3083
    %v4402 = vunpack.c.l.b16 %v3084
    %v4403 = vunpack.c.h.b16 %v3084
    %v4404 = vunpack.c.l.b16 %v3085
    %v4405 = vunpack.c.l.b16 %v3086
    %v4406 = vunpack.c.h.b16 %v3086
    %v4407 = vunpack.c.l.b16 %v3087
    %v4408 = vunpack.c.h.b16 %v3087
    %v4409 = vunpack.c.l.b16 %v3088
    %v4410 = vunpack.c.h.b16 %v3088
    %v4411 = vunpack.c.l.b16 %v3089
    %v4412 = vunpack.c.l.b16 %v3090
    %v4413 = vunpack.c.h.b16 %v3090
    %v4414 = vunpack.c.l.b16 %v3091
    %v4415 = vunpack.c.h.b16 %v3091
    %v4416 = vunpack.c.l.b16 %v3092
    %v4417 = vunpack.c.h.b16 %v3092
    %v4418 = vunpack.c.l.b16 %v3093
    %v4419 = vunpack.c.l.b16 %v3094
    %v4420 = vunpack.c.h.b16 %v3094
    %v4421 = vunpack.c.l.b16 %v3095
    %v4422 = vunpack.c.h.b16 %v3095
    %v4423 = vunpack.c.l.b16 %v3096
    %v4424 = vunpack.c.h.b16 %v3096
    %v4425 = vunpack.c.l.b16 %v3097
    %v4426 = vunpack.c.l.b16 %v3098
    %v4427 = vunpack.c.h.b16 %v3098
    %v4428 = vunpack.c.l.b16 %v3099
    %v4429 = vunpack.c.h.b16 %v3099
    %v4430 = vunpack.c.l.b16 %v3100
    %v4431 = vunpack.c.h.b16 %v3100
    %v4432 = vunpack.c.l.b16 %v3101
    %v4433 = vunpack.c.l.b16 %v3102
    %v4434 = vunpack.c.h.b16 %v3102
    %v4435 = vunpack.c.l.b16 %v3103
    %v4436 = vunpack.c.h.b16 %v3103
    %v4437 = vunpack.c.l.b16 %v3104
    %v4438 = vunpack.c.h.b16 %v3104
    %v4439 = vunpack.c.l.b16 %v3105
    %v4440 = vunpack.c.l.b16 %v3106
    %v4441 = vunpack.c.h.b16 %v3106
    %v4442 = vunpack.c.l.b16 %v3107
    %v4443 = vunpack.c.h.b16 %v3107
    %v4444 = vunpack.c.l.b16 %v3108
    %v4445 = vunpack.c.h.b16 %v3108
    %v4446 = vunpack.c.l.b16 %v3109
    %v4447 = vunpack.c.l.b16 %v3110
    %v4448 = vunpack.c.h.b16 %v3110
    %v4449 = vunpack.c.l.b16 %v3111
    %v4450 = vunpack.c.h.b16 %v3111
    %v4451 = vunpack.c.l.b16 %v3112
    %v4452 = vunpack.c.h.b16 %v3112
    %v4453 = vunpack.c.l.b16 %v3113
    %v4454 = vunpack.c.l.b16 %v3114
    %v4455 = vunpack.c.h.b16 %v3114
    %v4456 = vunpack.c.l.b16 %v3115
    %v4457 = vunpack.c.h.b16 %v3115
    %v4458 = vunpack.c.l.b16 %v3116
    %v4459 = vunpack.c.h.b16 %v3116
    %v4460 = vunpack.c.l.b16 %v3117
    %v4461 = vunpack.c.l.b16 %v3118
    %v4462 = vunpack.c.h.b16 %v3118
    %v4463 = vunpack.c.l.b16 %v3119
    %v4464 = vunpack.c.h.b16 %v3119
    %v4465 = vunpack.c.l.b16 %v3120
    %v4466 = vunpack.c.h.b16 %v3120
    %v4467 = vunpack.c.l.b16 %v3121
    %v4468 = vunpack.c.l.b16 %v3122
    %v4469 = vunpack.c.h.b16 %v3122
    %v4470 = vunpack.c.l.b16 %v3123
    %v4471 = vunpack.c.h.b16 %v3123
    %v4472 = vunpack.c.l.b16 %v3124
    %v4473 = vunpack.c.h.b16 %v3124
    %v4474 = vunpack.c.l.b16 %v3125
    %v4475 = vunpack.c.l.b16 %v3126
    %v4476 = vunpack.c.h.b16 %v3126
    %v4477 = vunpack.c.l.b16 %v3127
    %v4478 = vunpack.c.h.b16 %v3127
    %v4479 = vunpack.c.l.b16 %v3128
    %v4480 = vunpack.c.h.b16 %v3128
    %v4481 = vunpack.c.l.b16 %v3129
    %v4482 = vunpack.c.l.b16 %v3130
    %v4483 = vunpack.c.h.b16 %v3130
    %v4484 = vunpack.c.l.b16 %v3131
    %v4485 = vunpack.c.h.b16 %v3131
    %v4486 = vunpack.c.l.b16 %v3132
    %v4487 = vunpack.c.h.b16 %v3132
    %v4488 = vunpack.c.l.b16 %v3133
    %v4489 = vunpack.c.l.b16 %v3134
    %v4490 = vunpack.c.h.b16 %v3134
    %v4491 = vunpack.c.l.b16 %v3135
    %v4492 = vunpack.c.h.b16 %v3135
    %v4493 = vunpack.c.l.b16 %v3136
    %v4494 = vunpack.c.h.b16 %v3136
    %v4495 = vunpack.c.l.b16 %v3137
    %v4496 = vunpack.c.l.b16 %v3138
    %v4497 = vunpack.c.h.b16 %v3138
    %v4498 = vunpack.c.l.b16 %v3139
    %v4499 = vunpack.c.h.b16 %v3139
    %v4500 = vunpack.c.l.b16 %v3140
    %v4501 = vunpack.c.h.b16 %v3140
    %v4502 = vunpack.c.l.b16 %v3141
    %v4503 = vunpack.c.l.b16 %v3142
    %v4504 = vunpack.c.h.b16 %v3142
    %v4505 = vunpack.c.l.b16 %v3143
    %v4506 = vunpack.c.h.b16 %v3143
    %v4507 = vunpack.c.l.b16 %v3144
    %v4508 = vunpack.c.h.b16 %v3144
    %v4509 = vunpack.c.l.b16 %v3145
    %v4510 = vunpack.c.l.b16 %v3146
    %v4511 = vunpack.c.h.b16 %v3146
    %v4512 = vunpack.c.l.b16 %v3147
    %v4513 = vunpack.c.h.b16 %v3147
    %v4514 = vunpack.c.l.b16 %v3148
    %v4515 = vunpack.c.h.b16 %v3148
    %v4516 = vunpack.c.l.b16 %v3149
    %v4517 = vunpack.c.l.b16 %v3150
    %v4518 = vunpack.c.h.b16 %v3150
    %v4519 = vunpack.c.l.b16 %v3151
    %v4520 = vunpack.c.h.b16 %v3151
    %v4521 = vunpack.c.l.b16 %v3152
    %v4522 = vunpack.c.h.b16 %v3152
    %v4523 = vunpack.c.l.b16 %v3153
    %v4524 = vunpack.c.l.b16 %v3154
    %v4525 = vunpack.c.h.b16 %v3154
    %v4526 = vunpack.c.l.b16 %v3155
    %v4527 = vunpack.c.h.b16 %v3155
    %v4528 = vunpack.c.l.b16 %v3156
    %v4529 = vunpack.c.h.b16 %v3156
    %v4530 = vunpack.c.l.b16 %v3157
    %v4531 = vunpack.c.l.b16 %v3158
    %v4532 = vunpack.c.h.b16 %v3158
    %v4533 = vunpack.c.l.b16 %v3159
    %v4534 = vunpack.c.h.b16 %v3159
    %v4535 = vunpack.c.l.b16 %v3160
    %v4536 = vunpack.c.h.b16 %v3160
    %v4537 = vunpack.c.l.b16 %v3161
    %v4538 = vunpack.c.l.b16 %v3162
    %v4539 = vunpack.c.h.b16 %v3162
    %v4540 = vunpack.c.l.b16 %v3163
    %v4541 = vunpack.c.h.b16 %v3163
    %v4542 = vunpack.c.l.b16 %v3164
    %v4543 = vunpack.c.h.b16 %v3164
    %v4544 = vunpack.c.l.b16 %v3165
    %v4545 = vunpack.c.l.b16 %v3166
    %v4546 = vunpack.c.h.b16 %v3166
    %v4547 = vunpack.c.l.b16 %v3167
    %v4548 = vunpack.c.h.b16 %v3167
    %v4549 = vunpack.c.l.b16 %v3168
    %v4550 = vunpack.c.h.b16 %v3168
    %v4551 = vunpack.c.l.b16 %v3169
    %v4552 = vunpack.c.l.b16 %v3170
    %v4553 = vunpack.c.h.b16 %v3170
    %v4554 = vunpack.c.l.b16 %v3171
    %v4555 = vunpack.c.h.b16 %v3171
    %v4556 = vunpack.c.l.b16 %v3172
    %v4557 = vunpack.c.h.b16 %v3172
    %v4558 = vunpack.c.l.b16 %v3173
    %v4559 = vunpack.c.l.b16 %v3174
    %v4560 = vunpack.c.h.b16 %v3174
    %v4561 = vunpack.c.l.b16 %v3175
    %v4562 = vunpack.c.h.b16 %v3175
    %v4563 = vunpack.c.l.b16 %v3176
    %v4564 = vunpack.c.h.b16 %v3176
    %v4565 = vunpack.c.l.b16 %v3177
    %v4566 = vunpack.c.l.b16 %v3178
    %v4567 = vunpack.c.h.b16 %v3178
    %v4568 = vunpack.c.l.b16 %v3179
    %v4569 = vunpack.c.h.b16 %v3179
    %v4570 = vunpack.c.l.b16 %v3180
    %v4571 = vunpack.c.h.b16 %v3180
    %v4572 = vunpack.c.l.b16 %v3181
    %v4573 = vunpack.c.l.b16 %v3182
    %v4574 = vunpack.c.h.b16 %v3182
    %v4575 = vunpack.c.l.b16 %v3183
    %v4576 = vunpack.c.h.b16 %v3183
    %v4577 = vunpack.c.l.b16 %v3184
    %v4578 = vunpack.c.h.b16 %v3184
    %v4579 = vunpack.c.l.b16 %v3185
    %v4580 = vunpack.c.l.b16 %v3186
    %v4581 = vunpack.c.h.b16 %v3186
    %v4582 = vunpack.c.l.b16 %v3187
    %v4583 = vunpack.c.h.b16 %v3187
    %v4584 = vunpack.c.l.b16 %v3188
    %v4585 = vunpack.c.h.b16 %v3188
    %v4586 = vunpack.c.l.b16 %v3189
    %v4587 = vunpack.c.l.b16 %v3190
    %v4588 = vunpack.c.h.b16 %v3190
    %v4589 = vunpack.c.l.b16 %v3191
    %v4590 = vunpack.c.h.b16 %v3191
    %v4591 = vunpack.c.l.b16 %v3192
    %v4592 = vunpack.c.h.b16 %v3192
    %v4593 = vunpack.c.l.b16 %v3193
    %v4594 = vunpack.c.l.b16 %v3194
    %v4595 = vunpack.c.h.b16 %v3194
    %v4596 = vunpack.c.l.b16 %v3195
    %v4597 = vunpack.c.h.b16 %v3195
    %v4598 = vunpack.c.l.b16 %v3196
    %v4599 = vunpack.c.h.b16 %v3196
    %v4600 = vunpack.c.l.b16 %v3197
    %v4601 = vunpack.c.l.b16 %v3198
    %v4602 = vunpack.c.h.b16 %v3198
    %v4603 = vunpack.c.l.b16 %v3199
    %v4604 = vunpack.c.h.b16 %v3199
    %v4605 = vunpack.c.l.b16 %v3200
    %v4606 = vunpack.c.h.b16 %v3200
    %v4607 = vunpack.c.l.b16 %v3201
    %v4608 = vunpack.c.l.b16 %v3202
    %v4609 = vunpack.c.h.b16 %v3202
    %v4610 = vunpack.c.l.b16 %v3203
    %v4611 = vunpack.c.h.b16 %v3203
    %v4612 = vunpack.c.l.b16 %v3204
    %v4613 = vunpack.c.h.b16 %v3204
    %v4614 = vunpack.c.l.b16 %v3205
    %v4615 = vunpack.c.l.b16 %v3206
    %v4616 = vunpack.c.h.b16 %v3206
    %v4617 = vunpack.c.l.b16 %v3207
    %v4618 = vunpack.c.h.b16 %v3207
    %v4619 = vunpack.c.l.b16 %v3208
    %v4620 = vunpack.c.h.b16 %v3208
    %v4621 = vunpack.c.l.b16 %v3209
    %v4622 = vunpack.c.l.b16 %v3210
    %v4623 = vunpack.c.h.b16 %v3210
    %v4624 = vunpack.c.l.b16 %v3211
    %v4625 = vunpack.c.h.b16 %v3211
    %v4626 = vunpack.c.l.b16 %v3212
    %v4627 = vunpack.c.h.b16 %v3212
    %v4628 = vunpack.c.l.b16 %v3213
    %v4629 = vunpack.c.l.b16 %v3214
    %v4630 = vunpack.c.h.b16 %v3214
    %v4631 = vunpack.c.l.b16 %v3215
    %v4632 = vunpack.c.h.b16 %v3215
    %v4633 = vunpack.c.l.b16 %v3216
    %v4634 = vunpack.c.h.b16 %v3216
    %v4635 = vunpack.c.l.b16 %v3217
    %v4636 = vunpack.c.l.b16 %v3218
    %v4637 = vunpack.c.h.b16 %v3218
    %v4638 = vunpack.c.l.b16 %v3219
    %v4639 = vunpack.c.h.b16 %v3219
    %v4640 = vunpack.c.l.b16 %v3220
    %v4641 = vunpack.c.h.b16 %v3220
    %v4642 = vunpack.c.l.b16 %v3221
    %v4643 = vunpack.c.l.b16 %v3222
    %v4644 = vunpack.c.h.b16 %v3222
    %v4645 = vunpack.c.l.b16 %v3223
    %v4646 = vunpack.c.h.b16 %v3223
    %v4647 = vunpack.c.l.b16 %v3224
    %v4648 = vunpack.c.h.b16 %v3224
    %v4649 = vunpack.c.l.b16 %v3225
    %v4650 = vunpack.c.l.b16 %v3226
    %v4651 = vunpack.c.h.b16 %v3226
    %v4652 = vunpack.c.l.b16 %v3227
    %v4653 = vunpack.c.h.b16 %v3227
    %v4654 = vunpack.c.l.b16 %v3228
    %v4655 = vunpack.c.h.b16 %v3228
    %v4656 = vunpack.c.l.b16 %v3229
    %v4657 = vunpack.c.l.b16 %v3230
    %v4658 = vunpack.c.h.b16 %v3230
    %v4659 = vunpack.c.l.b16 %v3231
    %v4660 = vunpack.c.h.b16 %v3231
    %v4661 = vunpack.c.l.b16 %v3232
    %v4662 = vunpack.c.h.b16 %v3232
    %v4663 = vunpack.c.l.b16 %v3233
    %v4664 = vunpack.c.l.b16 %v3234
    %v4665 = vunpack.c.h.b16 %v3234
    %v4666 = vunpack.c.l.b16 %v3235
    %v4667 = vunpack.c.h.b16 %v3235
    %v4668 = vunpack.c.l.b16 %v3236
    %v4669 = vunpack.c.h.b16 %v3236
    %v4670 = vunpack.c.l.b16 %v3237
    %v4671 = vunpack.c.l.b16 %v3238
    %v4672 = vunpack.c.h.b16 %v3238
    %v4673 = vunpack.c.l.b16 %v3239
    %v4674 = vunpack.c.h.b16 %v3239
    %v4675 = vunpack.c.l.b16 %v3240
    %v4676 = vunpack.c.h.b16 %v3240
    %v4677 = vunpack.c.l.b16 %v3241
    %v4678 = vunpack.c.l.b16 %v3242
    %v4679 = vunpack.c.h.b16 %v3242
    %v4680 = vunpack.c.l.b16 %v3243
    %v4681 = vunpack.c.h.b16 %v3243
    %v4682 = vunpack.c.l.b16 %v3244
    %v4683 = vunpack.c.h.b16 %v3244
    %v4684 = vunpack.c.l.b16 %v3245
    %v4685 = vunpack.c.l.b16 %v3246
    %v4686 = vunpack.c.h.b16 %v3246
    %v4687 = vunpack.c.l.b16 %v3247
    %v4688 = vunpack.c.h.b16 %v3247
    %v4689 = vunpack.c.l.b16 %v3248
    %v4690 = vunpack.c.h.b16 %v3248
    %v4691 = vunpack.c.l.b16 %v3249
    %v4692 = vunpack.c.l.b16 %v3250
    %v4693 = vunpack.c.h.b16 %v3250
    %v4694 = vunpack.c.l.b16 %v3251
    %v4695 = vunpack.c.h.b16 %v3251
    %v4696 = vunpack.c.l.b16 %v3252
    %v4697 = vunpack.c.h.b16 %v3252
    %v4698 = vunpack.c.l.b16 %v3253
    %v4699 = vpack.c.b16 %v3810, %v3803
    %v4700 = vpack.c.b16 %v3811, %v3804
    %v4701 = vpack.c.b16 %v3812, %v3805
    %v4702 = vpack.c.b16 %v3813, %v3806
    %v4703 = vpack.c.b16 %v3814, %v3807
    %v4704 = vpack.c.b16 %v3815, %v3808
    %v4705 = vpack.c.b16 %v3816, %v3809
    %v4706 = vpack.c.b16 %v3824, %v3817
    %v4707 = vpack.c.b16 %v3825, %v3818
    %v4708 = vpack.c.b16 %v3826, %v3819
    %v4709 = vpack.c.b16 %v3827, %v3820
    %v4710 = vpack.c.b16 %v3828, %v3821
    %v4711 = vpack.c.b16 %v3829, %v3822
    %v4712 = vpack.c.b16 %v3830, %v3823
    %v4713 = vpack.c.b16 %v3838, %v3831
    %v4714 = vpack.c.b16 %v3839, %v3832
    %v4715 = vpack.c.b16 %v3840, %v3833
    %v4716 = vpack.c.b16 %v3841, %v3834
    %v4717 = vpack.c.b16 %v3842, %v3835
    %v4718 = vpack.c.b16 %v3843, %v3836
    %v4719 = vpack.c.b16 %v3844, %v3837
    %v4720 = vpack.c.b16 %v3852, %v3845
    %v4721 = vpack.c.b16 %v3853, %v3846
    %v4722 = vpack.c.b16 %v3854, %v3847
    %v4723 = vpack.c.b16 %v3855, %v3848
    %v4724 = vpack.c.b16 %v3856, %v3849
    %v4725 = vpack.c.b16 %v3857, %v3850
    %v4726 = vpack.c.b16 %v3858, %v3851
    %v4727 = vpack.c.b16 %v3866, %v3859
    %v4728 = vpack.c.b16 %v3867, %v3860
    %v4729 = vpack.c.b16 %v3868, %v3861
    %v4730 = vpack.c.b16 %v3869, %v3862
    %v4731 = vpack.c.b16 %v3870, %v3863
    %v4732 = vpack.c.b16 %v3871, %v3864
    %v4733 = vpack.c.b16 %v3872, %v3865
    %v4734 = vpack.c.b16 %v3880, %v3873
    %v4735 = vpack.c.b16 %v3881, %v3874
    %v4736 = vpack.c.b16 %v3882, %v3875
    %v4737 = vpack.c.b16 %v3883, %v3876
    %v4738 = vpack.c.b16 %v3884, %v3877
    %v4739 = vpack.c.b16 %v3885, %v3878
    %v4740 = vpack.c.b16 %v3886, %v3879
    %v4741 = vpack.c.b16 %v3894, %v3887
    %v4742 = vpack.c.b16 %v3895, %v3888
    %v4743 = vpack.c.b16 %v3896, %v3889
    %v4744 = vpack.c.b16 %v3897, %v3890
    %v4745 = vpack.c.b16 %v3898, %v3891
    %v4746 = vpack.c.b16 %v3899, %v3892
    %v4747 = vpack.c.b16 %v3900, %v3893
    %v4748 = vpack.c.b16 %v3908, %v3901
    %v4749 = vpack.c.b16 %v3909, %v3902
    %v4750 = vpack.c.b16 %v3910, %v3903
    %v4751 = vpack.c.b16 %v3911, %v3904
    %v4752 = vpack.c.b16 %v3912, %v3905
    %v4753 = vpack.c.b16 %v3913, %v3906
    %v4754 = vpack.c.b16 %v3914, %v3907
    %v4755 = vpack.c.b16 %v3922, %v3915
    %v4756 = vpack.c.b16 %v3923, %v3916
    %v4757 = vpack.c.b16 %v3924, %v3917
    %v4758 = vpack.c.b16 %v3925, %v3918
    %v4759 = vpack.c.b16 %v3926, %v3919
    %v4760 = vpack.c.b16 %v3927, %v3920
    %v4761 = vpack.c.b16 %v3928, %v3921
    %v4762 = vpack.c.b16 %v3936, %v3929
    %v4763 = vpack.c.b16 %v3937, %v3930
    %v4764 = vpack.c.b16 %v3938, %v3931
    %v4765 = vpack.c.b16 %v3939, %v3932
    %v4766 = vpack.c.b16 %v3940, %v3933
    %v4767 = vpack.c.b16 %v3941, %v3934
    %v4768 = vpack.c.b16 %v3942, %v3935
    %v4769 = vpack.c.b16 %v3950, %v3943
    %v4770 = vpack.c.b16 %v3951, %v3944
    %v4771 = vpack.c.b16 %v3952, %v3945
    %v4772 = vpack.c.b16 %v3953, %v3946
    %v4773 = vpack.c.b16 %v3954, %v3947
    %v4774 = vpack.c.b16 %v3955, %v3948
    %v4775 = vpack.c.b16 %v3956, %v3949
    %v4776 = vpack.c.b16 %v3964, %v3957
    %v4777 = vpack.c.b16 %v3965, %v3958
    %v4778 = vpack.c.b16 %v3966, %v3959
    %v4779 = vpack.c.b16 %v3967, %v3960
    %v4780 = vpack.c.b16 %v3968, %v3961
    %v4781 = vpack.c.b16 %v3969, %v3962
    %v4782 = vpack.c.b16 %v3970, %v3963
    %v4783 = vpack.c.b16 %v3978, %v3971
    %v4784 = vpack.c.b16 %v3979, %v3972
    %v4785 = vpack.c.b16 %v3980, %v3973
    %v4786 = vpack.c.b16 %v3981, %v3974
    %v4787 = vpack.c.b16 %v3982, %v3975
    %v4788 = vpack.c.b16 %v3983, %v3976
    %v4789 = vpack.c.b16 %v3984, %v3977
    %v4790 = vpack.c.b16 %v3992, %v3985
    %v4791 = vpack.c.b16 %v3993, %v3986
    %v4792 = vpack.c.b16 %v3994, %v3987
    %v4793 = vpack.c.b16 %v3995, %v3988
    %v4794 = vpack.c.b16 %v3996, %v3989
    %v4795 = vpack.c.b16 %v3997, %v3990
    %v4796 = vpack.c.b16 %v3998, %v3991
    %v4797 = vpack.c.b16 %v4006, %v3999
    %v4798 = vpack.c.b16 %v4007, %v4000
    %v4799 = vpack.c.b16 %v4008, %v4001
    %v4800 = vpack.c.b16 %v4009, %v4002
    %v4801 = vpack.c.b16 %v4010, %v4003
    %v4802 = vpack.c.b16 %v4011, %v4004
    %v4803 = vpack.c.b16 %v4012, %v4005
    %v4804 = vpack.c.b16 %v4020, %v4013
    %v4805 = vpack.c.b16 %v4021, %v4014
    %v4806 = vpack.c.b16 %v4022, %v4015
    %v4807 = vpack.c.b16 %v4023, %v4016
    %v4808 = vpack.c.b16 %v4024, %v4017
    %v4809 = vpack.c.b16 %v4025, %v4018
    %v4810 = vpack.c.b16 %v4026, %v4019
    %v4811 = vpack.c.b16 %v4034, %v4027
    %v4812 = vpack.c.b16 %v4035, %v4028
    %v4813 = vpack.c.b16 %v4036, %v4029
    %v4814 = vpack.c.b16 %v4037, %v4030
    %v4815 = vpack.c.b16 %v4038, %v4031
    %v4816 = vpack.c.b16 %v4039, %v4032
    %v4817 = vpack.c.b16 %v4040, %v4033
    %v4818 = vpack.c.b16 %v4048, %v4041
    %v4819 = vpack.c.b16 %v4049, %v4042
    %v4820 = vpack.c.b16 %v4050, %v4043
    %v4821 = vpack.c.b16 %v4051, %v4044
    %v4822 = vpack.c.b16 %v4052, %v4045
    %v4823 = vpack.c.b16 %v4053, %v4046
    %v4824 = vpack.c.b16 %v4054, %v4047
    %v4825 = vpack.c.b16 %v4062, %v4055
    %v4826 = vpack.c.b16 %v4063, %v4056
    %v4827 = vpack.c.b16 %v4064, %v4057
    %v4828 = vpack.c.b16 %v4065, %v4058
    %v4829 = vpack.c.b16 %v4066, %v4059
    %v4830 = vpack.c.b16 %v4067, %v4060
    %v4831 = vpack.c.b16 %v4068, %v4061
    %v4832 = vpack.c.b16 %v4076, %v4069
    %v4833 = vpack.c.b16 %v4077, %v4070
    %v4834 = vpack.c.b16 %v4078, %v4071
    %v4835 = vpack.c.b16 %v4079, %v4072
    %v4836 = vpack.c.b16 %v4080, %v4073
    %v4837 = vpack.c.b16 %v4081, %v4074
    %v4838 = vpack.c.b16 %v4082, %v4075
    %v4839 = vpack.c.b16 %v4090, %v4083
    %v4840 = vpack.c.b16 %v4091, %v4084
    %v4841 = vpack.c.b16 %v4092, %v4085
    %v4842 = vpack.c.b16 %v4093, %v4086
    %v4843 = vpack.c.b16 %v4094, %v4087
    %v4844 = vpack.c.b16 %v4095, %v4088
    %v4845 = vpack.c.b16 %v4096, %v4089
    %v4846 = vpack.c.b16 %v4104, %v4097
    %v4847 = vpack.c.b16 %v4105, %v4098
    %v4848 = vpack.c.b16 %v4106, %v4099
    %v4849 = vpack.c.b16 %v4107, %v4100
    %v4850 = vpack.c.b16 %v4108, %v4101
    %v4851 = vpack.c.b16 %v4109, %v4102
    %v4852 = vpack.c.b16 %v4110, %v4103
    %v4853 = vpack.c.b16 %v4118, %v4111
    %v4854 = vpack.c.b16 %v4119, %v4112
    %v4855 = vpack.c.b16 %v4120, %v4113
    %v4856 = vpack.c.b16 %v4121, %v4114
    %v4857 = vpack.c.b16 %v4122, %v4115
    %v4858 = vpack.c.b16 %v4123, %v4116
    %v4859 = vpack.c.b16 %v4124, %v4117
    %v4860 = vpack.c.b16 %v4132, %v4125
    %v4861 = vpack.c.b16 %v4133, %v4126
    %v4862 = vpack.c.b16 %v4134, %v4127
    %v4863 = vpack.c.b16 %v4135, %v4128
    %v4864 = vpack.c.b16 %v4136, %v4129
    %v4865 = vpack.c.b16 %v4137, %v4130
    %v4866 = vpack.c.b16 %v4138, %v4131
    %v4867 = vpack.c.b16 %v4146, %v4139
    %v4868 = vpack.c.b16 %v4147, %v4140
    %v4869 = vpack.c.b16 %v4148, %v4141
    %v4870 = vpack.c.b16 %v4149, %v4142
    %v4871 = vpack.c.b16 %v4150, %v4143
    %v4872 = vpack.c.b16 %v4151, %v4144
    %v4873 = vpack.c.b16 %v4152, %v4145
    %v4874 = vpack.c.b16 %v4160, %v4153
    %v4875 = vpack.c.b16 %v4161, %v4154
    %v4876 = vpack.c.b16 %v4162, %v4155
    %v4877 = vpack.c.b16 %v4163, %v4156
    %v4878 = vpack.c.b16 %v4164, %v4157
    %v4879 = vpack.c.b16 %v4165, %v4158
    %v4880 = vpack.c.b16 %v4166, %v4159
    %v4881 = vpack.c.b16 %v4174, %v4167
    %v4882 = vpack.c.b16 %v4175, %v4168
    %v4883 = vpack.c.b16 %v4176, %v4169
    %v4884 = vpack.c.b16 %v4177, %v4170
    %v4885 = vpack.c.b16 %v4178, %v4171
    %v4886 = vpack.c.b16 %v4179, %v4172
    %v4887 = vpack.c.b16 %v4180, %v4173
    %v4888 = vpack.c.b16 %v4188, %v4181
    %v4889 = vpack.c.b16 %v4189, %v4182
    %v4890 = vpack.c.b16 %v4190, %v4183
    %v4891 = vpack.c.b16 %v4191, %v4184
    %v4892 = vpack.c.b16 %v4192, %v4185
    %v4893 = vpack.c.b16 %v4193, %v4186
    %v4894 = vpack.c.b16 %v4194, %v4187
    %v4895 = vpack.c.b16 %v4202, %v4195
    %v4896 = vpack.c.b16 %v4203, %v4196
    %v4897 = vpack.c.b16 %v4204, %v4197
    %v4898 = vpack.c.b16 %v4205, %v4198
    %v4899 = vpack.c.b16 %v4206, %v4199
    %v4900 = vpack.c.b16 %v4207, %v4200
    %v4901 = vpack.c.b16 %v4208, %v4201
    %v4902 = vpack.c.b16 %v4216, %v4209
    %v4903 = vpack.c.b16 %v4217, %v4210
    %v4904 = vpack.c.b16 %v4218, %v4211
    %v4905 = vpack.c.b16 %v4219, %v4212
    %v4906 = vpack.c.b16 %v4220, %v4213
    %v4907 = vpack.c.b16 %v4221, %v4214
    %v4908 = vpack.c.b16 %v4222, %v4215
    %v4909 = vpack.c.b16 %v4230, %v4223
    %v4910 = vpack.c.b16 %v4231, %v4224
    %v4911 = vpack.c.b16 %v4232, %v4225
    %v4912 = vpack.c.b16 %v4233, %v4226
    %v4913 = vpack.c.b16 %v4234, %v4227
    %v4914 = vpack.c.b16 %v4235, %v4228
    %v4915 = vpack.c.b16 %v4236, %v4229
    %v4916 = vpack.c.b16 %v4244, %v4237
    %v4917 = vpack.c.b16 %v4245, %v4238
    %v4918 = vpack.c.b16 %v4246, %v4239
    %v4919 = vpack.c.b16 %v4247, %v4240
    %v4920 = vpack.c.b16 %v4248, %v4241
    %v4921 = vpack.c.b16 %v4249, %v4242
    %v4922 = vpack.c.b16 %v4250, %v4243
    %v4923 = vpack.c.b16 %v4258, %v4251
    %v4924 = vpack.c.b16 %v4259, %v4252
    %v4925 = vpack.c.b16 %v4260, %v4253
    %v4926 = vpack.c.b16 %v4261, %v4254
    %v4927 = vpack.c.b16 %v4262, %v4255
    %v4928 = vpack.c.b16 %v4263, %v4256
    %v4929 = vpack.c.b16 %v4264, %v4257
    %v4930 = vpack.c.b16 %v4272, %v4265
    %v4931 = vpack.c.b16 %v4273, %v4266
    %v4932 = vpack.c.b16 %v4274, %v4267
    %v4933 = vpack.c.b16 %v4275, %v4268
    %v4934 = vpack.c.b16 %v4276, %v4269
    %v4935 = vpack.c.b16 %v4277, %v4270
    %v4936 = vpack.c.b16 %v4278, %v4271
    %v4937 = vpack.c.b16 %v4286, %v4279
    %v4938 = vpack.c.b16 %v4287, %v4280
    %v4939 = vpack.c.b16 %v4288, %v4281
    %v4940 = vpack.c.b16 %v4289, %v4282
    %v4941 = vpack.c.b16 %v4290, %v4283
    %v4942 = vpack.c.b16 %v4291, %v4284
    %v4943 = vpack.c.b16 %v4292, %v4285
    %v4944 = vpack.c.b16 %v4300, %v4293
    %v4945 = vpack.c.b16 %v4301, %v4294
    %v4946 = vpack.c.b16 %v4302, %v4295
    %v4947 = vpack.c.b16 %v4303, %v4296
    %v4948 = vpack.c.b16 %v4304, %v4297
    %v4949 = vpack.c.b16 %v4305, %v4298
    %v4950 = vpack.c.b16 %v4306, %v4299
    %v4951 = vpack.c.b16 %v4314, %v4307
    %v4952 = vpack.c.b16 %v4315, %v4308
    %v4953 = vpack.c.b16 %v4316, %v4309
    %v4954 = vpack.c.b16 %v4317, %v4310
    %v4955 = vpack.c.b16 %v4318, %v4311
    %v4956 = vpack.c.b16 %v4319, %v4312
    %v4957 = vpack.c.b16 %v4320, %v4313
    %v4958 = vpack.c.b16 %v4328, %v4321
    %v4959 = vpack.c.b16 %v4329, %v4322
    %v4960 = vpack.c.b16 %v4330, %v4323
    %v4961 = vpack.c.b16 %v4331, %v4324
    %v4962 = vpack.c.b16 %v4332, %v4325
    %v4963 = vpack.c.b16 %v4333, %v4326
    %v4964 = vpack.c.b16 %v4334, %v4327
    %v4965 = vpack.c.b16 %v4342, %v4335
    %v4966 = vpack.c.b16 %v4343, %v4336
    %v4967 = vpack.c.b16 %v4344, %v4337
    %v4968 = vpack.c.b16 %v4345, %v4338
    %v4969 = vpack.c.b16 %v4346, %v4339
    %v4970 = vpack.c.b16 %v4347, %v4340
    %v4971 = vpack.c.b16 %v4348, %v4341
    %v4972 = vpack.c.b16 %v4356, %v4349
    %v4973 = vpack.c.b16 %v4357, %v4350
    %v4974 = vpack.c.b16 %v4358, %v4351
    %v4975 = vpack.c.b16 %v4359, %v4352
    %v4976 = vpack.c.b16 %v4360, %v4353
    %v4977 = vpack.c.b16 %v4361, %v4354
    %v4978 = vpack.c.b16 %v4362, %v4355
    %v4979 = vpack.c.b16 %v4370, %v4363
    %v4980 = vpack.c.b16 %v4371, %v4364
    %v4981 = vpack.c.b16 %v4372, %v4365
    %v4982 = vpack.c.b16 %v4373, %v4366
    %v4983 = vpack.c.b16 %v4374, %v4367
    %v4984 = vpack.c.b16 %v4375, %v4368
    %v4985 = vpack.c.b16 %v4376, %v4369
    %v4986 = vpack.c.b16 %v4384, %v4377
    %v4987 = vpack.c.b16 %v4385, %v4378
    %v4988 = vpack.c.b16 %v4386, %v4379
    %v4989 = vpack.c.b16 %v4387, %v4380
    %v4990 = vpack.c.b16 %v4388, %v4381
    %v4991 = vpack.c.b16 %v4389, %v4382
    %v4992 = vpack.c.b16 %v4390, %v4383
    %v4993 = vpack.c.b16 %v4398, %v4391
    %v4994 = vpack.c.b16 %v4399, %v4392
    %v4995 = vpack.c.b16 %v4400, %v4393
    %v4996 = vpack.c.b16 %v4401, %v4394
    %v4997 = vpack.c.b16 %v4402, %v4395
    %v4998 = vpack.c.b16 %v4403, %v4396
    %v4999 = vpack.c.b16 %v4404, %v4397
    %v5000 = vpack.c.b16 %v4412, %v4405
    %v5001 = vpack.c.b16 %v4413, %v4406
    %v5002 = vpack.c.b16 %v4414, %v4407
    %v5003 = vpack.c.b16 %v4415, %v4408
    %v5004 = vpack.c.b16 %v4416, %v4409
    %v5005 = vpack.c.b16 %v4417, %v4410
    %v5006 = vpack.c.b16 %v4418, %v4411
    %v5007 = vpack.c.b16 %v4426, %v4419
    %v5008 = vpack.c.b16 %v4427, %v4420
    %v5009 = vpack.c.b16 %v4428, %v4421
    %v5010 = vpack.c.b16 %v4429, %v4422
    %v5011 = vpack.c.b16 %v4430, %v4423
    %v5012 = vpack.c.b16 %v4431, %v4424
    %v5013 = vpack.c.b16 %v4432, %v4425
    %v5014 = vpack.c.b16 %v4440, %v4433
    %v5015 = vpack.c.b16 %v4441, %v4434
    %v5016 = vpack.c.b16 %v4442, %v4435
    %v5017 = vpack.c.b16 %v4443, %v4436
    %v5018 = vpack.c.b16 %v4444, %v4437
    %v5019 = vpack.c.b16 %v4445, %v4438
    %v5020 = vpack.c.b16 %v4446, %v4439
    %v5021 = vpack.c.b16 %v4454, %v4447
    %v5022 = vpack.c.b16 %v4455, %v4448
    %v5023 = vpack.c.b16 %v4456, %v4449
    %v5024 = vpack.c.b16 %v4457, %v4450
    %v5025 = vpack.c.b16 %v4458, %v4451
    %v5026 = vpack.c.b16 %v4459, %v4452
    %v5027 = vpack.c.b16 %v4460, %v4453
    %v5028 = vpack.c.b16 %v4468, %v4461
    %v5029 = vpack.c.b16 %v4469, %v4462
    %v5030 = vpack.c.b16 %v4470, %v4463
    %v5031 = vpack.c.b16 %v4471, %v4464
    %v5032 = vpack.c.b16 %v4472, %v4465
    %v5033 = vpack.c.b16 %v4473, %v4466
    %v5034 = vpack.c.b16 %v4474, %v4467
    %v5035 = vpack.c.b16 %v4482, %v4475
    %v5036 = vpack.c.b16 %v4483, %v4476
    %v5037 = vpack.c.b16 %v4484, %v4477
    %v5038 = vpack.c.b16 %v4485, %v4478
    %v5039 = vpack.c.b16 %v4486, %v4479
    %v5040 = vpack.c.b16 %v4487, %v4480
    %v5041 = vpack.c.b16 %v4488, %v4481
    %v5042 = vpack.c.b16 %v4496, %v4489
    %v5043 = vpack.c.b16 %v4497, %v4490
    %v5044 = vpack.c.b16 %v4498, %v4491
    %v5045 = vpack.c.b16 %v4499, %v4492
    %v5046 = vpack.c.b16 %v4500, %v4493
    %v5047 = vpack.c.b16 %v4501, %v4494
    %v5048 = vpack.c.b16 %v4502, %v4495
    %v5049 = vpack.c.b16 %v4510, %v4503
    %v5050 = vpack.c.b16 %v4511, %v4504
    %v5051 = vpack.c.b16 %v4512, %v4505
    %v5052 = vpack.c.b16 %v4513, %v4506
    %v5053 = vpack.c.b16 %v4514, %v4507
    %v5054 = vpack.c.b16 %v4515, %v4508
    %v5055 = vpack.c.b16 %v4516, %v4509
    %v5056 = vpack.c.b16 %v4524, %v4517
    %v5057 = vpack.c.b16 %v4525, %v4518
    %v5058 = vpack.c.b16 %v4526, %v4519
    %v5059 = vpack.c.b16 %v4527, %v4520
    %v5060 = vpack.c.b16 %v4528, %v4521
    %v5061 = vpack.c.b16 %v4529, %v4522
    %v5062 = vpack.c.b16 %v4530, %v4523
    %v5063 = vpack.c.b16 %v4538, %v4531
    %v5064 = vpack.c.b16 %v4539, %v4532
    %v5065 = vpack.c.b16 %v4540, %v4533
    %v5066 = vpack.c.b16 %v4541, %v4534
    %v5067 = vpack.c.b16 %v4542, %v4535
    %v5068 = vpack.c.b16 %v4543, %v4536
    %v5069 = vpack.c.b16 %v4544, %v4537
    %v5070 = vpack.c.b16 %v4552, %v4545
    %v5071 = vpack.c.b16 %v4553, %v4546
    %v5072 = vpack.c.b16 %v4554, %v4547
    %v5073 = vpack.c.b16 %v4555, %v4548
    %v5074 = vpack.c.b16 %v4556, %v4549
    %v5075 = vpack.c.b16 %v4557, %v4550
    %v5076 = vpack.c.b16 %v4558, %v4551
    %v5077 = vpack.c.b16 %v4566, %v4559
    %v5078 = vpack.c.b16 %v4567, %v4560
    %v5079 = vpack.c.b16 %v4568, %v4561
    %v5080 = vpack.c.b16 %v4569, %v4562
    %v5081 = vpack.c.b16 %v4570, %v4563
    %v5082 = vpack.c.b16 %v4571, %v4564
    %v5083 = vpack.c.b16 %v4572, %v4565
    %v5084 = vpack.c.b16 %v4580, %v4573
    %v5085 = vpack.c.b16 %v4581, %v4574
    %v5086 = vpack.c.b16 %v4582, %v4575
    %v5087 = vpack.c.b16 %v4583, %v4576
    %v5088 = vpack.c.b16 %v4584, %v4577
    %v5089 = vpack.c.b16 %v4585, %v4578
    %v5090 = vpack.c.b16 %v4586, %v4579
    %v5091 = vpack.c.b16 %v4594, %v4587
    %v5092 = vpack.c.b16 %v4595, %v4588
    %v5093 = vpack.c.b16 %v4596, %v4589
    %v5094 = vpack.c.b16 %v4597, %v4590
    %v5095 = vpack.c.b16 %v4598, %v4591
    %v5096 = vpack.c.b16 %v4599, %v4592
    %v5097 = vpack.c.b16 %v4600, %v4593
    %v5098 = vpack.c.b16 %v4608, %v4601
    %v5099 = vpack.c.b16 %v4609, %v4602
    %v5100 = vpack.c.b16 %v4610, %v4603
    %v5101 = vpack.c.b16 %v4611, %v4604
    %v5102 = vpack.c.b16 %v4612, %v4605
    %v5103 = vpack.c.b16 %v4613, %v4606
    %v5104 = vpack.c.b16 %v4614, %v4607
    %v5105 = vpack.c.b16 %v4622, %v4615
    %v5106 = vpack.c.b16 %v4623, %v4616
    %v5107 = vpack.c.b16 %v4624, %v4617
    %v5108 = vpack.c.b16 %v4625, %v4618
    %v5109 = vpack.c.b16 %v4626, %v4619
    %v5110 = vpack.c.b16 %v4627, %v4620
    %v5111 = vpack.c.b16 %v4628, %v4621
    %v5112 = vpack.c.b16 %v4636, %v4629
    %v5113 = vpack.c.b16 %v4637, %v4630
    %v5114 = vpack.c.b16 %v4638, %v4631
    %v5115 = vpack.c.b16 %v4639, %v4632
    %v5116 = vpack.c.b16 %v4640, %v4633
    %v5117 = vpack.c.b16 %v4641, %v4634
    %v5118 = vpack.c.b16 %v4642, %v4635
    %v5119 = vpack.c.b16 %v4650, %v4643
    %v5120 = vpack.c.b16 %v4651, %v4644
    %v5121 = vpack.c.b16 %v4652, %v4645
    %v5122 = vpack.c.b16 %v4653, %v4646
    %v5123 = vpack.c.b16 %v4654, %v4647
    %v5124 = vpack.c.b16 %v4655, %v4648
    %v5125 = vpack.c.b16 %v4656, %v4649
    %v5126 = vpack.c.b16 %v4664, %v4657
    %v5127 = vpack.c.b16 %v4665, %v4658
    %v5128 = vpack.c.b16 %v4666, %v4659
    %v5129 = vpack.c.b16 %v4667, %v4660
    %v5130 = vpack.c.b16 %v4668, %v4661
    %v5131 = vpack.c.b16 %v4669, %v4662
    %v5132 = vpack.c.b16 %v4670, %v4663
    %v5133 = vpack.c.b16 %v4678, %v4671
    %v5134 = vpack.c.b16 %v4679, %v4672
    %v5135 = vpack.c.b16 %v4680, %v4673
    %v5136 = vpack.c.b16 %v4681, %v4674
    %v5137 = vpack.c.b16 %v4682, %v4675
    %v5138 = vpack.c.b16 %v4683, %v4676
    %v5139 = vpack.c.b16 %v4684, %v4677
    %v5140 = vpack.c.b16 %v4692, %v4685
    %v5141 = vpack.c.b16 %v4693, %v4686
    %v5142 = vpack.c.b16 %v4694, %v4687
    %v5143 = vpack.c.b16 %v4695, %v4688
    %v5144 = vpack.c.b16 %v4696, %v4689
    %v5145 = vpack.c.b16 %v4697, %v4690
    %v5146 = vpack.c.b16 %v4698, %v4691
    %5595 = vmatprep.subr.bf16.mxu0 %v4700
    %5596 = vmatpush1.bf16.msra.mxu0 %v4699
    %5597 = vmatprep.subr.bf16.mxu0 %v4707
    %5598 = vmatpush1.bf16.msra.mxu0 %v4706
    %5599 = vmatprep.subr.bf16.mxu0 %v4714
    %5600 = vmatpush1.bf16.msra.mxu0 %v4713
    %5601 = vmatprep.subr.bf16.mxu0 %v4721
    %5602 = vmatpush1.bf16.msra.mxu0 %v4720
    %5603 = vmatprep.subr.bf16.mxu0 %v4728
    %5604 = vmatpush1.bf16.msra.mxu0 %v4727
    %5605 = vmatprep.subr.bf16.mxu0 %v4735
    %5606 = vmatpush1.bf16.msra.mxu0 %v4734
    %5607 = vmatprep.subr.bf16.mxu0 %v4742
    %5608 = vmatpush1.bf16.msra.mxu0 %v4741
    %5609 = vmatprep.subr.bf16.mxu0 %v4749
    %5610 = vmatpush1.bf16.msra.mxu0 %v4748
    %5611 = vmatprep.subr.bf16.mxu0 %v4756
    %5612 = vmatpush1.bf16.msra.mxu0 %v4755
    %5613 = vmatprep.subr.bf16.mxu0 %v4763
    %5614 = vmatpush1.bf16.msra.mxu0 %v4762
    %5615 = vmatprep.subr.bf16.mxu0 %v4770
    %5616 = vmatpush1.bf16.msra.mxu0 %v4769
    %5617 = vmatprep.subr.bf16.mxu0 %v4777
    %5618 = vmatpush1.bf16.msra.mxu0 %v4776
    %5619 = vmatprep.subr.bf16.mxu0 %v4784
    %5620 = vmatpush1.bf16.msra.mxu0 %v4783
    %5621 = vmatprep.subr.bf16.mxu0 %v4791
    %5622 = vmatpush1.bf16.msra.mxu0 %v4790
    %5623 = vmatprep.subr.bf16.mxu0 %v4798
    %5624 = vmatpush1.bf16.msra.mxu0 %v4797
    %5625 = vmatprep.subr.bf16.mxu0 %v4805
    %5626 = vmatpush1.bf16.msra.mxu0 %v4804
    %5627 = vmatprep.mubr.bf16.mxu0 %v2735
    %5628 = vmatmul.mubr.bf16.gmra.mrb[0].mxu0 %v2734
    %v5629 = vpop.f32.mrb[0].mxu0
    %v5630 = vadd.f32 %v3259, %v5629
    %v5631 = vpop.f32.mrb[0].mxu0
    %v5632 = vadd.f32 %v3263, %v5631
    %v5633 = vpop.f32.mrb[0].mxu0
    %v5634 = vadd.f32 %v3259, %v5633
    %v5635 = vpop.f32.mrb[0].mxu0
    %v5636 = vadd.f32 %v3263, %v5635
    %5637 = vdwg.mxu0
    %5638 = vmatprep.subr.bf16.mxu0 %v4812
    %5639 = vmatpush1.bf16.msra.mxu0 %v4811
    %5640 = vmatprep.subr.bf16.mxu0 %v4819
    %5641 = vmatpush1.bf16.msra.mxu0 %v4818
    %5642 = vmatprep.subr.bf16.mxu0 %v4826
    %5643 = vmatpush1.bf16.msra.mxu0 %v4825
    %5644 = vmatprep.subr.bf16.mxu0 %v4833
    %5645 = vmatpush1.bf16.msra.mxu0 %v4832
    %5646 = vmatprep.subr.bf16.mxu0 %v4840
    %5647 = vmatpush1.bf16.msra.mxu0 %v4839
    %5648 = vmatprep.subr.bf16.mxu0 %v4847
    %5649 = vmatpush1.bf16.msra.mxu0 %v4846
    %5650 = vmatprep.subr.bf16.mxu0 %v4854
    %5651 = vmatpush1.bf16.msra.mxu0 %v4853
    %5652 = vmatprep.subr.bf16.mxu0 %v4861
    %5653 = vmatpush1.bf16.msra.mxu0 %v4860
    %5654 = vmatprep.subr.bf16.mxu0 %v4868
    %5655 = vmatpush1.bf16.msra.mxu0 %v4867
    %5656 = vmatprep.subr.bf16.mxu0 %v4875
    %5657 = vmatpush1.bf16.msra.mxu0 %v4874
    %5658 = vmatprep.subr.bf16.mxu0 %v4882
    %5659 = vmatpush1.bf16.msra.mxu0 %v4881
    %5660 = vmatprep.subr.bf16.mxu0 %v4889
    %5661 = vmatpush1.bf16.msra.mxu0 %v4888
    %5662 = vmatprep.subr.bf16.mxu0 %v4896
    %5663 = vmatpush1.bf16.msra.mxu0 %v4895
    %5664 = vmatprep.subr.bf16.mxu0 %v4903
    %5665 = vmatpush1.bf16.msra.mxu0 %v4902
    %5666 = vmatprep.subr.bf16.mxu0 %v4910
    %5667 = vmatpush1.bf16.msra.mxu0 %v4909
    %5668 = vmatprep.subr.bf16.mxu0 %v4917
    %5669 = vmatpush1.bf16.msra.mxu0 %v4916
    %5670 = vmatprep.mubr.bf16.mxu0 %v2737
    %5671 = vmatmul.mubr.bf16.gmra.mrb[0].mxu0 %v2736
    %v5672 = vpop.f32.mrb[0].mxu0
    %v5673 = vadd.f32 %v5630, %v5672
    %v5674 = vpop.f32.mrb[0].mxu0
    %v5675 = vadd.f32 %v5632, %v5674
    %v5676 = vpop.f32.mrb[0].mxu0
    %v5677 = vadd.f32 %v5634, %v5676
    %v5678 = vpop.f32.mrb[0].mxu0
    %v5679 = vadd.f32 %v5636, %v5678
    %5680 = vdwg.mxu0
    %5681 = vmatprep.subr.bf16.mxu0 %v4924
    %5682 = vmatpush1.bf16.msra.mxu0 %v4923
    %5683 = vmatprep.subr.bf16.mxu0 %v4931
    %5684 = vmatpush1.bf16.msra.mxu0 %v4930
    %5685 = vmatprep.subr.bf16.mxu0 %v4938
    %5686 = vmatpush1.bf16.msra.mxu0 %v4937
    %5687 = vmatprep.subr.bf16.mxu0 %v4945
    %5688 = vmatpush1.bf16.msra.mxu0 %v4944
    %5689 = vmatprep.subr.bf16.mxu0 %v4952
    %5690 = vmatpush1.bf16.msra.mxu0 %v4951
    %5691 = vmatprep.subr.bf16.mxu0 %v4959
    %5692 = vmatpush1.bf16.msra.mxu0 %v4958
    %5693 = vmatprep.subr.bf16.mxu0 %v4966
    %5694 = vmatpush1.bf16.msra.mxu0 %v4965
    %5695 = vmatprep.subr.bf16.mxu0 %v4973
    %5696 = vmatpush1.bf16.msra.mxu0 %v4972
    %5697 = vmatprep.subr.bf16.mxu0 %v4980
    %5698 = vmatpush1.bf16.msra.mxu0 %v4979
    %5699 = vmatprep.subr.bf16.mxu0 %v4987
    %5700 = vmatpush1.bf16.msra.mxu0 %v4986
    %5701 = vmatprep.subr.bf16.mxu0 %v4994
    %5702 = vmatpush1.bf16.msra.mxu0 %v4993
    %5703 = vmatprep.subr.bf16.mxu0 %v5001
    %5704 = vmatpush1.bf16.msra.mxu0 %v5000
    %5705 = vmatprep.subr.bf16.mxu0 %v5008
    %5706 = vmatpush1.bf16.msra.mxu0 %v5007
    %5707 = vmatprep.subr.bf16.mxu0 %v5015
    %5708 = vmatpush1.bf16.msra.mxu0 %v5014
    %5709 = vmatprep.subr.bf16.mxu0 %v5022
    %5710 = vmatpush1.bf16.msra.mxu0 %v5021
    %5711 = vmatprep.subr.bf16.mxu0 %v5029
    %5712 = vmatpush1.bf16.msra.mxu0 %v5028
    %5713 = vmatprep.mubr.bf16.mxu0 %v2739
    %5714 = vmatmul.mubr.bf16.gmra.mrb[0].mxu0 %v2738
    %v5715 = vpop.f32.mrb[0].mxu0
    %v5716 = vadd.f32 %v5673, %v5715
    %v5717 = vpop.f32.mrb[0].mxu0
    %v5718 = vadd.f32 %v5675, %v5717
    %v5719 = vpop.f32.mrb[0].mxu0
    %v5720 = vadd.f32 %v5677, %v5719
    %v5721 = vpop.f32.mrb[0].mxu0
    %v5722 = vadd.f32 %v5679, %v5721
    %5723 = vdwg.mxu0
    %5724 = vmatprep.subr.bf16.mxu0 %v5036
    %5725 = vmatpush1.bf16.msra.mxu0 %v5035
    %5726 = vmatprep.subr.bf16.mxu0 %v5043
    %5727 = vmatpush1.bf16.msra.mxu0 %v5042
    %5728 = vmatprep.subr.bf16.mxu0 %v5050
    %5729 = vmatpush1.bf16.msra.mxu0 %v5049
    %5730 = vmatprep.subr.bf16.mxu0 %v5057
    %5731 = vmatpush1.bf16.msra.mxu0 %v5056
    %5732 = vmatprep.subr.bf16.mxu0 %v5064
    %5733 = vmatpush1.bf16.msra.mxu0 %v5063
    %5734 = vmatprep.subr.bf16.mxu0 %v5071
    %5735 = vmatpush1.bf16.msra.mxu0 %v5070
    %5736 = vmatprep.subr.bf16.mxu0 %v5078
    %5737 = vmatpush1.bf16.msra.mxu0 %v5077
    %5738 = vmatprep.subr.bf16.mxu0 %v5085
    %5739 = vmatpush1.bf16.msra.mxu0 %v5084
    %5740 = vmatprep.subr.bf16.mxu0 %v5092
    %5741 = vmatpush1.bf16.msra.mxu0 %v5091
    %5742 = vmatprep.subr.bf16.mxu0 %v5099
    %5743 = vmatpush1.bf16.msra.mxu0 %v5098
    %5744 = vmatprep.subr.bf16.mxu0 %v5106
    %5745 = vmatpush1.bf16.msra.mxu0 %v5105
    %5746 = vmatprep.subr.bf16.mxu0 %v5113
    %5747 = vmatpush1.bf16.msra.mxu0 %v5112
    %5748 = vmatprep.subr.bf16.mxu0 %v5120
    %5749 = vmatpush1.bf16.msra.mxu0 %v5119
    %5750 = vmatprep.subr.bf16.mxu0 %v5127
    %5751 = vmatpush1.bf16.msra.mxu0 %v5126
    %5752 = vmatprep.subr.bf16.mxu0 %v5134
    %5753 = vmatpush1.bf16.msra.mxu0 %v5133
    %5754 = vmatprep.subr.bf16.mxu0 %v5141
    %5755 = vmatpush1.bf16.msra.mxu0 %v5140
    %5756 = vmatprep.mubr.bf16.mxu0 %v2741
    %5757 = vmatmul.mubr.bf16.gmra.mrb[0].mxu0 %v2740
    %v5758 = vpop.f32.mrb[0].mxu0
    %v5759 = vadd.f32 %v5716, %v5758
    %v5760 = vpop.f32.mrb[0].mxu0
    %v5761 = vadd.f32 %v5718, %v5760
    %v5762 = vpop.f32.mrb[0].mxu0
    %v5763 = vadd.f32 %v5720, %v5762
    %v5764 = vpop.f32.mrb[0].mxu0
    %v5765 = vadd.f32 %v5722, %v5764
    %5766 = vdwg.mxu0
    %5767 = vmatprep.subr.bf16.mxu0 %v4702
    %5768 = vmatpush1.bf16.msra.mxu0 %v4701
    %5769 = vmatprep.subr.bf16.mxu0 %v4709
    %5770 = vmatpush1.bf16.msra.mxu0 %v4708
    %5771 = vmatprep.subr.bf16.mxu0 %v4716
    %5772 = vmatpush1.bf16.msra.mxu0 %v4715
    %5773 = vmatprep.subr.bf16.mxu0 %v4723
    %5774 = vmatpush1.bf16.msra.mxu0 %v4722
    %5775 = vmatprep.subr.bf16.mxu0 %v4730
    %5776 = vmatpush1.bf16.msra.mxu0 %v4729
    %5777 = vmatprep.subr.bf16.mxu0 %v4737
    %5778 = vmatpush1.bf16.msra.mxu0 %v4736
    %5779 = vmatprep.subr.bf16.mxu0 %v4744
    %5780 = vmatpush1.bf16.msra.mxu0 %v4743
    %5781 = vmatprep.subr.bf16.mxu0 %v4751
    %5782 = vmatpush1.bf16.msra.mxu0 %v4750
    %5783 = vmatprep.subr.bf16.mxu0 %v4758
    %5784 = vmatpush1.bf16.msra.mxu0 %v4757
    %5785 = vmatprep.subr.bf16.mxu0 %v4765
    %5786 = vmatpush1.bf16.msra.mxu0 %v4764
    %5787 = vmatprep.subr.bf16.mxu0 %v4772
    %5788 = vmatpush1.bf16.msra.mxu0 %v4771
    %5789 = vmatprep.subr.bf16.mxu0 %v4779
    %5790 = vmatpush1.bf16.msra.mxu0 %v4778
    %5791 = vmatprep.subr.bf16.mxu0 %v4786
    %5792 = vmatpush1.bf16.msra.mxu0 %v4785
    %5793 = vmatprep.subr.bf16.mxu0 %v4793
    %5794 = vmatpush1.bf16.msra.mxu0 %v4792
    %5795 = vmatprep.subr.bf16.mxu0 %v4800
    %5796 = vmatpush1.bf16.msra.mxu0 %v4799
    %5797 = vmatprep.subr.bf16.mxu0 %v4807
    %5798 = vmatpush1.bf16.msra.mxu0 %v4806
    %5799 = vmatprep.mubr.bf16.mxu0 %v2735
    %5800 = vmatmul.mubr.bf16.gmra.mrb[0].mxu0 %v2734
    %v5801 = vpop.f32.mrb[0].mxu0
    %v5802 = vadd.f32 %v3267, %v5801
    %v5803 = vpop.f32.mrb[0].mxu0
    %v5804 = vadd.f32 %v3271, %v5803
    %v5805 = vpop.f32.mrb[0].mxu0
    %v5806 = vadd.f32 %v3267, %v5805
    %v5807 = vpop.f32.mrb[0].mxu0
    %v5808 = vadd.f32 %v3271, %v5807
    %5809 = vdwg.mxu0
    %5810 = vmatprep.subr.bf16.mxu0 %v4814
    %5811 = vmatpush1.bf16.msra.mxu0 %v4813
    %5812 = vmatprep.subr.bf16.mxu0 %v4821
    %5813 = vmatpush1.bf16.msra.mxu0 %v4820
    %5814 = vmatprep.subr.bf16.mxu0 %v4828
    %5815 = vmatpush1.bf16.msra.mxu0 %v4827
    %5816 = vmatprep.subr.bf16.mxu0 %v4835
    %5817 = vmatpush1.bf16.msra.mxu0 %v4834
    %5818 = vmatprep.subr.bf16.mxu0 %v4842
    %5819 = vmatpush1.bf16.msra.mxu0 %v4841
    %5820 = vmatprep.subr.bf16.mxu0 %v4849
    %5821 = vmatpush1.bf16.msra.mxu0 %v4848
    %5822 = vmatprep.subr.bf16.mxu0 %v4856
    %5823 = vmatpush1.bf16.msra.mxu0 %v4855
    %5824 = vmatprep.subr.bf16.mxu0 %v4863
    %5825 = vmatpush1.bf16.msra.mxu0 %v4862
    %5826 = vmatprep.subr.bf16.mxu0 %v4870
    %5827 = vmatpush1.bf16.msra.mxu0 %v4869
    %5828 = vmatprep.subr.bf16.mxu0 %v4877
    %5829 = vmatpush1.bf16.msra.mxu0 %v4876
    %5830 = vmatprep.subr.bf16.mxu0 %v4884
    %5831 = vmatpush1.bf16.msra.mxu0 %v4883
    %5832 = vmatprep.subr.bf16.mxu0 %v4891
    %5833 = vmatpush1.bf16.msra.mxu0 %v4890
    %5834 = vmatprep.subr.bf16.mxu0 %v4898
    %5835 = vmatpush1.bf16.msra.mxu0 %v4897
    %5836 = vmatprep.subr.bf16.mxu0 %v4905
    %5837 = vmatpush1.bf16.msra.mxu0 %v4904
    %5838 = vmatprep.subr.bf16.mxu0 %v4912
    %5839 = vmatpush1.bf16.msra.mxu0 %v4911
    %5840 = vmatprep.subr.bf16.mxu0 %v4919
    %5841 = vmatpush1.bf16.msra.mxu0 %v4918
    %5842 = vmatprep.mubr.bf16.mxu0 %v2737
    %5843 = vmatmul.mubr.bf16.gmra.mrb[0].mxu0 %v2736
    %v5844 = vpop.f32.mrb[0].mxu0
    %v5845 = vadd.f32 %v5802, %v5844
    %v5846 = vpop.f32.mrb[0].mxu0
    %v5847 = vadd.f32 %v5804, %v5846
    %v5848 = vpop.f32.mrb[0].mxu0
    %v5849 = vadd.f32 %v5806, %v5848
    %v5850 = vpop.f32.mrb[0].mxu0
    %v5851 = vadd.f32 %v5808, %v5850
    %5852 = vdwg.mxu0
    %5853 = vmatprep.subr.bf16.mxu0 %v4926
    %5854 = vmatpush1.bf16.msra.mxu0 %v4925
    %5855 = vmatprep.subr.bf16.mxu0 %v4933
    %5856 = vmatpush1.bf16.msra.mxu0 %v4932
    %5857 = vmatprep.subr.bf16.mxu0 %v4940
    %5858 = vmatpush1.bf16.msra.mxu0 %v4939
    %5859 = vmatprep.subr.bf16.mxu0 %v4947
    %5860 = vmatpush1.bf16.msra.mxu0 %v4946
    %5861 = vmatprep.subr.bf16.mxu0 %v4954
    %5862 = vmatpush1.bf16.msra.mxu0 %v4953
    %5863 = vmatprep.subr.bf16.mxu0 %v4961
    %5864 = vmatpush1.bf16.msra.mxu0 %v4960
    %5865 = vmatprep.subr.bf16.mxu0 %v4968
    %5866 = vmatpush1.bf16.msra.mxu0 %v4967
    %5867 = vmatprep.subr.bf16.mxu0 %v4975
    %5868 = vmatpush1.bf16.msra.mxu0 %v4974
    %5869 = vmatprep.subr.bf16.mxu0 %v4982
    %5870 = vmatpush1.bf16.msra.mxu0 %v4981
    %5871 = vmatprep.subr.bf16.mxu0 %v4989
    %5872 = vmatpush1.bf16.msra.mxu0 %v4988
    %5873 = vmatprep.subr.bf16.mxu0 %v4996
    %5874 = vmatpush1.bf16.msra.mxu0 %v4995
    %5875 = vmatprep.subr.bf16.mxu0 %v5003
    %5876 = vmatpush1.bf16.msra.mxu0 %v5002
    %5877 = vmatprep.subr.bf16.mxu0 %v5010
    %5878 = vmatpush1.bf16.msra.mxu0 %v5009
    %5879 = vmatprep.subr.bf16.mxu0 %v5017
    %5880 = vmatpush1.bf16.msra.mxu0 %v5016
    %5881 = vmatprep.subr.bf16.mxu0 %v5024
    %5882 = vmatpush1.bf16.msra.mxu0 %v5023
    %5883 = vmatprep.subr.bf16.mxu0 %v5031
    %5884 = vmatpush1.bf16.msra.mxu0 %v5030
    %5885 = vmatprep.mubr.bf16.mxu0 %v2739
    %5886 = vmatmul.mubr.bf16.gmra.mrb[0].mxu0 %v2738
    %v5887 = vpop.f32.mrb[0].mxu0
    %v5888 = vadd.f32 %v5845, %v5887
    %v5889 = vpop.f32.mrb[0].mxu0
    %v5890 = vadd.f32 %v5847, %v5889
    %v5891 = vpop.f32.mrb[0].mxu0
    %v5892 = vadd.f32 %v5849, %v5891
    %v5893 = vpop.f32.mrb[0].mxu0
    %v5894 = vadd.f32 %v5851, %v5893
    %5895 = vdwg.mxu0
    %5896 = vmatprep.subr.bf16.mxu0 %v5038
    %5897 = vmatpush1.bf16.msra.mxu0 %v5037
    %5898 = vmatprep.subr.bf16.mxu0 %v5045
    %5899 = vmatpush1.bf16.msra.mxu0 %v5044
    %5900 = vmatprep.subr.bf16.mxu0 %v5052
    %5901 = vmatpush1.bf16.msra.mxu0 %v5051
    %5902 = vmatprep.subr.bf16.mxu0 %v5059
    %5903 = vmatpush1.bf16.msra.mxu0 %v5058
    %5904 = vmatprep.subr.bf16.mxu0 %v5066
    %5905 = vmatpush1.bf16.msra.mxu0 %v5065
    %5906 = vmatprep.subr.bf16.mxu0 %v5073
    %5907 = vmatpush1.bf16.msra.mxu0 %v5072
    %5908 = vmatprep.subr.bf16.mxu0 %v5080
    %5909 = vmatpush1.bf16.msra.mxu0 %v5079
    %5910 = vmatprep.subr.bf16.mxu0 %v5087
    %5911 = vmatpush1.bf16.msra.mxu0 %v5086
    %5912 = vmatprep.subr.bf16.mxu0 %v5094
    %5913 = vmatpush1.bf16.msra.mxu0 %v5093
    %5914 = vmatprep.subr.bf16.mxu0 %v5101
    %5915 = vmatpush1.bf16.msra.mxu0 %v5100
    %5916 = vmatprep.subr.bf16.mxu0 %v5108
    %5917 = vmatpush1.bf16.msra.mxu0 %v5107
    %5918 = vmatprep.subr.bf16.mxu0 %v5115
    %5919 = vmatpush1.bf16.msra.mxu0 %v5114
    %5920 = vmatprep.subr.bf16.mxu0 %v5122
    %5921 = vmatpush1.bf16.msra.mxu0 %v5121
    %5922 = vmatprep.subr.bf16.mxu0 %v5129
    %5923 = vmatpush1.bf16.msra.mxu0 %v5128
    %5924 = vmatprep.subr.bf16.mxu0 %v5136
    %5925 = vmatpush1.bf16.msra.mxu0 %v5135
    %5926 = vmatprep.subr.bf16.mxu0 %v5143
    %5927 = vmatpush1.bf16.msra.mxu0 %v5142
    %5928 = vmatprep.mubr.bf16.mxu0 %v2741
    %5929 = vmatmul.mubr.bf16.gmra.mrb[0].mxu0 %v2740
    %v5930 = vpop.f32.mrb[0].mxu0
    %v5931 = vadd.f32 %v5888, %v5930
    %v5932 = vpop.f32.mrb[0].mxu0
    %v5933 = vadd.f32 %v5890, %v5932
    %v5934 = vpop.f32.mrb[0].mxu0
    %v5935 = vadd.f32 %v5892, %v5934
    %v5936 = vpop.f32.mrb[0].mxu0
    %v5937 = vadd.f32 %v5894, %v5936
    %5938 = vdwg.mxu0
    %5939 = vmatprep.subr.bf16.mxu0 %v4704
    %5940 = vmatpush1.bf16.msra.mxu0 %v4703
    %5941 = vmatprep.subr.bf16.mxu0 %v4711
    %5942 = vmatpush1.bf16.msra.mxu0 %v4710
    %5943 = vmatprep.subr.bf16.mxu0 %v4718
    %5944 = vmatpush1.bf16.msra.mxu0 %v4717
    %5945 = vmatprep.subr.bf16.mxu0 %v4725
    %5946 = vmatpush1.bf16.msra.mxu0 %v4724
    %5947 = vmatprep.subr.bf16.mxu0 %v4732
    %5948 = vmatpush1.bf16.msra.mxu0 %v4731
    %5949 = vmatprep.subr.bf16.mxu0 %v4739
    %5950 = vmatpush1.bf16.msra.mxu0 %v4738
    %5951 = vmatprep.subr.bf16.mxu0 %v4746
    %5952 = vmatpush1.bf16.msra.mxu0 %v4745
    %5953 = vmatprep.subr.bf16.mxu0 %v4753
    %5954 = vmatpush1.bf16.msra.mxu0 %v4752
    %5955 = vmatprep.subr.bf16.mxu0 %v4760
    %5956 = vmatpush1.bf16.msra.mxu0 %v4759
    %5957 = vmatprep.subr.bf16.mxu0 %v4767
    %5958 = vmatpush1.bf16.msra.mxu0 %v4766
    %5959 = vmatprep.subr.bf16.mxu0 %v4774
    %5960 = vmatpush1.bf16.msra.mxu0 %v4773
    %5961 = vmatprep.subr.bf16.mxu0 %v4781
    %5962 = vmatpush1.bf16.msra.mxu0 %v4780
    %5963 = vmatprep.subr.bf16.mxu0 %v4788
    %5964 = vmatpush1.bf16.msra.mxu0 %v4787
    %5965 = vmatprep.subr.bf16.mxu0 %v4795
    %5966 = vmatpush1.bf16.msra.mxu0 %v4794
    %5967 = vmatprep.subr.bf16.mxu0 %v4802
    %5968 = vmatpush1.bf16.msra.mxu0 %v4801
    %5969 = vmatprep.subr.bf16.mxu0 %v4809
    %5970 = vmatpush1.bf16.msra.mxu0 %v4808
    %5971 = vmatprep.mubr.bf16.mxu0 %v2735
    %5972 = vmatmul.mubr.bf16.gmra.mrb[0].mxu0 %v2734
    %v5973 = vpop.f32.mrb[0].mxu0
    %v5974 = vadd.f32 %v3275, %v5973
    %v5975 = vpop.f32.mrb[0].mxu0
    %v5976 = vadd.f32 %v3279, %v5975
    %v5977 = vpop.f32.mrb[0].mxu0
    %v5978 = vadd.f32 %v3275, %v5977
    %v5979 = vpop.f32.mrb[0].mxu0
    %v5980 = vadd.f32 %v3279, %v5979
    %5981 = vdwg.mxu0
    %5982 = vmatprep.subr.bf16.mxu0 %v4816
    %5983 = vmatpush1.bf16.msra.mxu0 %v4815
    %5984 = vmatprep.subr.bf16.mxu0 %v4823
    %5985 = vmatpush1.bf16.msra.mxu0 %v4822
    %5986 = vmatprep.subr.bf16.mxu0 %v4830
    %5987 = vmatpush1.bf16.msra.mxu0 %v4829
    %5988 = vmatprep.subr.bf16.mxu0 %v4837
    %5989 = vmatpush1.bf16.msra.mxu0 %v4836
    %5990 = vmatprep.subr.bf16.mxu0 %v4844
    %5991 = vmatpush1.bf16.msra.mxu0 %v4843
    %5992 = vmatprep.subr.bf16.mxu0 %v4851
    %5993 = vmatpush1.bf16.msra.mxu0 %v4850
    %5994 = vmatprep.subr.bf16.mxu0 %v4858
    %5995 = vmatpush1.bf16.msra.mxu0 %v4857
    %5996 = vmatprep.subr.bf16.mxu0 %v4865
    %5997 = vmatpush1.bf16.msra.mxu0 %v4864
    %5998 = vmatprep.subr.bf16.mxu0 %v4872
    %5999 = vmatpush1.bf16.msra.mxu0 %v4871
    %6000 = vmatprep.subr.bf16.mxu0 %v4879
    %6001 = vmatpush1.bf16.msra.mxu0 %v4878
    %6002 = vmatprep.subr.bf16.mxu0 %v4886
    %6003 = vmatpush1.bf16.msra.mxu0 %v4885
    %6004 = vmatprep.subr.bf16.mxu0 %v4893
    %6005 = vmatpush1.bf16.msra.mxu0 %v4892
    %6006 = vmatprep.subr.bf16.mxu0 %v4900
    %6007 = vmatpush1.bf16.msra.mxu0 %v4899
    %6008 = vmatprep.subr.bf16.mxu0 %v4907
    %6009 = vmatpush1.bf16.msra.mxu0 %v4906
    %6010 = vmatprep.subr.bf16.mxu0 %v4914
    %6011 = vmatpush1.bf16.msra.mxu0 %v4913
    %6012 = vmatprep.subr.bf16.mxu0 %v4921
    %6013 = vmatpush1.bf16.msra.mxu0 %v4920
    %6014 = vmatprep.mubr.bf16.mxu0 %v2737
    %6015 = vmatmul.mubr.bf16.gmra.mrb[0].mxu0 %v2736
    %v6016 = vpop.f32.mrb[0].mxu0
    %v6017 = vadd.f32 %v5974, %v6016
    %v6018 = vpop.f32.mrb[0].mxu0
    %v6019 = vadd.f32 %v5976, %v6018
    %v6020 = vpop.f32.mrb[0].mxu0
    %v6021 = vadd.f32 %v5978, %v6020
    %v6022 = vpop.f32.mrb[0].mxu0
    %v6023 = vadd.f32 %v5980, %v6022
    %6024 = vdwg.mxu0
    %6025 = vmatprep.subr.bf16.mxu0 %v4928
    %6026 = vmatpush1.bf16.msra.mxu0 %v4927
    %6027 = vmatprep.subr.bf16.mxu0 %v4935
    %6028 = vmatpush1.bf16.msra.mxu0 %v4934
    %6029 = vmatprep.subr.bf16.mxu0 %v4942
    %6030 = vmatpush1.bf16.msra.mxu0 %v4941
    %6031 = vmatprep.subr.bf16.mxu0 %v4949
    %6032 = vmatpush1.bf16.msra.mxu0 %v4948
    %6033 = vmatprep.subr.bf16.mxu0 %v4956
    %6034 = vmatpush1.bf16.msra.mxu0 %v4955
    %6035 = vmatprep.subr.bf16.mxu0 %v4963
    %6036 = vmatpush1.bf16.msra.mxu0 %v4962
    %6037 = vmatprep.subr.bf16.mxu0 %v4970
    %6038 = vmatpush1.bf16.msra.mxu0 %v4969
    %6039 = vmatprep.subr.bf16.mxu0 %v4977
    %6040 = vmatpush1.bf16.msra.mxu0 %v4976
    %6041 = vmatprep.subr.bf16.mxu0 %v4984
    %6042 = vmatpush1.bf16.msra.mxu0 %v4983
    %6043 = vmatprep.subr.bf16.mxu0 %v4991
    %6044 = vmatpush1.bf16.msra.mxu0 %v4990
    %6045 = vmatprep.subr.bf16.mxu0 %v4998
    %6046 = vmatpush1.bf16.msra.mxu0 %v4997
    %6047 = vmatprep.subr.bf16.mxu0 %v5005
    %6048 = vmatpush1.bf16.msra.mxu0 %v5004
    %6049 = vmatprep.subr.bf16.mxu0 %v5012
    %6050 = vmatpush1.bf16.msra.mxu0 %v5011
    %6051 = vmatprep.subr.bf16.mxu0 %v5019
    %6052 = vmatpush1.bf16.msra.mxu0 %v5018
    %6053 = vmatprep.subr.bf16.mxu0 %v5026
    %6054 = vmatpush1.bf16.msra.mxu0 %v5025
    %6055 = vmatprep.subr.bf16.mxu0 %v5033
    %6056 = vmatpush1.bf16.msra.mxu0 %v5032
    %6057 = vmatprep.mubr.bf16.mxu0 %v2739
    %6058 = vmatmul.mubr.bf16.gmra.mrb[0].mxu0 %v2738
    %v6059 = vpop.f32.mrb[0].mxu0
    %v6060 = vadd.f32 %v6017, %v6059
    %v6061 = vpop.f32.mrb[0].mxu0
    %v6062 = vadd.f32 %v6019, %v6061
    %v6063 = vpop.f32.mrb[0].mxu0
    %v6064 = vadd.f32 %v6021, %v6063
    %v6065 = vpop.f32.mrb[0].mxu0
    %v6066 = vadd.f32 %v6023, %v6065
    %6067 = vdwg.mxu0
    %6068 = vmatprep.subr.bf16.mxu0 %v5040
    %6069 = vmatpush1.bf16.msra.mxu0 %v5039
    %6070 = vmatprep.subr.bf16.mxu0 %v5047
    %6071 = vmatpush1.bf16.msra.mxu0 %v5046
    %6072 = vmatprep.subr.bf16.mxu0 %v5054
    %6073 = vmatpush1.bf16.msra.mxu0 %v5053
    %6074 = vmatprep.subr.bf16.mxu0 %v5061
    %6075 = vmatpush1.bf16.msra.mxu0 %v5060
    %6076 = vmatprep.subr.bf16.mxu0 %v5068
    %6077 = vmatpush1.bf16.msra.mxu0 %v5067
    %6078 = vmatprep.subr.bf16.mxu0 %v5075
    %6079 = vmatpush1.bf16.msra.mxu0 %v5074
    %6080 = vmatprep.subr.bf16.mxu0 %v5082
    %6081 = vmatpush1.bf16.msra.mxu0 %v5081
    %6082 = vmatprep.subr.bf16.mxu0 %v5089
    %6083 = vmatpush1.bf16.msra.mxu0 %v5088
    %6084 = vmatprep.subr.bf16.mxu0 %v5096
    %6085 = vmatpush1.bf16.msra.mxu0 %v5095
    %6086 = vmatprep.subr.bf16.mxu0 %v5103
    %6087 = vmatpush1.bf16.msra.mxu0 %v5102
    %6088 = vmatprep.subr.bf16.mxu0 %v5110
    %6089 = vmatpush1.bf16.msra.mxu0 %v5109
    %6090 = vmatprep.subr.bf16.mxu0 %v5117
    %6091 = vmatpush1.bf16.msra.mxu0 %v5116
    %6092 = vmatprep.subr.bf16.mxu0 %v5124
    %6093 = vmatpush1.bf16.msra.mxu0 %v5123
    %6094 = vmatprep.subr.bf16.mxu0 %v5131
    %6095 = vmatpush1.bf16.msra.mxu0 %v5130
    %6096 = vmatprep.subr.bf16.mxu0 %v5138
    %6097 = vmatpush1.bf16.msra.mxu0 %v5137
    %6098 = vmatprep.subr.bf16.mxu0 %v5145
    %6099 = vmatpush1.bf16.msra.mxu0 %v5144
    %6100 = vmatprep.mubr.bf16.mxu0 %v2741
    %6101 = vmatmul.mubr.bf16.gmra.mrb[0].mxu0 %v2740
    %v6102 = vpop.f32.mrb[0].mxu0
    %v6103 = vadd.f32 %v6060, %v6102
    %v6104 = vpop.f32.mrb[0].mxu0
    %v6105 = vadd.f32 %v6062, %v6104
    %v6106 = vpop.f32.mrb[0].mxu0
    %v6107 = vadd.f32 %v6064, %v6106
    %v6108 = vpop.f32.mrb[0].mxu0
    %v6109 = vadd.f32 %v6066, %v6108
    %6110 = vdwg.mxu0
    %6111 = vmatprep.subr.bf16.mxu0 0
    %6112 = vmatpush1.bf16.msra.mxu0 %v4705
    %6113 = vmatprep.subr.bf16.mxu0 0
    %6114 = vmatpush1.bf16.msra.mxu0 %v4712
    %6115 = vmatprep.subr.bf16.mxu0 0
    %6116 = vmatpush1.bf16.msra.mxu0 %v4719
    %6117 = vmatprep.subr.bf16.mxu0 0
    %6118 = vmatpush1.bf16.msra.mxu0 %v4726
    %6119 = vmatprep.subr.bf16.mxu0 0
    %6120 = vmatpush1.bf16.msra.mxu0 %v4733
    %6121 = vmatprep.subr.bf16.mxu0 0
    %6122 = vmatpush1.bf16.msra.mxu0 %v4740
    %6123 = vmatprep.subr.bf16.mxu0 0
    %6124 = vmatpush1.bf16.msra.mxu0 %v4747
    %6125 = vmatprep.subr.bf16.mxu0 0
    %6126 = vmatpush1.bf16.msra.mxu0 %v4754
    %6127 = vmatprep.subr.bf16.mxu0 0
    %6128 = vmatpush1.bf16.msra.mxu0 %v4761
    %6129 = vmatprep.subr.bf16.mxu0 0
    %6130 = vmatpush1.bf16.msra.mxu0 %v4768
    %6131 = vmatprep.subr.bf16.mxu0 0
    %6132 = vmatpush1.bf16.msra.mxu0 %v4775
    %6133 = vmatprep.subr.bf16.mxu0 0
    %6134 = vmatpush1.bf16.msra.mxu0 %v4782
    %6135 = vmatprep.subr.bf16.mxu0 0
    %6136 = vmatpush1.bf16.msra.mxu0 %v4789
    %6137 = vmatprep.subr.bf16.mxu0 0
    %6138 = vmatpush1.bf16.msra.mxu0 %v4796
    %6139 = vmatprep.subr.bf16.mxu0 0
    %6140 = vmatpush1.bf16.msra.mxu0 %v4803
    %6141 = vmatprep.subr.bf16.mxu0 0
    %6142 = vmatpush1.bf16.msra.mxu0 %v4810
    %6143 = vmatprep.mubr.bf16.mxu0 %v2735
    %6144 = vmatmul.mubr.bf16.gmra.mrb[0].mxu0 %v2734
    %v6145 = vpop.f32.mrb[0].mxu0
    %v6146 = vadd.f32 %v3283, %v6145
    %v6147 = vpop.f32.mrb[0].mxu0
    %v6148 = vpop.f32.mrb[0].mxu0
    %v6149 = vadd.f32 %v3283, %v6148
    %v6150 = vpop.f32.mrb[0].mxu0
    %6151 = vdwg.mxu0
    %6152 = vmatprep.subr.bf16.mxu0 0
    %6153 = vmatpush1.bf16.msra.mxu0 %v4817
    %6154 = vmatprep.subr.bf16.mxu0 0
    %6155 = vmatpush1.bf16.msra.mxu0 %v4824
    %6156 = vmatprep.subr.bf16.mxu0 0
    %6157 = vmatpush1.bf16.msra.mxu0 %v4831
    %6158 = vmatprep.subr.bf16.mxu0 0
    %6159 = vmatpush1.bf16.msra.mxu0 %v4838
    %6160 = vmatprep.subr.bf16.mxu0 0
    %6161 = vmatpush1.bf16.msra.mxu0 %v4845
    %6162 = vmatprep.subr.bf16.mxu0 0
    %6163 = vmatpush1.bf16.msra.mxu0 %v4852
    %6164 = vmatprep.subr.bf16.mxu0 0
    %6165 = vmatpush1.bf16.msra.mxu0 %v4859
    %6166 = vmatprep.subr.bf16.mxu0 0
    %6167 = vmatpush1.bf16.msra.mxu0 %v4866
    %6168 = vmatprep.subr.bf16.mxu0 0
    %6169 = vmatpush1.bf16.msra.mxu0 %v4873
    %6170 = vmatprep.subr.bf16.mxu0 0
    %6171 = vmatpush1.bf16.msra.mxu0 %v4880
    %6172 = vmatprep.subr.bf16.mxu0 0
    %6173 = vmatpush1.bf16.msra.mxu0 %v4887
    %6174 = vmatprep.subr.bf16.mxu0 0
    %6175 = vmatpush1.bf16.msra.mxu0 %v4894
    %6176 = vmatprep.subr.bf16.mxu0 0
    %6177 = vmatpush1.bf16.msra.mxu0 %v4901
    %6178 = vmatprep.subr.bf16.mxu0 0
    %6179 = vmatpush1.bf16.msra.mxu0 %v4908
    %6180 = vmatprep.subr.bf16.mxu0 0
    %6181 = vmatpush1.bf16.msra.mxu0 %v4915
    %6182 = vmatprep.subr.bf16.mxu0 0
    %6183 = vmatpush1.bf16.msra.mxu0 %v4922
    %6184 = vmatprep.mubr.bf16.mxu0 %v2737
    %6185 = vmatmul.mubr.bf16.gmra.mrb[0].mxu0 %v2736
    %v6186 = vpop.f32.mrb[0].mxu0
    %v6187 = vadd.f32 %v6146, %v6186
    %v6188 = vpop.f32.mrb[0].mxu0
    %v6189 = vpop.f32.mrb[0].mxu0
    %v6190 = vadd.f32 %v6149, %v6189
    %v6191 = vpop.f32.mrb[0].mxu0
    %6192 = vdwg.mxu0
    %6193 = vmatprep.subr.bf16.mxu0 0
    %6194 = vmatpush1.bf16.msra.mxu0 %v4929
    %6195 = vmatprep.subr.bf16.mxu0 0
    %6196 = vmatpush1.bf16.msra.mxu0 %v4936
    %6197 = vmatprep.subr.bf16.mxu0 0
    %6198 = vmatpush1.bf16.msra.mxu0 %v4943
    %6199 = vmatprep.subr.bf16.mxu0 0
    %6200 = vmatpush1.bf16.msra.mxu0 %v4950
    %6201 = vmatprep.subr.bf16.mxu0 0
    %6202 = vmatpush1.bf16.msra.mxu0 %v4957
    %6203 = vmatprep.subr.bf16.mxu0 0
    %6204 = vmatpush1.bf16.msra.mxu0 %v4964
    %6205 = vmatprep.subr.bf16.mxu0 0
    %6206 = vmatpush1.bf16.msra.mxu0 %v4971
    %6207 = vmatprep.subr.bf16.mxu0 0
    %6208 = vmatpush1.bf16.msra.mxu0 %v4978
    %6209 = vmatprep.subr.bf16.mxu0 0
    %6210 = vmatpush1.bf16.msra.mxu0 %v4985
    %6211 = vmatprep.subr.bf16.mxu0 0
    %6212 = vmatpush1.bf16.msra.mxu0 %v4992
    %6213 = vmatprep.subr.bf16.mxu0 0
    %6214 = vmatpush1.bf16.msra.mxu0 %v4999
    %6215 = vmatprep.subr.bf16.mxu0 0
    %6216 = vmatpush1.bf16.msra.mxu0 %v5006
    %6217 = vmatprep.subr.bf16.mxu0 0
    %6218 = vmatpush1.bf16.msra.mxu0 %v5013
    %6219 = vmatprep.subr.bf16.mxu0 0
    %6220 = vmatpush1.bf16.msra.mxu0 %v5020
    %6221 = vmatprep.subr.bf16.mxu0 0
    %6222 = vmatpush1.bf16.msra.mxu0 %v5027
    %6223 = vmatprep.subr.bf16.mxu0 0
    %6224 = vmatpush1.bf16.msra.mxu0 %v5034
    %6225 = vmatprep.mubr.bf16.mxu0 %v2739
    %6226 = vmatmul.mubr.bf16.gmra.mrb[0].mxu0 %v2738
    %v6227 = vpop.f32.mrb[0].mxu0
    %v6228 = vadd.f32 %v6187, %v6227
    %v6229 = vpop.f32.mrb[0].mxu0
    %v6230 = vpop.f32.mrb[0].mxu0
    %v6231 = vadd.f32 %v6190, %v6230
    %v6232 = vpop.f32.mrb[0].mxu0
    %6233 = vdwg.mxu0
    %6234 = vmatprep.subr.bf16.mxu0 0
    %6235 = vmatpush1.bf16.msra.mxu0 %v5041
    %6236 = vmatprep.subr.bf16.mxu0 0
    %6237 = vmatpush1.bf16.msra.mxu0 %v5048
    %6238 = vmatprep.subr.bf16.mxu0 0
    %6239 = vmatpush1.bf16.msra.mxu0 %v5055
    %6240 = vmatprep.subr.bf16.mxu0 0
    %6241 = vmatpush1.bf16.msra.mxu0 %v5062
    %6242 = vmatprep.subr.bf16.mxu0 0
    %6243 = vmatpush1.bf16.msra.mxu0 %v5069
    %6244 = vmatprep.subr.bf16.mxu0 0
    %6245 = vmatpush1.bf16.msra.mxu0 %v5076
    %6246 = vmatprep.subr.bf16.mxu0 0
    %6247 = vmatpush1.bf16.msra.mxu0 %v5083
    %6248 = vmatprep.subr.bf16.mxu0 0
    %6249 = vmatpush1.bf16.msra.mxu0 %v5090
    %6250 = vmatprep.subr.bf16.mxu0 0
    %6251 = vmatpush1.bf16.msra.mxu0 %v5097
    %6252 = vmatprep.subr.bf16.mxu0 0
    %6253 = vmatpush1.bf16.msra.mxu0 %v5104
    %6254 = vmatprep.subr.bf16.mxu0 0
    %6255 = vmatpush1.bf16.msra.mxu0 %v5111
    %6256 = vmatprep.subr.bf16.mxu0 0
    %6257 = vmatpush1.bf16.msra.mxu0 %v5118
    %6258 = vmatprep.subr.bf16.mxu0 0
    %6259 = vmatpush1.bf16.msra.mxu0 %v5125
    %6260 = vmatprep.subr.bf16.mxu0 0
    %6261 = vmatpush1.bf16.msra.mxu0 %v5132
    %6262 = vmatprep.subr.bf16.mxu0 0
    %6263 = vmatpush1.bf16.msra.mxu0 %v5139
    %6264 = vmatprep.subr.bf16.mxu0 0
    %6265 = vmatpush1.bf16.msra.mxu0 %v5146
    %6266 = vmatprep.mubr.bf16.mxu0 %v2741
    %6267 = vmatmul.mubr.bf16.gmra.mrb[0].mxu0 %v2740
    %v6268 = vpop.f32.mrb[0].mxu0
    %v6269 = vadd.f32 %v6228, %v6268
    %v6270 = vpop.f32.mrb[0].mxu0
    %v6271 = vpop.f32.mrb[0].mxu0
    %v6272 = vadd.f32 %v6231, %v6271
    %v6273 = vpop.f32.mrb[0].mxu0
    %6274 = vdwg.mxu0
    %v6275 = vtanh.pop %v5759
    %v6276 = vtanh.pop %v5761
    %v6277 = vtanh.pop %v5931
    %v6278 = vtanh.pop %v5933
    %v6279 = vtanh.pop %v6103
    %v6280 = vtanh.pop %v6105
    %v6281 = vtanh.pop %v6269
    %v6282 = vtanh.pop %v5763
    %v6283 = vtanh.pop %v5765
    %v6284 = vtanh.pop %v5935
    %v6285 = vtanh.pop %v5937
    %v6286 = vtanh.pop %v6107
    %v6287 = vtanh.pop %v6109
    %v6288 = vtanh.pop %v6272
    %6289 = vst [vmem:[#allocation17] sm:$0xff] %v6275
    %6290 = vst [vmem:[#allocation17 + $0x8] sm:$0xff] %v6276
    %6291 = vst [vmem:[#allocation17 + $0x10] sm:$0xff] %v6277
    %6292 = vst [vmem:[#allocation17 + $0x18] sm:$0xff] %v6278
    %6293 = vst [vmem:[#allocation17 + $0x20] sm:$0xff] %v6279
    %6294 = vst [vmem:[#allocation17 + $0x28] sm:$0xff] %v6280
    %6295 = vst [vmem:[#allocation17 + $0x30] sm:$0xff] %v6281
    %6296 = vst [vmem:[#allocation17 + $0x38] sm:$0xff] %v6282
    %6297 = vst [vmem:[#allocation17 + $0x40] sm:$0xff] %v6283
    %6298 = vst [vmem:[#allocation17 + $0x48] sm:$0xff] %v6284
    %6299 = vst [vmem:[#allocation17 + $0x50] sm:$0xff] %v6285
    %6300 = vst [vmem:[#allocation17 + $0x58] sm:$0xff] %v6286
    %6301 = vst [vmem:[#allocation17 + $0x60] sm:$0xff] %v6287
    %6302 = vst [vmem:[#allocation17 + $0x68] sm:$0xff] %v6288
    // Predicated region
    $region74: #{tpu_custom_call.1} parent=1 // pred_check
      _
    $region75: #{tpu_custom_call.1} parent=1 // pred_check_branch
      %6304 = sbr.rel (0) target = $region77
    $region76: #{tpu_custom_call.1} parent=1 // pred_region
      %s6306 = ssub.s32 1792, 1792
      %6307 = vsyncadd [#allocation4], %s6306
      %s6308 = sshll.u32 [#allocation17], 4
      %s6309 = int_to_ptr.vmem [resolvable:$true] %s6308
      %6314 = dma.vmem_to_hbm [thread:$0]  %s6309, 1792, %s9, [#allocation4], 896, 896, 56
    $region77: #{tpu_custom_call.1} parent=1 // pred_fallthru
      _
    // Predicated region
    $region78: #{tpu_custom_call.1} parent=1 // pred_check
      _
    $region79: #{tpu_custom_call.1} parent=1 // pred_check_branch
      %6316 = sbr.rel (0) target = $region81
    $region80: #{tpu_custom_call.1} parent=1 // pred_region
      %6317 = dma.done [#allocation4], 1792
    $region81: #{tpu_custom_call.1} parent=1 // pred_fallthru
      _
    %6318 = vsyncpa [#allocation3], 1
    %6319 = vsyncpa [#allocation6], 1
    %6320 = vsyncpa [#allocation9], 1
    %6321 = vsyncpa [#allocation12], 1
    %6322 = vsyncpa [#allocation15], 1
    %6323 = vsyncpa [#allocation4], 1

</llo_original>
